<compile_context>
chip_gen: v5e
topology: v5e:2x2
jax: 0.10.0
libtpu: 0.0.40
codegen_flags: <defaults>
</compile_context>

<pallas_src>
from functools import partial

import jax
import jax.numpy as jnp
import numpy as np
from jax import lax
from jax.experimental import pallas as pl
from jax.experimental.pallas import tpu as pltpu


# ----------------------------- padding helpers --------------------------------
def _round_up(x, m):
    return ((x + m - 1) // m) * m


def _pad_to(a, shape):
    pads = [(0, s - d) for d, s in zip(a.shape, shape)]
    return jnp.pad(a, pads)


def _pad_gru_gates(w, H, Hp):
    # w: (K, 3H), gate order r|z|n  ->  (K, 3*Hp) with each gate at a 128-aligned offset.
    K = w.shape[0]
    out = jnp.zeros((K, 3 * Hp), w.dtype)
    for g in range(3):
        out = out.at[:, g * Hp:g * Hp + H].set(w[:, g * H:(g + 1) * H])
    return out


# ------------------------------ fused kernel ----------------------------------
def decoder_kernel(x_ref, m_ref, h0_ref, ctx_ref,
                   wih_ref, bih_ref, whh_ref, bhh_ref,
                   win_ref, woutc_ref, wouto_ref, bout_ref,
                   wv_ref, bv_ref,
                   logp_ref, hT_ref, attn_ref,
                   *, valid_tc):
    # x_ref:   (Ty, BB, Ep)   time-major embedded inputs (padded)
    # m_ref:   (Ty, BB, 1)    1.0 where t < y_len[b] else 0.0
    # h0_ref:  (BB, Hp)
    # ctx_ref: (BB, Tcp, Cp)  encoder context (zero padded rows/cols)
    # weights: gate-fused GRU weights (gates 128-lane aligned), attention & vocab head
    # outputs: logp (BB, Ty, Vp), hT (BB, Hp), attn (BB, Ty, Tcp)
    f32 = jnp.float32
    Ty, BB, Ep = x_ref.shape
    Hp = h0_ref.shape[-1]
    Tcp, Cp = ctx_ref.shape[1], ctx_ref.shape[2]
    Vp = logp_ref.shape[-1]

    # ---- GRU input projection hoisted out of the recurrence: one big MXU matmul ----
    x_flat = x_ref[...].reshape(Ty * BB, Ep)
    gi_all = (jnp.dot(x_flat, wih_ref[...], preferred_element_type=f32)
              + bih_ref[...]).reshape(Ty, BB, 3 * Hp)

    # loop-invariant loads hoisted out of the recurrence
    m_all = m_ref[...]                       # (Ty, BB, 1)
    whh = whh_ref[...]                       # (Hp, 3Hp)
    bhh = bhh_ref[...]                       # (1, 3Hp)

    # ---- recurrence: fully unrolled (Ty small & static) for scheduler visibility ----
    h = h0_ref[...]                          # (BB, Hp)
    outs = []
    for t in range(Ty):
        gi = gi_all[t]                                               # (BB, 3Hp) static slice
        gh = jnp.dot(h, whh, preferred_element_type=f32) + bhh       # (BB, 3Hp)
        # Hp % 128 == 0 -> each gate slice below is a whole 128-lane block (no shuffles)
        r = jax.nn.sigmoid(gi[:, 0:Hp] + gh[:, 0:Hp])
        z = jax.nn.sigmoid(gi[:, Hp:2 * Hp] + gh[:, Hp:2 * Hp])
        n = jnp.tanh(gi[:, 2 * Hp:3 * Hp] + r * gh[:, 2 * Hp:3 * Hp])
        h_new = (1.0 - z) * n + z * h
        m = m_all[t]                                                 # (BB, 1)
        out_t = m * h_new                    # zero past sequence end (pad_packed_sequence)
        outs.append(out_t)
        h = out_t + (1.0 - m) * h            # freeze hidden past each sequence end
    hT_ref[...] = h

    # GRU outputs stay resident in VMEM; convert time-major -> batch-major in-kernel.
    out_tm = jnp.stack(outs, axis=0)                     # (Ty, BB, Hp)
    out_seq = pltpu.einshape("tbh->bth", out_tm)         # (BB, Ty, Hp)

    # ---- attention over the whole batch block (batched einsums, no per-batch grid) ----
    ctx = ctx_ref[...]                                   # (BB, Tcp, Cp)
    ctx_in = jnp.dot(ctx.reshape(BB * Tcp, Cp), win_ref[...],
                     preferred_element_type=f32).reshape(BB, Tcp, Hp)
    scores = jnp.einsum("bqd,bkd->bqk", out_seq, ctx_in,
                        preferred_element_type=f32)      # (BB, Ty, Tcp)
    # NOTE: the original masked_fill result is discarded -> the user mask is a no-op.
    # Only our structural Tc padding is excluded from the softmax:
    if valid_tc < Tcp:
        col = lax.broadcasted_iota(jnp.int32, (1, 1, Tcp), 2)
        scores = jnp.where(col < valid_tc, scores, -1e30)
    smax = jnp.max(scores, axis=-1, keepdims=True)
    e = jnp.exp(scores - smax)
    attn = e / jnp.sum(e, axis=-1, keepdims=True)        # softmax(dim=2)
    attn_ref[...] = attn

    c = jnp.einsum("bqk,bkc->bqc", attn, ctx, preferred_element_type=f32)   # (BB, Ty, Cp)

    # linear_out(concat([context, output])) == context @ Wc + output @ Wo + b,
    # flattened to M = BB*Ty rows for full-width MXU matmuls.
    h_att = jnp.tanh(
        jnp.dot(c.reshape(BB * Ty, Cp), woutc_ref[...], preferred_element_type=f32)
        + jnp.dot(out_seq.reshape(BB * Ty, Hp), wouto_ref[...], preferred_element_type=f32)
        + bout_ref[...])                                                    # (BB*Ty, Hp)

    # ---- vocab head + log-softmax (padded vocab columns carry bias -1e30 -> no effect) ----
    # TODO(synk): for large vocabularies, tile the vocab projection over a grid axis with an
    # online log-softmax instead of keeping the full (Hp, Vp) weight resident in VMEM.
    logits = jnp.dot(h_att, wv_ref[...], preferred_element_type=f32) + bv_ref[...]
    lmax = jnp.max(logits, axis=-1, keepdims=True)
    lse = jnp.log(jnp.sum(jnp.exp(logits - lmax), axis=-1, keepdims=True))
    logp_ref[...] = (logits - lmax - lse).reshape(BB, Ty, Vp)


# ------------------------------ parameter padding ------------------------------
def pad_decoder_params(params):
    """One-time padding of weights to (8, 128)-friendly, gate-aligned shapes."""
    E = params["embed"].shape[1]
    H = params["gru_whh_t"].shape[0]
    C = params["attn_win_t"].shape[0]
    V = params["out_w_t"].shape[1]
    Ep, Hp, Cp, Vp = (_round_up(E, 128), _round_up(H, 128),
                      _round_up(C, 128), _round_up(V, 128))

    if Vp > V:   # padded vocab logits pinned to -1e30 so they never affect log-softmax
        out_b = jnp.concatenate(
            [params["out_b"], jnp.full((1, Vp - V), -1e30, jnp.float32)], axis=1)
    else:
        out_b = params["out_b"]

    return dict(
        embed=_pad_to(params["embed"], (params["embed"].shape[0], Ep)),
        wih=_pad_to(_pad_gru_gates(params["gru_wih_t"], H, Hp), (Ep, 3 * Hp)),
        whh=_pad_to(_pad_gru_gates(params["gru_whh_t"], H, Hp), (Hp, 3 * Hp)),
        bih=_pad_gru_gates(params["gru_bih"], H, Hp),
        bhh=_pad_gru_gates(params["gru_bhh"], H, Hp),
        win=_pad_to(params["attn_win_t"], (Cp, Hp)),
        woutc=_pad_to(params["attn_woutc_t"], (Cp, Hp)),
        wouto=_pad_to(params["attn_wouto_t"], (Hp, Hp)),
        bout=_pad_to(params["attn_bout"], (1, Hp)),
        wv=_pad_to(params["out_w_t"], (Hp, Vp)),
        out_b=out_b,
    )


# ---------------------------------- wrapper ------------------------------------
@partial(jax.jit, static_argnames=("vocab_size", "dec_hidden"))
def decoder_forward(kparams, ctx, ctx_lengths, y, y_lengths, hid, *,
                    vocab_size, dec_hidden):
    # ctx_lengths unused: the mask built from it is never applied (see semantics note).
    # Dropout -> identity (inference).
    del ctx_lengths
    B, Ty = y.shape
    Tc = ctx.shape[1]
    Ep = kparams["embed"].shape[1]
    Hp = kparams["whh"].shape[0]
    Cp = kparams["win"].shape[0]
    Vp = kparams["wv"].shape[1]

    BB = 8                                   # batch rows per grid step (sublane multiple)
    Bp = _round_up(B, BB)
    Tcp = _round_up(Tc, 128)

    # pad activations: batch -> 8, features -> 128; feed the GRU time-major so the
    # recurrence walks the leading (untiled) axis.
    y_p = _pad_to(y, (Bp, Ty))
    ylen_p = _pad_to(y_lengths, (Bp,))
    # TODO(synk): the embedding gather stays in XLA (data-dependent gather; no tidy
    # rectangular BlockSpec equivalent) — the table is already lane-padded to Ep.
    x_tm = jnp.take(kparams["embed"], jnp.transpose(y_p), axis=0)            # (Ty, Bp, Ep)
    m_tm = (jnp.arange(Ty, dtype=jnp.int32)[:, None]
            < ylen_p[None, :]).astype(jnp.float32)[:, :, None]               # (Ty, Bp, 1)
    h0 = _pad_to(hid[0], (Bp, Hp))                                           # (Bp, Hp)
    ctx_p = _pad_to(ctx, (Bp, Tcp, Cp))                                      # (Bp, Tcp, Cp)

    def _full_spec(arr):
        zeros = (0,) * arr.ndim
        return pl.BlockSpec(arr.shape, lambda b, zeros=zeros: zeros)

    in_specs = [
        pl.BlockSpec((Ty, BB, Ep), lambda b: (0, b, 0)),      # x (time-major)
        pl.BlockSpec((Ty, BB, 1), lambda b: (0, b, 0)),       # length mask
        pl.BlockSpec((BB, Hp), lambda b: (b, 0)),             # h0
        pl.BlockSpec((BB, Tcp, Cp), lambda b: (b, 0, 0)),     # encoder context
        _full_spec(kparams["wih"]), _full_spec(kparams["bih"]),
        _full_spec(kparams["whh"]), _full_spec(kparams["bhh"]),
        _full_spec(kparams["win"]), _full_spec(kparams["woutc"]),
        _full_spec(kparams["wouto"]), _full_spec(kparams["bout"]),
        _full_spec(kparams["wv"]), _full_spec(kparams["out_b"]),
    ]
    out_specs = [
        pl.BlockSpec((BB, Ty, Vp), lambda b: (b, 0, 0)),      # log-probs (lane-dense)
        pl.BlockSpec((BB, Hp), lambda b: (b, 0)),             # final hidden
        pl.BlockSpec((BB, Ty, Tcp), lambda b: (b, 0, 0)),     # attention (lane-dense)
    ]
    out_shape = (
        jax.ShapeDtypeStruct((Bp, Ty, Vp), jnp.float32),
        jax.ShapeDtypeStruct((Bp, Hp), jnp.float32),
        jax.ShapeDtypeStruct((Bp, Ty, Tcp), jnp.float32),
    )

    logp_p, hT_p, attn_p = pl.pallas_call(
        partial(decoder_kernel, valid_tc=Tc),
        grid=(Bp // BB,),
        in_specs=in_specs,
        out_specs=out_specs,
        out_shape=out_shape,
        compiler_params=pltpu.CompilerParams(
            dimension_semantics=("parallel",),      # batch blocks shard across TCs
            vmem_limit_bytes=32 * 1024 * 1024),     # explicit, well above actual footprint
    )(x_tm, m_tm, h0, ctx_p,
      kparams["wih"], kparams["bih"], kparams["whh"], kparams["bhh"],
      kparams["win"], kparams["woutc"], kparams["wouto"], kparams["bout"],
      kparams["wv"], kparams["out_b"])

    logp = logp_p[:B, :, :vocab_size]
    hT = hT_p[:B, :dec_hidden]
    attn = attn_p[:B, :, :Tc]
    return logp, hT[None], attn


# ----------------------- deterministic parameter init -------------------------
def init_params(key, vocab_size, embed_size, enc_hidden, dec_hidden):
    ks = jax.random.split(key, 11)

    def u(k, shape, scale=0.1):
        return jax.random.uniform(k, shape, jnp.float32, -1.0, 1.0) * scale

    H = dec_hidden
    return dict(
        embed=u(ks[0], (vocab_size, embed_size)),
        # GRU (torch weight_ih_l0 is (3H,E); stored transposed, gate order r|z|n)
        gru_wih_t=u(ks[1], (embed_size, 3 * H)),
        gru_whh_t=u(ks[2], (H, 3 * H)),
        gru_bih=u(ks[3], (1, 3 * H)),
        gru_bhh=u(ks[4], (1, 3 * H)),
        # Attention.linear_in: Linear(2*enc_hidden -> dec_hidden, bias=False), transposed
        attn_win_t=u(ks[5], (2 * enc_hidden, dec_hidden)),
        # Attention.linear_out: Linear(2*enc_hidden + dec_hidden -> dec_hidden), split+transposed
        attn_woutc_t=u(ks[6], (2 * enc_hidden, dec_hidden)),
        attn_wouto_t=u(ks[7], (dec_hidden, dec_hidden)),
        attn_bout=u(ks[8], (1, dec_hidden)),
        # Decoder.out: Linear(dec_hidden -> vocab), transposed
        out_w_t=u(ks[9], (dec_hidden, vocab_size)),
        out_b=u(ks[10], (1, vocab_size)),
    )


# -------------------------- pure-JAX reference --------------------------------
def reference_forward(params, ctx, ctx_lengths, y, y_lengths, hid):
    del ctx_lengths
    B, Ty = y.shape
    H = hid.shape[-1]
    emb = jnp.take(params["embed"], y, axis=0)
    len_mask = (jnp.arange(Ty)[None, :] < y_lengths[:, None]).astype(jnp.float32)

    def step(h, xm):
        xt, mt = xm
        gi = xt @ params["gru_wih_t"] + params["gru_bih"]
        gh = h @ params["gru_whh_t"] + params["gru_bhh"]
        r = jax.nn.sigmoid(gi[:, :H] + gh[:, :H])
        z = jax.nn.sigmoid(gi[:, H:2 * H] + gh[:, H:2 * H])
        n = jnp.tanh(gi[:, 2 * H:] + r * gh[:, 2 * H:])
        h_new = (1 - z) * n + z * h
        return mt * h_new + (1 - mt) * h, mt * h_new

    hT, outs = lax.scan(step, hid[0],
                        (jnp.transpose(emb, (1, 0, 2)),
                         jnp.transpose(len_mask, (1, 0))[:, :, None]))
    out_seq = jnp.transpose(outs, (1, 0, 2))

    ctx_in = jnp.einsum("btc,cd->btd", ctx, params["attn_win_t"])
    scores = jnp.einsum("bqd,bkd->bqk", out_seq, ctx_in)
    attn = jax.nn.softmax(scores, axis=-1)
    c = jnp.einsum("bqk,bkc->bqc", attn, ctx)
    h = jnp.tanh(jnp.einsum("bqc,cd->bqd", c, params["attn_woutc_t"])
                 + jnp.einsum("bqd,de->bqe", out_seq, params["attn_wouto_t"])
                 + params["attn_bout"][None])
    logits = jnp.einsum("bqd,dv->bqv", h, params["out_w_t"]) + params["out_b"][None]
    return jax.nn.log_softmax(logits, axis=-1), hT[None], attn


if __name__ == "__main__":
    vocab_size, embed_size = 64, 32
    enc_hidden, dec_hidden = 16, 32
    B, Ty, Tc = 4, 8, 12

    key = jax.random.PRNGKey(0)
    kparam_key, kc, ky, kh = jax.random.split(key, 4)
    params = init_params(kparam_key, vocab_size, embed_size, enc_hidden, dec_hidden)
    kparams = pad_decoder_params(params)          # one-time weight padding / gate alignment

    ctx = jax.random.normal(kc, (B, Tc, 2 * enc_hidden), jnp.float32)
    ctx_lengths = jnp.array([12, 7, 12, 4], jnp.int32)
    y = jax.random.randint(ky, (B, Ty), 0, vocab_size, dtype=jnp.int32)
    y_lengths = jnp.array([8, 5, 3, 8], jnp.int32)    # max == Ty (as pad_packed requires)
    hid = jax.random.normal(kh, (1, B, dec_hidden), jnp.float32)

    logp, hid_out, attn = decoder_forward(kparams, ctx, ctx_lengths, y, y_lengths, hid,
                                          vocab_size=vocab_size, dec_hidden=dec_hidden)
    jax.block_until_ready((logp, hid_out, attn))

    ref_logp, ref_hid, ref_attn = reference_forward(params, ctx, ctx_lengths, y, y_lengths, hid)
    np.testing.assert_allclose(np.asarray(logp), np.asarray(ref_logp), rtol=1e-4, atol=1e-4)
    np.testing.assert_allclose(np.asarray(hid_out), np.asarray(ref_hid), rtol=1e-4, atol=1e-4)
    np.testing.assert_allclose(np.asarray(attn), np.asarray(ref_attn), rtol=1e-4, atol=1e-4)

    print("KERNEL_OK")
</pallas_src>

<mosaic_0001>
module attributes {stable_mosaic.version = 11 : i64} {
  func.func @decoder_kernel(%arg0: i32, %arg1: memref<8x8x128xf32, #tpu.memory_space<vmem>>, %arg2: memref<8x8x1xf32, #tpu.memory_space<vmem>>, %arg3: memref<8x128xf32, #tpu.memory_space<vmem>>, %arg4: memref<8x128x128xf32, #tpu.memory_space<vmem>>, %arg5: memref<128x384xf32, #tpu.memory_space<vmem>>, %arg6: memref<1x384xf32, #tpu.memory_space<vmem>>, %arg7: memref<128x384xf32, #tpu.memory_space<vmem>>, %arg8: memref<1x384xf32, #tpu.memory_space<vmem>>, %arg9: memref<128x128xf32, #tpu.memory_space<vmem>>, %arg10: memref<128x128xf32, #tpu.memory_space<vmem>>, %arg11: memref<128x128xf32, #tpu.memory_space<vmem>>, %arg12: memref<1x128xf32, #tpu.memory_space<vmem>>, %arg13: memref<128x128xf32, #tpu.memory_space<vmem>>, %arg14: memref<1x128xf32, #tpu.memory_space<vmem>>, %arg15: memref<8x8x128xf32, #tpu.memory_space<vmem>>, %arg16: memref<8x128xf32, #tpu.memory_space<vmem>>, %arg17: memref<8x8x128xf32, #tpu.memory_space<vmem>>) attributes {dimension_semantics = [#tpu.dimension_semantics<parallel>], iteration_bounds = array<i64: 1>, scalar_prefetch = 0 : i64, scratch_operands = 0 : i64, tpu.core_type = #tpu.core_type<tc>, window_params = [{transform_indices = @transform_0, window_bounds = array<i64: 8, 8, 128>}, {transform_indices = @transform_1, window_bounds = array<i64: 8, 8, 1>}, {transform_indices = @transform_2, window_bounds = array<i64: 8, 128>}, {transform_indices = @transform_3, window_bounds = array<i64: 8, 128, 128>}, {pipeline_mode = #tpu.pipeline_mode<synchronous>, transform_indices = @transform_4, window_bounds = array<i64: 128, 384>}, {pipeline_mode = #tpu.pipeline_mode<synchronous>, transform_indices = @transform_5, window_bounds = array<i64: 1, 384>}, {pipeline_mode = #tpu.pipeline_mode<synchronous>, transform_indices = @transform_6, window_bounds = array<i64: 128, 384>}, {pipeline_mode = #tpu.pipeline_mode<synchronous>, transform_indices = @transform_7, window_bounds = array<i64: 1, 384>}, {pipeline_mode = #tpu.pipeline_mode<synchronous>, transform_indices = @transform_8, window_bounds = array<i64: 128, 128>}, {pipeline_mode = #tpu.pipeline_mode<synchronous>, transform_indices = @transform_9, window_bounds = array<i64: 128, 128>}, {pipeline_mode = #tpu.pipeline_mode<synchronous>, transform_indices = @transform_10, window_bounds = array<i64: 128, 128>}, {pipeline_mode = #tpu.pipeline_mode<synchronous>, transform_indices = @transform_11, window_bounds = array<i64: 1, 128>}, {pipeline_mode = #tpu.pipeline_mode<synchronous>, transform_indices = @transform_12, window_bounds = array<i64: 128, 128>}, {pipeline_mode = #tpu.pipeline_mode<synchronous>, transform_indices = @transform_13, window_bounds = array<i64: 1, 128>}, {transform_indices = @transform_14, window_bounds = array<i64: 8, 8, 128>}, {transform_indices = @transform_15, window_bounds = array<i64: 8, 128>}, {transform_indices = @transform_16, window_bounds = array<i64: 8, 8, 128>}]} {
    %c0 = arith.constant 0 : index
    %c0_0 = arith.constant 0 : index
    %c0_1 = arith.constant 0 : index
    %0 = vector.load %arg1[%c0, %c0_0, %c0_1] : memref<8x8x128xf32, #tpu.memory_space<vmem>>, vector<8x8x128xf32>
    %1 = vector.shape_cast %0 : vector<8x8x128xf32> to vector<64x128xf32>
    %c0_2 = arith.constant 0 : index
    %c0_3 = arith.constant 0 : index
    %2 = vector.load %arg5[%c0_2, %c0_3] : memref<128x384xf32, #tpu.memory_space<vmem>>, vector<128x384xf32>
    %cst = arith.constant dense<0.000000e+00> : vector<64x384xf32>
    %3 = tpu.matmul %1, %2, %cst {dimension_numbers = #tpu.dot_dimension_numbers<[1], [0], [0], [1], [0, 0, 1, 1], [], []>} : vector<64x128xf32>, vector<128x384xf32>, vector<64x384xf32> -> vector<64x384xf32>
    %c0_4 = arith.constant 0 : index
    %c0_5 = arith.constant 0 : index
    %4 = vector.load %arg6[%c0_4, %c0_5] : memref<1x384xf32, #tpu.memory_space<vmem>>, vector<1x384xf32>
    %5 = vector.broadcast %4 : vector<1x384xf32> to vector<64x384xf32>
    %6 = arith.addf %3, %5 : vector<64x384xf32>
    %7 = vector.shape_cast %6 : vector<64x384xf32> to vector<8x8x384xf32>
    %c0_6 = arith.constant 0 : index
    %c0_7 = arith.constant 0 : index
    %c0_8 = arith.constant 0 : index
    %8 = vector.load %arg2[%c0_6, %c0_7, %c0_8] : memref<8x8x1xf32, #tpu.memory_space<vmem>>, vector<8x8x1xf32>
    %c0_9 = arith.constant 0 : index
    %c0_10 = arith.constant 0 : index
    %9 = vector.load %arg7[%c0_9, %c0_10] : memref<128x384xf32, #tpu.memory_space<vmem>>, vector<128x384xf32>
    %c0_11 = arith.constant 0 : index
    %c0_12 = arith.constant 0 : index
    %10 = vector.load %arg8[%c0_11, %c0_12] : memref<1x384xf32, #tpu.memory_space<vmem>>, vector<1x384xf32>
    %c0_13 = arith.constant 0 : index
    %c0_14 = arith.constant 0 : index
    %11 = vector.load %arg3[%c0_13, %c0_14] : memref<8x128xf32, #tpu.memory_space<vmem>>, vector<8x128xf32>
    %12 = vector.extract_strided_slice %7 {offsets = [0, 0, 0], sizes = [1, 8, 384], strides = [1, 1, 1]} : vector<8x8x384xf32> to vector<1x8x384xf32>
    %13 = vector.shape_cast %12 : vector<1x8x384xf32> to vector<8x384xf32>
    %cst_15 = arith.constant dense<0.000000e+00> : vector<8x384xf32>
    %14 = tpu.matmul %11, %9, %cst_15 {dimension_numbers = #tpu.dot_dimension_numbers<[1], [0], [0], [1], [0, 0, 1, 1], [], []>} : vector<8x128xf32>, vector<128x384xf32>, vector<8x384xf32> -> vector<8x384xf32>
    %15 = vector.broadcast %10 : vector<1x384xf32> to vector<8x384xf32>
    %16 = arith.addf %14, %15 : vector<8x384xf32>
    %17 = vector.extract_strided_slice %13 {offsets = [0, 0], sizes = [8, 128], strides = [1, 1]} : vector<8x384xf32> to vector<8x128xf32>
    %18 = vector.extract_strided_slice %16 {offsets = [0, 0], sizes = [8, 128], strides = [1, 1]} : vector<8x384xf32> to vector<8x128xf32>
    %19 = arith.addf %17, %18 : vector<8x128xf32>
    %20 = arith.negf %19 : vector<8x128xf32>
    %21 = math.exp %20 : vector<8x128xf32>
    %cst_16 = arith.constant 1.000000e+00 : f32
    %22 = vector.broadcast %cst_16 : f32 to vector<8x128xf32>
    %23 = arith.addf %22, %21 : vector<8x128xf32>
    %24 = arith.divf %22, %23 : vector<8x128xf32>
    %25 = vector.extract_strided_slice %13 {offsets = [0, 128], sizes = [8, 128], strides = [1, 1]} : vector<8x384xf32> to vector<8x128xf32>
    %26 = vector.extract_strided_slice %16 {offsets = [0, 128], sizes = [8, 128], strides = [1, 1]} : vector<8x384xf32> to vector<8x128xf32>
    %27 = arith.addf %25, %26 : vector<8x128xf32>
    %28 = arith.negf %27 : vector<8x128xf32>
    %29 = math.exp %28 : vector<8x128xf32>
    %cst_17 = arith.constant 1.000000e+00 : f32
    %30 = vector.broadcast %cst_17 : f32 to vector<8x128xf32>
    %31 = arith.addf %30, %29 : vector<8x128xf32>
    %32 = arith.divf %30, %31 : vector<8x128xf32>
    %33 = vector.extract_strided_slice %13 {offsets = [0, 256], sizes = [8, 128], strides = [1, 1]} : vector<8x384xf32> to vector<8x128xf32>
    %34 = vector.extract_strided_slice %16 {offsets = [0, 256], sizes = [8, 128], strides = [1, 1]} : vector<8x384xf32> to vector<8x128xf32>
    %35 = arith.mulf %24, %34 : vector<8x128xf32>
    %36 = arith.addf %33, %35 : vector<8x128xf32>
    %37 = math.tanh %36 : vector<8x128xf32>
    %cst_18 = arith.constant 1.000000e+00 : f32
    %38 = vector.broadcast %cst_18 : f32 to vector<8x128xf32>
    %39 = arith.subf %38, %32 : vector<8x128xf32>
    %40 = arith.mulf %39, %37 : vector<8x128xf32>
    %41 = arith.mulf %32, %11 : vector<8x128xf32>
    %42 = arith.addf %40, %41 : vector<8x128xf32>
    %43 = vector.extract_strided_slice %8 {offsets = [0, 0, 0], sizes = [1, 8, 1], strides = [1, 1, 1]} : vector<8x8x1xf32> to vector<1x8x1xf32>
    %44 = vector.shape_cast %43 : vector<1x8x1xf32> to vector<8x1xf32>
    %45 = vector.broadcast %44 : vector<8x1xf32> to vector<8x128xf32>
    %46 = arith.mulf %45, %42 : vector<8x128xf32>
    %cst_19 = arith.constant 1.000000e+00 : f32
    %47 = vector.broadcast %cst_19 : f32 to vector<8x1xf32>
    %48 = arith.subf %47, %44 : vector<8x1xf32>
    %49 = vector.broadcast %48 : vector<8x1xf32> to vector<8x128xf32>
    %50 = arith.mulf %49, %11 : vector<8x128xf32>
    %51 = arith.addf %46, %50 : vector<8x128xf32>
    %52 = vector.extract_strided_slice %7 {offsets = [1, 0, 0], sizes = [1, 8, 384], strides = [1, 1, 1]} : vector<8x8x384xf32> to vector<1x8x384xf32>
    %53 = vector.shape_cast %52 : vector<1x8x384xf32> to vector<8x384xf32>
    %cst_20 = arith.constant dense<0.000000e+00> : vector<8x384xf32>
    %54 = tpu.matmul %51, %9, %cst_20 {dimension_numbers = #tpu.dot_dimension_numbers<[1], [0], [0], [1], [0, 0, 1, 1], [], []>} : vector<8x128xf32>, vector<128x384xf32>, vector<8x384xf32> -> vector<8x384xf32>
    %55 = vector.broadcast %10 : vector<1x384xf32> to vector<8x384xf32>
    %56 = arith.addf %54, %55 : vector<8x384xf32>
    %57 = vector.extract_strided_slice %53 {offsets = [0, 0], sizes = [8, 128], strides = [1, 1]} : vector<8x384xf32> to vector<8x128xf32>
    %58 = vector.extract_strided_slice %56 {offsets = [0, 0], sizes = [8, 128], strides = [1, 1]} : vector<8x384xf32> to vector<8x128xf32>
    %59 = arith.addf %57, %58 : vector<8x128xf32>
    %60 = arith.negf %59 : vector<8x128xf32>
    %61 = math.exp %60 : vector<8x128xf32>
    %cst_21 = arith.constant 1.000000e+00 : f32
    %62 = vector.broadcast %cst_21 : f32 to vector<8x128xf32>
    %63 = arith.addf %62, %61 : vector<8x128xf32>
    %64 = arith.divf %62, %63 : vector<8x128xf32>
    %65 = vector.extract_strided_slice %53 {offsets = [0, 128], sizes = [8, 128], strides = [1, 1]} : vector<8x384xf32> to vector<8x128xf32>
    %66 = vector.extract_strided_slice %56 {offsets = [0, 128], sizes = [8, 128], strides = [1, 1]} : vector<8x384xf32> to vector<8x128xf32>
    %67 = arith.addf %65, %66 : vector<8x128xf32>
    %68 = arith.negf %67 : vector<8x128xf32>
    %69 = math.exp %68 : vector<8x128xf32>
    %cst_22 = arith.constant 1.000000e+00 : f32
    %70 = vector.broadcast %cst_22 : f32 to vector<8x128xf32>
    %71 = arith.addf %70, %69 : vector<8x128xf32>
    %72 = arith.divf %70, %71 : vector<8x128xf32>
    %73 = vector.extract_strided_slice %53 {offsets = [0, 256], sizes = [8, 128], strides = [1, 1]} : vector<8x384xf32> to vector<8x128xf32>
    %74 = vector.extract_strided_slice %56 {offsets = [0, 256], sizes = [8, 128], strides = [1, 1]} : vector<8x384xf32> to vector<8x128xf32>
    %75 = arith.mulf %64, %74 : vector<8x128xf32>
    %76 = arith.addf %73, %75 : vector<8x128xf32>
    %77 = math.tanh %76 : vector<8x128xf32>
    %cst_23 = arith.constant 1.000000e+00 : f32
    %78 = vector.broadcast %cst_23 : f32 to vector<8x128xf32>
    %79 = arith.subf %78, %72 : vector<8x128xf32>
    %80 = arith.mulf %79, %77 : vector<8x128xf32>
    %81 = arith.mulf %72, %51 : vector<8x128xf32>
    %82 = arith.addf %80, %81 : vector<8x128xf32>
    %83 = vector.extract_strided_slice %8 {offsets = [1, 0, 0], sizes = [1, 8, 1], strides = [1, 1, 1]} : vector<8x8x1xf32> to vector<1x8x1xf32>
    %84 = vector.shape_cast %83 : vector<1x8x1xf32> to vector<8x1xf32>
    %85 = vector.broadcast %84 : vector<8x1xf32> to vector<8x128xf32>
    %86 = arith.mulf %85, %82 : vector<8x128xf32>
    %cst_24 = arith.constant 1.000000e+00 : f32
    %87 = vector.broadcast %cst_24 : f32 to vector<8x1xf32>
    %88 = arith.subf %87, %84 : vector<8x1xf32>
    %89 = vector.broadcast %88 : vector<8x1xf32> to vector<8x128xf32>
    %90 = arith.mulf %89, %51 : vector<8x128xf32>
    %91 = arith.addf %86, %90 : vector<8x128xf32>
    %92 = vector.extract_strided_slice %7 {offsets = [2, 0, 0], sizes = [1, 8, 384], strides = [1, 1, 1]} : vector<8x8x384xf32> to vector<1x8x384xf32>
    %93 = vector.shape_cast %92 : vector<1x8x384xf32> to vector<8x384xf32>
    %cst_25 = arith.constant dense<0.000000e+00> : vector<8x384xf32>
    %94 = tpu.matmul %91, %9, %cst_25 {dimension_numbers = #tpu.dot_dimension_numbers<[1], [0], [0], [1], [0, 0, 1, 1], [], []>} : vector<8x128xf32>, vector<128x384xf32>, vector<8x384xf32> -> vector<8x384xf32>
    %95 = vector.broadcast %10 : vector<1x384xf32> to vector<8x384xf32>
    %96 = arith.addf %94, %95 : vector<8x384xf32>
    %97 = vector.extract_strided_slice %93 {offsets = [0, 0], sizes = [8, 128], strides = [1, 1]} : vector<8x384xf32> to vector<8x128xf32>
    %98 = vector.extract_strided_slice %96 {offsets = [0, 0], sizes = [8, 128], strides = [1, 1]} : vector<8x384xf32> to vector<8x128xf32>
    %99 = arith.addf %97, %98 : vector<8x128xf32>
    %100 = arith.negf %99 : vector<8x128xf32>
    %101 = math.exp %100 : vector<8x128xf32>
    %cst_26 = arith.constant 1.000000e+00 : f32
    %102 = vector.broadcast %cst_26 : f32 to vector<8x128xf32>
    %103 = arith.addf %102, %101 : vector<8x128xf32>
    %104 = arith.divf %102, %103 : vector<8x128xf32>
    %105 = vector.extract_strided_slice %93 {offsets = [0, 128], sizes = [8, 128], strides = [1, 1]} : vector<8x384xf32> to vector<8x128xf32>
    %106 = vector.extract_strided_slice %96 {offsets = [0, 128], sizes = [8, 128], strides = [1, 1]} : vector<8x384xf32> to vector<8x128xf32>
    %107 = arith.addf %105, %106 : vector<8x128xf32>
    %108 = arith.negf %107 : vector<8x128xf32>
    %109 = math.exp %108 : vector<8x128xf32>
    %cst_27 = arith.constant 1.000000e+00 : f32
    %110 = vector.broadcast %cst_27 : f32 to vector<8x128xf32>
    %111 = arith.addf %110, %109 : vector<8x128xf32>
    %112 = arith.divf %110, %111 : vector<8x128xf32>
    %113 = vector.extract_strided_slice %93 {offsets = [0, 256], sizes = [8, 128], strides = [1, 1]} : vector<8x384xf32> to vector<8x128xf32>
    %114 = vector.extract_strided_slice %96 {offsets = [0, 256], sizes = [8, 128], strides = [1, 1]} : vector<8x384xf32> to vector<8x128xf32>
    %115 = arith.mulf %104, %114 : vector<8x128xf32>
    %116 = arith.addf %113, %115 : vector<8x128xf32>
    %117 = math.tanh %116 : vector<8x128xf32>
    %cst_28 = arith.constant 1.000000e+00 : f32
    %118 = vector.broadcast %cst_28 : f32 to vector<8x128xf32>
    %119 = arith.subf %118, %112 : vector<8x128xf32>
    %120 = arith.mulf %119, %117 : vector<8x128xf32>
    %121 = arith.mulf %112, %91 : vector<8x128xf32>
    %122 = arith.addf %120, %121 : vector<8x128xf32>
    %123 = vector.extract_strided_slice %8 {offsets = [2, 0, 0], sizes = [1, 8, 1], strides = [1, 1, 1]} : vector<8x8x1xf32> to vector<1x8x1xf32>
    %124 = vector.shape_cast %123 : vector<1x8x1xf32> to vector<8x1xf32>
    %125 = vector.broadcast %124 : vector<8x1xf32> to vector<8x128xf32>
    %126 = arith.mulf %125, %122 : vector<8x128xf32>
    %cst_29 = arith.constant 1.000000e+00 : f32
    %127 = vector.broadcast %cst_29 : f32 to vector<8x1xf32>
    %128 = arith.subf %127, %124 : vector<8x1xf32>
    %129 = vector.broadcast %128 : vector<8x1xf32> to vector<8x128xf32>
    %130 = arith.mulf %129, %91 : vector<8x128xf32>
    %131 = arith.addf %126, %130 : vector<8x128xf32>
    %132 = vector.extract_strided_slice %7 {offsets = [3, 0, 0], sizes = [1, 8, 384], strides = [1, 1, 1]} : vector<8x8x384xf32> to vector<1x8x384xf32>
    %133 = vector.shape_cast %132 : vector<1x8x384xf32> to vector<8x384xf32>
    %cst_30 = arith.constant dense<0.000000e+00> : vector<8x384xf32>
    %134 = tpu.matmul %131, %9, %cst_30 {dimension_numbers = #tpu.dot_dimension_numbers<[1], [0], [0], [1], [0, 0, 1, 1], [], []>} : vector<8x128xf32>, vector<128x384xf32>, vector<8x384xf32> -> vector<8x384xf32>
    %135 = vector.broadcast %10 : vector<1x384xf32> to vector<8x384xf32>
    %136 = arith.addf %134, %135 : vector<8x384xf32>
    %137 = vector.extract_strided_slice %133 {offsets = [0, 0], sizes = [8, 128], strides = [1, 1]} : vector<8x384xf32> to vector<8x128xf32>
    %138 = vector.extract_strided_slice %136 {offsets = [0, 0], sizes = [8, 128], strides = [1, 1]} : vector<8x384xf32> to vector<8x128xf32>
    %139 = arith.addf %137, %138 : vector<8x128xf32>
    %140 = arith.negf %139 : vector<8x128xf32>
    %141 = math.exp %140 : vector<8x128xf32>
    %cst_31 = arith.constant 1.000000e+00 : f32
    %142 = vector.broadcast %cst_31 : f32 to vector<8x128xf32>
    %143 = arith.addf %142, %141 : vector<8x128xf32>
    %144 = arith.divf %142, %143 : vector<8x128xf32>
    %145 = vector.extract_strided_slice %133 {offsets = [0, 128], sizes = [8, 128], strides = [1, 1]} : vector<8x384xf32> to vector<8x128xf32>
    %146 = vector.extract_strided_slice %136 {offsets = [0, 128], sizes = [8, 128], strides = [1, 1]} : vector<8x384xf32> to vector<8x128xf32>
    %147 = arith.addf %145, %146 : vector<8x128xf32>
    %148 = arith.negf %147 : vector<8x128xf32>
    %149 = math.exp %148 : vector<8x128xf32>
    %cst_32 = arith.constant 1.000000e+00 : f32
    %150 = vector.broadcast %cst_32 : f32 to vector<8x128xf32>
    %151 = arith.addf %150, %149 : vector<8x128xf32>
    %152 = arith.divf %150, %151 : vector<8x128xf32>
    %153 = vector.extract_strided_slice %133 {offsets = [0, 256], sizes = [8, 128], strides = [1, 1]} : vector<8x384xf32> to vector<8x128xf32>
    %154 = vector.extract_strided_slice %136 {offsets = [0, 256], sizes = [8, 128], strides = [1, 1]} : vector<8x384xf32> to vector<8x128xf32>
    %155 = arith.mulf %144, %154 : vector<8x128xf32>
    %156 = arith.addf %153, %155 : vector<8x128xf32>
    %157 = math.tanh %156 : vector<8x128xf32>
    %cst_33 = arith.constant 1.000000e+00 : f32
    %158 = vector.broadcast %cst_33 : f32 to vector<8x128xf32>
    %159 = arith.subf %158, %152 : vector<8x128xf32>
    %160 = arith.mulf %159, %157 : vector<8x128xf32>
    %161 = arith.mulf %152, %131 : vector<8x128xf32>
    %162 = arith.addf %160, %161 : vector<8x128xf32>
    %163 = vector.extract_strided_slice %8 {offsets = [3, 0, 0], sizes = [1, 8, 1], strides = [1, 1, 1]} : vector<8x8x1xf32> to vector<1x8x1xf32>
    %164 = vector.shape_cast %163 : vector<1x8x1xf32> to vector<8x1xf32>
    %165 = vector.broadcast %164 : vector<8x1xf32> to vector<8x128xf32>
    %166 = arith.mulf %165, %162 : vector<8x128xf32>
    %cst_34 = arith.constant 1.000000e+00 : f32
    %167 = vector.broadcast %cst_34 : f32 to vector<8x1xf32>
    %168 = arith.subf %167, %164 : vector<8x1xf32>
    %169 = vector.broadcast %168 : vector<8x1xf32> to vector<8x128xf32>
    %170 = arith.mulf %169, %131 : vector<8x128xf32>
    %171 = arith.addf %166, %170 : vector<8x128xf32>
    %172 = vector.extract_strided_slice %7 {offsets = [4, 0, 0], sizes = [1, 8, 384], strides = [1, 1, 1]} : vector<8x8x384xf32> to vector<1x8x384xf32>
    %173 = vector.shape_cast %172 : vector<1x8x384xf32> to vector<8x384xf32>
    %cst_35 = arith.constant dense<0.000000e+00> : vector<8x384xf32>
    %174 = tpu.matmul %171, %9, %cst_35 {dimension_numbers = #tpu.dot_dimension_numbers<[1], [0], [0], [1], [0, 0, 1, 1], [], []>} : vector<8x128xf32>, vector<128x384xf32>, vector<8x384xf32> -> vector<8x384xf32>
    %175 = vector.broadcast %10 : vector<1x384xf32> to vector<8x384xf32>
    %176 = arith.addf %174, %175 : vector<8x384xf32>
    %177 = vector.extract_strided_slice %173 {offsets = [0, 0], sizes = [8, 128], strides = [1, 1]} : vector<8x384xf32> to vector<8x128xf32>
    %178 = vector.extract_strided_slice %176 {offsets = [0, 0], sizes = [8, 128], strides = [1, 1]} : vector<8x384xf32> to vector<8x128xf32>
    %179 = arith.addf %177, %178 : vector<8x128xf32>
    %180 = arith.negf %179 : vector<8x128xf32>
    %181 = math.exp %180 : vector<8x128xf32>
    %cst_36 = arith.constant 1.000000e+00 : f32
    %182 = vector.broadcast %cst_36 : f32 to vector<8x128xf32>
    %183 = arith.addf %182, %181 : vector<8x128xf32>
    %184 = arith.divf %182, %183 : vector<8x128xf32>
    %185 = vector.extract_strided_slice %173 {offsets = [0, 128], sizes = [8, 128], strides = [1, 1]} : vector<8x384xf32> to vector<8x128xf32>
    %186 = vector.extract_strided_slice %176 {offsets = [0, 128], sizes = [8, 128], strides = [1, 1]} : vector<8x384xf32> to vector<8x128xf32>
    %187 = arith.addf %185, %186 : vector<8x128xf32>
    %188 = arith.negf %187 : vector<8x128xf32>
    %189 = math.exp %188 : vector<8x128xf32>
    %cst_37 = arith.constant 1.000000e+00 : f32
    %190 = vector.broadcast %cst_37 : f32 to vector<8x128xf32>
    %191 = arith.addf %190, %189 : vector<8x128xf32>
    %192 = arith.divf %190, %191 : vector<8x128xf32>
    %193 = vector.extract_strided_slice %173 {offsets = [0, 256], sizes = [8, 128], strides = [1, 1]} : vector<8x384xf32> to vector<8x128xf32>
    %194 = vector.extract_strided_slice %176 {offsets = [0, 256], sizes = [8, 128], strides = [1, 1]} : vector<8x384xf32> to vector<8x128xf32>
    %195 = arith.mulf %184, %194 : vector<8x128xf32>
    %196 = arith.addf %193, %195 : vector<8x128xf32>
    %197 = math.tanh %196 : vector<8x128xf32>
    %cst_38 = arith.constant 1.000000e+00 : f32
    %198 = vector.broadcast %cst_38 : f32 to vector<8x128xf32>
    %199 = arith.subf %198, %192 : vector<8x128xf32>
    %200 = arith.mulf %199, %197 : vector<8x128xf32>
    %201 = arith.mulf %192, %171 : vector<8x128xf32>
    %202 = arith.addf %200, %201 : vector<8x128xf32>
    %203 = vector.extract_strided_slice %8 {offsets = [4, 0, 0], sizes = [1, 8, 1], strides = [1, 1, 1]} : vector<8x8x1xf32> to vector<1x8x1xf32>
    %204 = vector.shape_cast %203 : vector<1x8x1xf32> to vector<8x1xf32>
    %205 = vector.broadcast %204 : vector<8x1xf32> to vector<8x128xf32>
    %206 = arith.mulf %205, %202 : vector<8x128xf32>
    %cst_39 = arith.constant 1.000000e+00 : f32
    %207 = vector.broadcast %cst_39 : f32 to vector<8x1xf32>
    %208 = arith.subf %207, %204 : vector<8x1xf32>
    %209 = vector.broadcast %208 : vector<8x1xf32> to vector<8x128xf32>
    %210 = arith.mulf %209, %171 : vector<8x128xf32>
    %211 = arith.addf %206, %210 : vector<8x128xf32>
    %212 = vector.extract_strided_slice %7 {offsets = [5, 0, 0], sizes = [1, 8, 384], strides = [1, 1, 1]} : vector<8x8x384xf32> to vector<1x8x384xf32>
    %213 = vector.shape_cast %212 : vector<1x8x384xf32> to vector<8x384xf32>
    %cst_40 = arith.constant dense<0.000000e+00> : vector<8x384xf32>
    %214 = tpu.matmul %211, %9, %cst_40 {dimension_numbers = #tpu.dot_dimension_numbers<[1], [0], [0], [1], [0, 0, 1, 1], [], []>} : vector<8x128xf32>, vector<128x384xf32>, vector<8x384xf32> -> vector<8x384xf32>
    %215 = vector.broadcast %10 : vector<1x384xf32> to vector<8x384xf32>
    %216 = arith.addf %214, %215 : vector<8x384xf32>
    %217 = vector.extract_strided_slice %213 {offsets = [0, 0], sizes = [8, 128], strides = [1, 1]} : vector<8x384xf32> to vector<8x128xf32>
    %218 = vector.extract_strided_slice %216 {offsets = [0, 0], sizes = [8, 128], strides = [1, 1]} : vector<8x384xf32> to vector<8x128xf32>
    %219 = arith.addf %217, %218 : vector<8x128xf32>
    %220 = arith.negf %219 : vector<8x128xf32>
    %221 = math.exp %220 : vector<8x128xf32>
    %cst_41 = arith.constant 1.000000e+00 : f32
    %222 = vector.broadcast %cst_41 : f32 to vector<8x128xf32>
    %223 = arith.addf %222, %221 : vector<8x128xf32>
    %224 = arith.divf %222, %223 : vector<8x128xf32>
    %225 = vector.extract_strided_slice %213 {offsets = [0, 128], sizes = [8, 128], strides = [1, 1]} : vector<8x384xf32> to vector<8x128xf32>
    %226 = vector.extract_strided_slice %216 {offsets = [0, 128], sizes = [8, 128], strides = [1, 1]} : vector<8x384xf32> to vector<8x128xf32>
    %227 = arith.addf %225, %226 : vector<8x128xf32>
    %228 = arith.negf %227 : vector<8x128xf32>
    %229 = math.exp %228 : vector<8x128xf32>
    %cst_42 = arith.constant 1.000000e+00 : f32
    %230 = vector.broadcast %cst_42 : f32 to vector<8x128xf32>
    %231 = arith.addf %230, %229 : vector<8x128xf32>
    %232 = arith.divf %230, %231 : vector<8x128xf32>
    %233 = vector.extract_strided_slice %213 {offsets = [0, 256], sizes = [8, 128], strides = [1, 1]} : vector<8x384xf32> to vector<8x128xf32>
    %234 = vector.extract_strided_slice %216 {offsets = [0, 256], sizes = [8, 128], strides = [1, 1]} : vector<8x384xf32> to vector<8x128xf32>
    %235 = arith.mulf %224, %234 : vector<8x128xf32>
    %236 = arith.addf %233, %235 : vector<8x128xf32>
    %237 = math.tanh %236 : vector<8x128xf32>
    %cst_43 = arith.constant 1.000000e+00 : f32
    %238 = vector.broadcast %cst_43 : f32 to vector<8x128xf32>
    %239 = arith.subf %238, %232 : vector<8x128xf32>
    %240 = arith.mulf %239, %237 : vector<8x128xf32>
    %241 = arith.mulf %232, %211 : vector<8x128xf32>
    %242 = arith.addf %240, %241 : vector<8x128xf32>
    %243 = vector.extract_strided_slice %8 {offsets = [5, 0, 0], sizes = [1, 8, 1], strides = [1, 1, 1]} : vector<8x8x1xf32> to vector<1x8x1xf32>
    %244 = vector.shape_cast %243 : vector<1x8x1xf32> to vector<8x1xf32>
    %245 = vector.broadcast %244 : vector<8x1xf32> to vector<8x128xf32>
    %246 = arith.mulf %245, %242 : vector<8x128xf32>
    %cst_44 = arith.constant 1.000000e+00 : f32
    %247 = vector.broadcast %cst_44 : f32 to vector<8x1xf32>
    %248 = arith.subf %247, %244 : vector<8x1xf32>
    %249 = vector.broadcast %248 : vector<8x1xf32> to vector<8x128xf32>
    %250 = arith.mulf %249, %211 : vector<8x128xf32>
    %251 = arith.addf %246, %250 : vector<8x128xf32>
    %252 = vector.extract_strided_slice %7 {offsets = [6, 0, 0], sizes = [1, 8, 384], strides = [1, 1, 1]} : vector<8x8x384xf32> to vector<1x8x384xf32>
    %253 = vector.shape_cast %252 : vector<1x8x384xf32> to vector<8x384xf32>
    %cst_45 = arith.constant dense<0.000000e+00> : vector<8x384xf32>
    %254 = tpu.matmul %251, %9, %cst_45 {dimension_numbers = #tpu.dot_dimension_numbers<[1], [0], [0], [1], [0, 0, 1, 1], [], []>} : vector<8x128xf32>, vector<128x384xf32>, vector<8x384xf32> -> vector<8x384xf32>
    %255 = vector.broadcast %10 : vector<1x384xf32> to vector<8x384xf32>
    %256 = arith.addf %254, %255 : vector<8x384xf32>
    %257 = vector.extract_strided_slice %253 {offsets = [0, 0], sizes = [8, 128], strides = [1, 1]} : vector<8x384xf32> to vector<8x128xf32>
    %258 = vector.extract_strided_slice %256 {offsets = [0, 0], sizes = [8, 128], strides = [1, 1]} : vector<8x384xf32> to vector<8x128xf32>
    %259 = arith.addf %257, %258 : vector<8x128xf32>
    %260 = arith.negf %259 : vector<8x128xf32>
    %261 = math.exp %260 : vector<8x128xf32>
    %cst_46 = arith.constant 1.000000e+00 : f32
    %262 = vector.broadcast %cst_46 : f32 to vector<8x128xf32>
    %263 = arith.addf %262, %261 : vector<8x128xf32>
    %264 = arith.divf %262, %263 : vector<8x128xf32>
    %265 = vector.extract_strided_slice %253 {offsets = [0, 128], sizes = [8, 128], strides = [1, 1]} : vector<8x384xf32> to vector<8x128xf32>
    %266 = vector.extract_strided_slice %256 {offsets = [0, 128], sizes = [8, 128], strides = [1, 1]} : vector<8x384xf32> to vector<8x128xf32>
    %267 = arith.addf %265, %266 : vector<8x128xf32>
    %268 = arith.negf %267 : vector<8x128xf32>
    %269 = math.exp %268 : vector<8x128xf32>
    %cst_47 = arith.constant 1.000000e+00 : f32
    %270 = vector.broadcast %cst_47 : f32 to vector<8x128xf32>
    %271 = arith.addf %270, %269 : vector<8x128xf32>
    %272 = arith.divf %270, %271 : vector<8x128xf32>
    %273 = vector.extract_strided_slice %253 {offsets = [0, 256], sizes = [8, 128], strides = [1, 1]} : vector<8x384xf32> to vector<8x128xf32>
    %274 = vector.extract_strided_slice %256 {offsets = [0, 256], sizes = [8, 128], strides = [1, 1]} : vector<8x384xf32> to vector<8x128xf32>
    %275 = arith.mulf %264, %274 : vector<8x128xf32>
    %276 = arith.addf %273, %275 : vector<8x128xf32>
    %277 = math.tanh %276 : vector<8x128xf32>
    %cst_48 = arith.constant 1.000000e+00 : f32
    %278 = vector.broadcast %cst_48 : f32 to vector<8x128xf32>
    %279 = arith.subf %278, %272 : vector<8x128xf32>
    %280 = arith.mulf %279, %277 : vector<8x128xf32>
    %281 = arith.mulf %272, %251 : vector<8x128xf32>
    %282 = arith.addf %280, %281 : vector<8x128xf32>
    %283 = vector.extract_strided_slice %8 {offsets = [6, 0, 0], sizes = [1, 8, 1], strides = [1, 1, 1]} : vector<8x8x1xf32> to vector<1x8x1xf32>
    %284 = vector.shape_cast %283 : vector<1x8x1xf32> to vector<8x1xf32>
    %285 = vector.broadcast %284 : vector<8x1xf32> to vector<8x128xf32>
    %286 = arith.mulf %285, %282 : vector<8x128xf32>
    %cst_49 = arith.constant 1.000000e+00 : f32
    %287 = vector.broadcast %cst_49 : f32 to vector<8x1xf32>
    %288 = arith.subf %287, %284 : vector<8x1xf32>
    %289 = vector.broadcast %288 : vector<8x1xf32> to vector<8x128xf32>
    %290 = arith.mulf %289, %251 : vector<8x128xf32>
    %291 = arith.addf %286, %290 : vector<8x128xf32>
    %292 = vector.extract_strided_slice %7 {offsets = [7, 0, 0], sizes = [1, 8, 384], strides = [1, 1, 1]} : vector<8x8x384xf32> to vector<1x8x384xf32>
    %293 = vector.shape_cast %292 : vector<1x8x384xf32> to vector<8x384xf32>
    %cst_50 = arith.constant dense<0.000000e+00> : vector<8x384xf32>
    %294 = tpu.matmul %291, %9, %cst_50 {dimension_numbers = #tpu.dot_dimension_numbers<[1], [0], [0], [1], [0, 0, 1, 1], [], []>} : vector<8x128xf32>, vector<128x384xf32>, vector<8x384xf32> -> vector<8x384xf32>
    %295 = vector.broadcast %10 : vector<1x384xf32> to vector<8x384xf32>
    %296 = arith.addf %294, %295 : vector<8x384xf32>
    %297 = vector.extract_strided_slice %293 {offsets = [0, 0], sizes = [8, 128], strides = [1, 1]} : vector<8x384xf32> to vector<8x128xf32>
    %298 = vector.extract_strided_slice %296 {offsets = [0, 0], sizes = [8, 128], strides = [1, 1]} : vector<8x384xf32> to vector<8x128xf32>
    %299 = arith.addf %297, %298 : vector<8x128xf32>
    %300 = arith.negf %299 : vector<8x128xf32>
    %301 = math.exp %300 : vector<8x128xf32>
    %cst_51 = arith.constant 1.000000e+00 : f32
    %302 = vector.broadcast %cst_51 : f32 to vector<8x128xf32>
    %303 = arith.addf %302, %301 : vector<8x128xf32>
    %304 = arith.divf %302, %303 : vector<8x128xf32>
    %305 = vector.extract_strided_slice %293 {offsets = [0, 128], sizes = [8, 128], strides = [1, 1]} : vector<8x384xf32> to vector<8x128xf32>
    %306 = vector.extract_strided_slice %296 {offsets = [0, 128], sizes = [8, 128], strides = [1, 1]} : vector<8x384xf32> to vector<8x128xf32>
    %307 = arith.addf %305, %306 : vector<8x128xf32>
    %308 = arith.negf %307 : vector<8x128xf32>
    %309 = math.exp %308 : vector<8x128xf32>
    %cst_52 = arith.constant 1.000000e+00 : f32
    %310 = vector.broadcast %cst_52 : f32 to vector<8x128xf32>
    %311 = arith.addf %310, %309 : vector<8x128xf32>
    %312 = arith.divf %310, %311 : vector<8x128xf32>
    %313 = vector.extract_strided_slice %293 {offsets = [0, 256], sizes = [8, 128], strides = [1, 1]} : vector<8x384xf32> to vector<8x128xf32>
    %314 = vector.extract_strided_slice %296 {offsets = [0, 256], sizes = [8, 128], strides = [1, 1]} : vector<8x384xf32> to vector<8x128xf32>
    %315 = arith.mulf %304, %314 : vector<8x128xf32>
    %316 = arith.addf %313, %315 : vector<8x128xf32>
    %317 = math.tanh %316 : vector<8x128xf32>
    %cst_53 = arith.constant 1.000000e+00 : f32
    %318 = vector.broadcast %cst_53 : f32 to vector<8x128xf32>
    %319 = arith.subf %318, %312 : vector<8x128xf32>
    %320 = arith.mulf %319, %317 : vector<8x128xf32>
    %321 = arith.mulf %312, %291 : vector<8x128xf32>
    %322 = arith.addf %320, %321 : vector<8x128xf32>
    %323 = vector.extract_strided_slice %8 {offsets = [7, 0, 0], sizes = [1, 8, 1], strides = [1, 1, 1]} : vector<8x8x1xf32> to vector<1x8x1xf32>
    %324 = vector.shape_cast %323 : vector<1x8x1xf32> to vector<8x1xf32>
    %325 = vector.broadcast %324 : vector<8x1xf32> to vector<8x128xf32>
    %326 = arith.mulf %325, %322 : vector<8x128xf32>
    %cst_54 = arith.constant 1.000000e+00 : f32
    %327 = vector.broadcast %cst_54 : f32 to vector<8x1xf32>
    %328 = arith.subf %327, %324 : vector<8x1xf32>
    %329 = vector.broadcast %328 : vector<8x1xf32> to vector<8x128xf32>
    %330 = arith.mulf %329, %291 : vector<8x128xf32>
    %331 = arith.addf %326, %330 : vector<8x128xf32>
    %c0_55 = arith.constant 0 : index
    %c0_56 = arith.constant 0 : index
    %332 = vector.load %arg16[%c0_55, %c0_56] : memref<8x128xf32, #tpu.memory_space<vmem>>, vector<8x128xf32>
    tpu.vector_store %arg16[%c0_55, %c0_56], %331 {strides = array<i32>} : memref<8x128xf32, #tpu.memory_space<vmem>>, vector<8x128xf32>,
    %333 = vector.shape_cast %46 : vector<8x128xf32> to vector<1x8x128xf32>
    %334 = vector.shape_cast %86 : vector<8x128xf32> to vector<1x8x128xf32>
    %335 = vector.shape_cast %126 : vector<8x128xf32> to vector<1x8x128xf32>
    %336 = vector.shape_cast %166 : vector<8x128xf32> to vector<1x8x128xf32>
    %337 = vector.shape_cast %206 : vector<8x128xf32> to vector<1x8x128xf32>
    %338 = vector.shape_cast %246 : vector<8x128xf32> to vector<1x8x128xf32>
    %339 = vector.shape_cast %286 : vector<8x128xf32> to vector<1x8x128xf32>
    %340 = vector.shape_cast %326 : vector<8x128xf32> to vector<1x8x128xf32>
    %341 = tpu.concatenate %333, %334, %335, %336, %337, %338, %339, %340 in 0 : vector<1x8x128xf32>, vector<1x8x128xf32>, vector<1x8x128xf32>, vector<1x8x128xf32>, vector<1x8x128xf32>, vector<1x8x128xf32>, vector<1x8x128xf32>, vector<1x8x128xf32> -> vector<8x8x128xf32>
    %342 = tpu.transpose %341, [1, 0, 2] : vector<8x8x128xf32> -> vector<8x8x128xf32>
    %c0_57 = arith.constant 0 : index
    %c0_58 = arith.constant 0 : index
    %c0_59 = arith.constant 0 : index
    %343 = vector.load %arg4[%c0_57, %c0_58, %c0_59] : memref<8x128x128xf32, #tpu.memory_space<vmem>>, vector<8x128x128xf32>
    %344 = vector.shape_cast %343 : vector<8x128x128xf32> to vector<1024x128xf32>
    %c0_60 = arith.constant 0 : index
    %c0_61 = arith.constant 0 : index
    %345 = vector.load %arg9[%c0_60, %c0_61] : memref<128x128xf32, #tpu.memory_space<vmem>>, vector<128x128xf32>
    %cst_62 = arith.constant dense<0.000000e+00> : vector<1024x128xf32>
    %346 = tpu.matmul %344, %345, %cst_62 {dimension_numbers = #tpu.dot_dimension_numbers<[1], [0], [0], [1], [0, 0, 1, 1], [], []>} : vector<1024x128xf32>, vector<128x128xf32>, vector<1024x128xf32> -> vector<1024x128xf32>
    %347 = vector.shape_cast %346 : vector<1024x128xf32> to vector<8x128x128xf32>
    "tpu.trace_start"() <{level = 10 : i32, message = "bqd,bkd->bqk"}> : () -> ()
    %cst_63 = arith.constant dense<0.000000e+00> : vector<8x8x128xf32>
    %348 = tpu.matmul %342, %347, %cst_63 {dimension_numbers = #tpu.dot_dimension_numbers<[2], [2], [1], [1], [0, 0, 0, 1, 1, 1], [0], [0]>} : vector<8x8x128xf32>, vector<8x128x128xf32>, vector<8x8x128xf32> -> vector<8x8x128xf32>
    "tpu.trace_stop"() : () -> ()
    %349 = tpu.iota {dimensions = array<i32: 2>} : vector<1x1x128xi32>
    %c12_i32 = arith.constant 12 : i32
    %350 = vector.broadcast %c12_i32 : i32 to vector<1x1x128xi32>
    %351 = arith.cmpi slt, %349, %350 : vector<1x1x128xi32>
    %cst_64 = arith.constant -1.000000e+30 : f32
    %352 = vector.shape_cast %351 : vector<1x1x128xi1> to vector<1x1x128xi1>
    %353 = vector.broadcast %352 : vector<1x1x128xi1> to vector<8x8x128xi1>
    %354 = vector.broadcast %cst_64 : f32 to vector<8x8x128xf32>
    %355 = arith.select %353, %348, %354 : vector<8x8x128xi1>, vector<8x8x128xf32>
    %cst_65 = arith.constant dense<0xFF800000> : vector<8x8xf32>
    %356 = vector.multi_reduction <maximumf>, %355, %cst_65 [2] : vector<8x8x128xf32> to vector<8x8xf32>
    %357 = vector.shape_cast %356 : vector<8x8xf32> to vector<8x8x1xf32>
    %358 = vector.broadcast %357 : vector<8x8x1xf32> to vector<8x8x128xf32>
    %359 = arith.subf %355, %358 : vector<8x8x128xf32>
    %360 = math.exp %359 : vector<8x8x128xf32>
    %cst_66 = arith.constant dense<0.000000e+00> : vector<8x8xf32>
    %361 = vector.multi_reduction <add>, %360, %cst_66 [2] : vector<8x8x128xf32> to vector<8x8xf32>
    %362 = vector.shape_cast %361 : vector<8x8xf32> to vector<8x8x1xf32>
    %363 = vector.broadcast %362 : vector<8x8x1xf32> to vector<8x8x128xf32>
    %364 = arith.divf %360, %363 : vector<8x8x128xf32>
    %c0_67 = arith.constant 0 : index
    %c0_68 = arith.constant 0 : index
    %c0_69 = arith.constant 0 : index
    %365 = vector.load %arg17[%c0_67, %c0_68, %c0_69] : memref<8x8x128xf32, #tpu.memory_space<vmem>>, vector<8x8x128xf32>
    tpu.vector_store %arg17[%c0_67, %c0_68, %c0_69], %364 {strides = array<i32>} : memref<8x8x128xf32, #tpu.memory_space<vmem>>, vector<8x8x128xf32>,
    "tpu.trace_start"() <{level = 10 : i32, message = "bqk,bkc->bqc"}> : () -> ()
    %cst_70 = arith.constant dense<0.000000e+00> : vector<8x8x128xf32>
    %366 = tpu.matmul %364, %343, %cst_70 {dimension_numbers = #tpu.dot_dimension_numbers<[2], [1], [1], [2], [0, 0, 0, 1, 1, 2], [0], [0]>} : vector<8x8x128xf32>, vector<8x128x128xf32>, vector<8x8x128xf32> -> vector<8x8x128xf32>
    "tpu.trace_stop"() : () -> ()
    %367 = vector.shape_cast %366 : vector<8x8x128xf32> to vector<64x128xf32>
    %c0_71 = arith.constant 0 : index
    %c0_72 = arith.constant 0 : index
    %368 = vector.load %arg10[%c0_71, %c0_72] : memref<128x128xf32, #tpu.memory_space<vmem>>, vector<128x128xf32>
    %cst_73 = arith.constant dense<0.000000e+00> : vector<64x128xf32>
    %369 = tpu.matmul %367, %368, %cst_73 {dimension_numbers = #tpu.dot_dimension_numbers<[1], [0], [0], [1], [0, 0, 1, 1], [], []>} : vector<64x128xf32>, vector<128x128xf32>, vector<64x128xf32> -> vector<64x128xf32>
    %370 = vector.shape_cast %342 : vector<8x8x128xf32> to vector<64x128xf32>
    %c0_74 = arith.constant 0 : index
    %c0_75 = arith.constant 0 : index
    %371 = vector.load %arg11[%c0_74, %c0_75] : memref<128x128xf32, #tpu.memory_space<vmem>>, vector<128x128xf32>
    %cst_76 = arith.constant dense<0.000000e+00> : vector<64x128xf32>
    %372 = tpu.matmul %370, %371, %cst_76 {dimension_numbers = #tpu.dot_dimension_numbers<[1], [0], [0], [1], [0, 0, 1, 1], [], []>} : vector<64x128xf32>, vector<128x128xf32>, vector<64x128xf32> -> vector<64x128xf32>
    %373 = arith.addf %369, %372 : vector<64x128xf32>
    %c0_77 = arith.constant 0 : index
    %c0_78 = arith.constant 0 : index
    %374 = vector.load %arg12[%c0_77, %c0_78] : memref<1x128xf32, #tpu.memory_space<vmem>>, vector<1x128xf32>
    %375 = vector.broadcast %374 : vector<1x128xf32> to vector<64x128xf32>
    %376 = arith.addf %373, %375 : vector<64x128xf32>
    %377 = math.tanh %376 : vector<64x128xf32>
    %c0_79 = arith.constant 0 : index
    %c0_80 = arith.constant 0 : index
    %378 = vector.load %arg13[%c0_79, %c0_80] : memref<128x128xf32, #tpu.memory_space<vmem>>, vector<128x128xf32>
    %cst_81 = arith.constant dense<0.000000e+00> : vector<64x128xf32>
    %379 = tpu.matmul %377, %378, %cst_81 {dimension_numbers = #tpu.dot_dimension_numbers<[1], [0], [0], [1], [0, 0, 1, 1], [], []>} : vector<64x128xf32>, vector<128x128xf32>, vector<64x128xf32> -> vector<64x128xf32>
    %c0_82 = arith.constant 0 : index
    %c0_83 = arith.constant 0 : index
    %380 = vector.load %arg14[%c0_82, %c0_83] : memref<1x128xf32, #tpu.memory_space<vmem>>, vector<1x128xf32>
    %381 = vector.broadcast %380 : vector<1x128xf32> to vector<64x128xf32>
    %382 = arith.addf %379, %381 : vector<64x128xf32>
    %cst_84 = arith.constant dense<0xFF800000> : vector<64xf32>
    %383 = vector.multi_reduction <maximumf>, %382, %cst_84 [1] : vector<64x128xf32> to vector<64xf32>
    %384 = vector.shape_cast %383 : vector<64xf32> to vector<64x1xf32>
    %385 = vector.broadcast %384 : vector<64x1xf32> to vector<64x128xf32>
    %386 = arith.subf %382, %385 : vector<64x128xf32>
    %387 = math.exp %386 : vector<64x128xf32>
    %cst_85 = arith.constant dense<0.000000e+00> : vector<64xf32>
    %388 = vector.multi_reduction <add>, %387, %cst_85 [1] : vector<64x128xf32> to vector<64xf32>
    %389 = vector.shape_cast %388 : vector<64xf32> to vector<64x1xf32>
    %390 = math.log %389 : vector<64x1xf32>
    %391 = vector.broadcast %384 : vector<64x1xf32> to vector<64x128xf32>
    %392 = arith.subf %382, %391 : vector<64x128xf32>
    %393 = vector.broadcast %390 : vector<64x1xf32> to vector<64x128xf32>
    %394 = arith.subf %392, %393 : vector<64x128xf32>
    %395 = vector.shape_cast %394 : vector<64x128xf32> to vector<8x8x128xf32>
    %c0_86 = arith.constant 0 : index
    %c0_87 = arith.constant 0 : index
    %c0_88 = arith.constant 0 : index
    %396 = vector.load %arg15[%c0_86, %c0_87, %c0_88] : memref<8x8x128xf32, #tpu.memory_space<vmem>>, vector<8x8x128xf32>
    tpu.vector_store %arg15[%c0_86, %c0_87, %c0_88], %395 {strides = array<i32>} : memref<8x8x128xf32, #tpu.memory_space<vmem>>, vector<8x8x128xf32>,
    return
  }
  func.func @transform_0(%arg0: i32) -> (i32, i32, i32) {
    %c0_i32 = arith.constant 0 : i32
    %c0_i32_0 = arith.constant 0 : i32
    %c0_i32_1 = arith.constant 0 : i32
    return %c0_i32, %arg0, %c0_i32_0 : i32, i32, i32
  }
  func.func @transform_1(%arg0: i32) -> (i32, i32, i32) {
    %c0_i32 = arith.constant 0 : i32
    %c0_i32_0 = arith.constant 0 : i32
    %c0_i32_1 = arith.constant 0 : i32
    return %c0_i32, %arg0, %c0_i32_0 : i32, i32, i32
  }
  func.func @transform_2(%arg0: i32) -> (i32, i32) {
    %c0_i32 = arith.constant 0 : i32
    %c0_i32_0 = arith.constant 0 : i32
    return %arg0, %c0_i32 : i32, i32
  }
  func.func @transform_3(%arg0: i32) -> (i32, i32, i32) {
    %c0_i32 = arith.constant 0 : i32
    %c0_i32_0 = arith.constant 0 : i32
    %c0_i32_1 = arith.constant 0 : i32
    return %arg0, %c0_i32, %c0_i32_0 : i32, i32, i32
  }
  func.func @transform_4(%arg0: i32) -> (i32, i32) {
    %c0_i32 = arith.constant 0 : i32
    %c0_i32_0 = arith.constant 0 : i32
    %c0_i32_1 = arith.constant 0 : i32
    return %c0_i32, %c0_i32_0 : i32, i32
  }
  func.func @transform_5(%arg0: i32) -> (i32, i32) {
    %c0_i32 = arith.constant 0 : i32
    %c0_i32_0 = arith.constant 0 : i32
    %c0_i32_1 = arith.constant 0 : i32
    return %c0_i32, %c0_i32_0 : i32, i32
  }
  func.func @transform_6(%arg0: i32) -> (i32, i32) {
    %c0_i32 = arith.constant 0 : i32
    %c0_i32_0 = arith.constant 0 : i32
    %c0_i32_1 = arith.constant 0 : i32
    return %c0_i32, %c0_i32_0 : i32, i32
  }
  func.func @transform_7(%arg0: i32) -> (i32, i32) {
    %c0_i32 = arith.constant 0 : i32
    %c0_i32_0 = arith.constant 0 : i32
    %c0_i32_1 = arith.constant 0 : i32
    return %c0_i32, %c0_i32_0 : i32, i32
  }
  func.func @transform_8(%arg0: i32) -> (i32, i32) {
    %c0_i32 = arith.constant 0 : i32
    %c0_i32_0 = arith.constant 0 : i32
    %c0_i32_1 = arith.constant 0 : i32
    return %c0_i32, %c0_i32_0 : i32, i32
  }
  func.func @transform_9(%arg0: i32) -> (i32, i32) {
    %c0_i32 = arith.constant 0 : i32
    %c0_i32_0 = arith.constant 0 : i32
    %c0_i32_1 = arith.constant 0 : i32
    return %c0_i32, %c0_i32_0 : i32, i32
  }
  func.func @transform_10(%arg0: i32) -> (i32, i32) {
    %c0_i32 = arith.constant 0 : i32
    %c0_i32_0 = arith.constant 0 : i32
    %c0_i32_1 = arith.constant 0 : i32
    return %c0_i32, %c0_i32_0 : i32, i32
  }
  func.func @transform_11(%arg0: i32) -> (i32, i32) {
    %c0_i32 = arith.constant 0 : i32
    %c0_i32_0 = arith.constant 0 : i32
    %c0_i32_1 = arith.constant 0 : i32
    return %c0_i32, %c0_i32_0 : i32, i32
  }
  func.func @transform_12(%arg0: i32) -> (i32, i32) {
    %c0_i32 = arith.constant 0 : i32
    %c0_i32_0 = arith.constant 0 : i32
    %c0_i32_1 = arith.constant 0 : i32
    return %c0_i32, %c0_i32_0 : i32, i32
  }
  func.func @transform_13(%arg0: i32) -> (i32, i32) {
    %c0_i32 = arith.constant 0 : i32
    %c0_i32_0 = arith.constant 0 : i32
    %c0_i32_1 = arith.constant 0 : i32
    return %c0_i32, %c0_i32_0 : i32, i32
  }
  func.func @transform_14(%arg0: i32) -> (i32, i32, i32) {
    %c0_i32 = arith.constant 0 : i32
    %c0_i32_0 = arith.constant 0 : i32
    %c0_i32_1 = arith.constant 0 : i32
    return %arg0, %c0_i32, %c0_i32_0 : i32, i32, i32
  }
  func.func @transform_15(%arg0: i32) -> (i32, i32) {
    %c0_i32 = arith.constant 0 : i32
    %c0_i32_0 = arith.constant 0 : i32
    return %arg0, %c0_i32 : i32, i32
  }
  func.func @transform_16(%arg0: i32) -> (i32, i32, i32) {
    %c0_i32 = arith.constant 0 : i32
    %c0_i32_0 = arith.constant 0 : i32
    %c0_i32_1 = arith.constant 0 : i32
    return %arg0, %c0_i32, %c0_i32_0 : i32, i32, i32
  }
}

</mosaic_0001>

<llo_original>
// kernel: decoder_forward.1
$region0: #{decoder_forward.1}
  #allocation0 [shape = 'u32[]', space=smem, size = 0x4, offset = 0x4, fixed_abs, tag = 'smem constant byte address 0x4 - core index']
  #allocation1 [shape = 'u32[72,128]{1,0:T(1,128)}', space=vmem, size = 0x9000, scoped, tag = 'internal scratch']
  %s0 = inlined_call_operand.vmem [shape: f32[8,8,128], index: 0, kind: input, shape index: {}]
  %s1 = inlined_call_operand.vmem [shape: f32[8,8,1], index: 1, kind: input, shape index: {}]
  %s2 = inlined_call_operand.vmem [shape: f32[8,128], index: 2, kind: input, shape index: {}]
  %s3 = inlined_call_operand.vmem [shape: f32[8,128,128], index: 3, kind: input, shape index: {}]
  %s4 = inlined_call_operand.vmem [shape: f32[128,384], index: 4, kind: input, shape index: {}]
  %s5 = inlined_call_operand.vmem [shape: f32[1,384], index: 5, kind: input, shape index: {}]
  %s6 = inlined_call_operand.vmem [shape: f32[128,384], index: 6, kind: input, shape index: {}]
  %s7 = inlined_call_operand.vmem [shape: f32[1,384], index: 7, kind: input, shape index: {}]
  %s8 = inlined_call_operand.vmem [shape: f32[128,128], index: 8, kind: input, shape index: {}]
  %s9 = inlined_call_operand.vmem [shape: f32[128,128], index: 9, kind: input, shape index: {}]
  %s10 = inlined_call_operand.vmem [shape: f32[128,128], index: 10, kind: input, shape index: {}]
  %s11 = inlined_call_operand.vmem [shape: f32[1,128], index: 11, kind: input, shape index: {}]
  %s12 = inlined_call_operand.vmem [shape: f32[128,128], index: 12, kind: input, shape index: {}]
  %s13 = inlined_call_operand.vmem [shape: f32[1,128], index: 13, kind: input, shape index: {}]
  %s14 = inlined_call_operand.vmem [shape: f32[8,8,128], index: 14, kind: output, shape index: {0}]
  %s15 = inlined_call_operand.vmem [shape: f32[8,128], index: 15, kind: output, shape index: {1}]
  %s16 = inlined_call_operand.vmem [shape: f32[8,8,128], index: 16, kind: output, shape index: {2}]
  %17 = xla_tuple %s14, %s15, %s16
  %s18 = sld [smem:[#allocation0]]
  $region82: #{decoder_forward.1} parent=0
    _
  %s20 = ssub.s32 1, %s18
  %s21 = scalar_select 0, %s20, %s18
  // Predicated region
  $region2: #{decoder_forward.1} parent=0 // pred_check
    _
  $region3: #{decoder_forward.1} parent=0 // pred_check_branch
    %23 = sbr.rel (0) target = $region5
  $region4: #{decoder_forward.1} parent=0 // pred_region
    _
  $region5: #{decoder_forward.1} parent=0 // pred_fallthru
    _
  // Predicated region
  $region6: #{decoder_forward.1} parent=0 // pred_check
    _
  $region7: #{decoder_forward.1} parent=0 // pred_check_branch
    %25 = sbr.rel (0) target = $region9
  $region8: #{decoder_forward.1} parent=0 // pred_region
    _
  $region9: #{decoder_forward.1} parent=0 // pred_fallthru
    _
  // Predicated region
  $region10: #{decoder_forward.1} parent=0 // pred_check
    _
  $region11: #{decoder_forward.1} parent=0 // pred_check_branch
    %27 = sbr.rel (0) target = $region13
  $region12: #{decoder_forward.1} parent=0 // pred_region
    _
  $region13: #{decoder_forward.1} parent=0 // pred_fallthru
    _
  // Predicated region
  $region14: #{decoder_forward.1} parent=0 // pred_check
    _
  $region15: #{decoder_forward.1} parent=0 // pred_check_branch
    %29 = sbr.rel (0) target = $region17
  $region16: #{decoder_forward.1} parent=0 // pred_region
    _
  $region17: #{decoder_forward.1} parent=0 // pred_fallthru
    _
  // Predicated region
  $region18: #{decoder_forward.1} parent=0 // pred_check
    _
  $region19: #{decoder_forward.1} parent=0 // pred_check_branch
    %31 = sbr.rel (0) target = $region21
  $region20: #{decoder_forward.1} parent=0 // pred_region
    _
  $region21: #{decoder_forward.1} parent=0 // pred_fallthru
    _
  // Predicated region
  $region22: #{decoder_forward.1} parent=0 // pred_check
    _
  $region23: #{decoder_forward.1} parent=0 // pred_check_branch
    %33 = sbr.rel (0) target = $region25
  $region24: #{decoder_forward.1} parent=0 // pred_region
    _
  $region25: #{decoder_forward.1} parent=0 // pred_fallthru
    _
  // Predicated region
  $region26: #{decoder_forward.1} parent=0 // pred_check
    _
  $region27: #{decoder_forward.1} parent=0 // pred_check_branch
    %35 = sbr.rel (0) target = $region29
  $region28: #{decoder_forward.1} parent=0 // pred_region
    _
  $region29: #{decoder_forward.1} parent=0 // pred_fallthru
    _
  // Predicated region
  $region30: #{decoder_forward.1} parent=0 // pred_check
    _
  $region31: #{decoder_forward.1} parent=0 // pred_check_branch
    %37 = sbr.rel (0) target = $region33
  $region32: #{decoder_forward.1} parent=0 // pred_region
    _
  $region33: #{decoder_forward.1} parent=0 // pred_fallthru
    _
  // Predicated region
  $region34: #{decoder_forward.1} parent=0 // pred_check
    _
  $region35: #{decoder_forward.1} parent=0 // pred_check_branch
    %39 = sbr.rel (0) target = $region37
  $region36: #{decoder_forward.1} parent=0 // pred_region
    _
  $region37: #{decoder_forward.1} parent=0 // pred_fallthru
    _
  // Predicated region
  $region38: #{decoder_forward.1} parent=0 // pred_check
    _
  $region39: #{decoder_forward.1} parent=0 // pred_check_branch
    %41 = sbr.rel (0) target = $region41
  $region40: #{decoder_forward.1} parent=0 // pred_region
    _
  $region41: #{decoder_forward.1} parent=0 // pred_fallthru
    _
  // Predicated region
  $region42: #{decoder_forward.1} parent=0 // pred_check
    _
  $region43: #{decoder_forward.1} parent=0 // pred_check_branch
    %43 = sbr.rel (0) target = $region45
  $region44: #{decoder_forward.1} parent=0 // pred_region
    _
  $region45: #{decoder_forward.1} parent=0 // pred_fallthru
    _
  // Predicated region
  $region46: #{decoder_forward.1} parent=0 // pred_check
    _
  $region47: #{decoder_forward.1} parent=0 // pred_check_branch
    %45 = sbr.rel (0) target = $region49
  $region48: #{decoder_forward.1} parent=0 // pred_region
    _
  $region49: #{decoder_forward.1} parent=0 // pred_fallthru
    _
  // Predicated region
  $region50: #{decoder_forward.1} parent=0 // pred_check
    _
  $region51: #{decoder_forward.1} parent=0 // pred_check_branch
    %47 = sbr.rel (0) target = $region53
  $region52: #{decoder_forward.1} parent=0 // pred_region
    _
  $region53: #{decoder_forward.1} parent=0 // pred_fallthru
    _
  // Predicated region
  $region54: #{decoder_forward.1} parent=0 // pred_check
    _
  $region55: #{decoder_forward.1} parent=0 // pred_check_branch
    %49 = sbr.rel (0) target = $region57
  $region56: #{decoder_forward.1} parent=0 // pred_region
    _
  $region57: #{decoder_forward.1} parent=0 // pred_fallthru
    _
  %v50 = vld [vmem:[%s0] sm:$0xff]
  %v51 = vld [vmem:[%s0 + $0x8] sm:$0xff]
  %v52 = vld [vmem:[%s0 + $0x10] sm:$0xff]
  %v53 = vld [vmem:[%s0 + $0x18] sm:$0xff]
  %v54 = vld [vmem:[%s0 + $0x20] sm:$0xff]
  %v55 = vld [vmem:[%s0 + $0x28] sm:$0xff]
  %v56 = vld [vmem:[%s0 + $0x30] sm:$0xff]
  %v57 = vld [vmem:[%s0 + $0x38] sm:$0xff]
  %v58 = vld [vmem:[%s4] sm:$0xff]
  %v59 = vld [vmem:[%s4 + $0x8] sm:$0xff]
  %v60 = vld [vmem:[%s4 + $0x10] sm:$0xff]
  %v61 = vld [vmem:[%s4 + $0x18] sm:$0xff]
  %v62 = vld [vmem:[%s4 + $0x20] sm:$0xff]
  %v63 = vld [vmem:[%s4 + $0x28] sm:$0xff]
  %v64 = vld [vmem:[%s4 + $0x30] sm:$0xff]
  %v65 = vld [vmem:[%s4 + $0x38] sm:$0xff]
  %v66 = vld [vmem:[%s4 + $0x40] sm:$0xff]
  %v67 = vld [vmem:[%s4 + $0x48] sm:$0xff]
  %v68 = vld [vmem:[%s4 + $0x50] sm:$0xff]
  %v69 = vld [vmem:[%s4 + $0x58] sm:$0xff]
  %v70 = vld [vmem:[%s4 + $0x60] sm:$0xff]
  %v71 = vld [vmem:[%s4 + $0x68] sm:$0xff]
  %v72 = vld [vmem:[%s4 + $0x70] sm:$0xff]
  %v73 = vld [vmem:[%s4 + $0x78] sm:$0xff]
  %v74 = vld [vmem:[%s4 + $0x80] sm:$0xff]
  %v75 = vld [vmem:[%s4 + $0x88] sm:$0xff]
  %v76 = vld [vmem:[%s4 + $0x90] sm:$0xff]
  %v77 = vld [vmem:[%s4 + $0x98] sm:$0xff]
  %v78 = vld [vmem:[%s4 + $0xa0] sm:$0xff]
  %v79 = vld [vmem:[%s4 + $0xa8] sm:$0xff]
  %v80 = vld [vmem:[%s4 + $0xb0] sm:$0xff]
  %v81 = vld [vmem:[%s4 + $0xb8] sm:$0xff]
  %v82 = vld [vmem:[%s4 + $0xc0] sm:$0xff]
  %v83 = vld [vmem:[%s4 + $0xc8] sm:$0xff]
  %v84 = vld [vmem:[%s4 + $0xd0] sm:$0xff]
  %v85 = vld [vmem:[%s4 + $0xd8] sm:$0xff]
  %v86 = vld [vmem:[%s4 + $0xe0] sm:$0xff]
  %v87 = vld [vmem:[%s4 + $0xe8] sm:$0xff]
  %v88 = vld [vmem:[%s4 + $0xf0] sm:$0xff]
  %v89 = vld [vmem:[%s4 + $0xf8] sm:$0xff]
  %v90 = vld [vmem:[%s4 + $0x100] sm:$0xff]
  %v91 = vld [vmem:[%s4 + $0x108] sm:$0xff]
  %v92 = vld [vmem:[%s4 + $0x110] sm:$0xff]
  %v93 = vld [vmem:[%s4 + $0x118] sm:$0xff]
  %v94 = vld [vmem:[%s4 + $0x120] sm:$0xff]
  %v95 = vld [vmem:[%s4 + $0x128] sm:$0xff]
  %v96 = vld [vmem:[%s4 + $0x130] sm:$0xff]
  %v97 = vld [vmem:[%s4 + $0x138] sm:$0xff]
  %v98 = vld [vmem:[%s4 + $0x140] sm:$0xff]
  %v99 = vld [vmem:[%s4 + $0x148] sm:$0xff]
  %v100 = vld [vmem:[%s4 + $0x150] sm:$0xff]
  %v101 = vld [vmem:[%s4 + $0x158] sm:$0xff]
  %v102 = vld [vmem:[%s4 + $0x160] sm:$0xff]
  %v103 = vld [vmem:[%s4 + $0x168] sm:$0xff]
  %v104 = vld [vmem:[%s4 + $0x170] sm:$0xff]
  %v105 = vld [vmem:[%s4 + $0x178] sm:$0xff]
  %v106 = vld [vmem:[%s5] sm:$0x7]
  %v108 = vperm.slane %v106, 0
  %v109 = vperm.slane %v106, 1
  %v110 = vperm.slane %v106, 2
  %114 = vmatpush.msra.mxu0 %v103
  %115 = vmatpush.msra.mxu0 %v100
  %116 = vmatpush.msra.mxu0 %v97
  %117 = vmatpush.msra.mxu0 %v94
  %118 = vmatpush.msra.mxu0 %v91
  %119 = vmatpush.msra.mxu0 %v88
  %120 = vmatpush.msra.mxu0 %v85
  %121 = vmatpush.msra.mxu0 %v82
  %122 = vmatpush.msra.mxu0 %v79
  %123 = vmatpush.msra.mxu0 %v76
  %124 = vmatpush.msra.mxu0 %v73
  %125 = vmatpush.msra.mxu0 %v70
  %126 = vmatpush.msra.mxu0 %v67
  %127 = vmatpush.msra.mxu0 %v64
  %128 = vmatpush.msra.mxu0 %v61
  %129 = vmatpush.msra.mxu0 %v58
  %130 = vmatmul.f32.gmra.mxu0 %v50
  %v131 = vpop.f32.mrf.mxu0
  %v132 = vadd.f32 %v108, %v131
  %133 = vmatmul.f32.gmra.mxu0 %v51
  %v134 = vpop.f32.mrf.mxu0
  %v135 = vadd.f32 %v108, %v134
  %136 = vmatmul.f32.gmra.mxu0 %v52
  %v137 = vpop.f32.mrf.mxu0
  %v138 = vadd.f32 %v108, %v137
  %139 = vmatmul.f32.gmra.mxu0 %v53
  %v140 = vpop.f32.mrf.mxu0
  %v141 = vadd.f32 %v108, %v140
  %142 = vmatmul.f32.gmra.mxu0 %v54
  %v143 = vpop.f32.mrf.mxu0
  %v144 = vadd.f32 %v108, %v143
  %145 = vmatmul.f32.gmra.mxu0 %v55
  %v146 = vpop.f32.mrf.mxu0
  %v147 = vadd.f32 %v108, %v146
  %148 = vmatmul.f32.gmra.mxu0 %v56
  %v149 = vpop.f32.mrf.mxu0
  %v150 = vadd.f32 %v108, %v149
  %151 = vmatmul.f32.gmra.mxu0 %v57
  %v152 = vpop.f32.mrf.mxu0
  %v153 = vadd.f32 %v108, %v152
  %154 = vdwg.mxu0
  %155 = vmatpush.msra.mxu0 %v104
  %156 = vmatpush.msra.mxu0 %v101
  %157 = vmatpush.msra.mxu0 %v98
  %158 = vmatpush.msra.mxu0 %v95
  %159 = vmatpush.msra.mxu0 %v92
  %160 = vmatpush.msra.mxu0 %v89
  %161 = vmatpush.msra.mxu0 %v86
  %162 = vmatpush.msra.mxu0 %v83
  %163 = vmatpush.msra.mxu0 %v80
  %164 = vmatpush.msra.mxu0 %v77
  %165 = vmatpush.msra.mxu0 %v74
  %166 = vmatpush.msra.mxu0 %v71
  %167 = vmatpush.msra.mxu0 %v68
  %168 = vmatpush.msra.mxu0 %v65
  %169 = vmatpush.msra.mxu0 %v62
  %170 = vmatpush.msra.mxu0 %v59
  %171 = vmatmul.f32.gmra.mxu0 %v50
  %v172 = vpop.f32.mrf.mxu0
  %v173 = vadd.f32 %v109, %v172
  %174 = vmatmul.f32.gmra.mxu0 %v51
  %v175 = vpop.f32.mrf.mxu0
  %v176 = vadd.f32 %v109, %v175
  %177 = vmatmul.f32.gmra.mxu0 %v52
  %v178 = vpop.f32.mrf.mxu0
  %v179 = vadd.f32 %v109, %v178
  %180 = vmatmul.f32.gmra.mxu0 %v53
  %v181 = vpop.f32.mrf.mxu0
  %v182 = vadd.f32 %v109, %v181
  %183 = vmatmul.f32.gmra.mxu0 %v54
  %v184 = vpop.f32.mrf.mxu0
  %v185 = vadd.f32 %v109, %v184
  %186 = vmatmul.f32.gmra.mxu0 %v55
  %v187 = vpop.f32.mrf.mxu0
  %v188 = vadd.f32 %v109, %v187
  %189 = vmatmul.f32.gmra.mxu0 %v56
  %v190 = vpop.f32.mrf.mxu0
  %v191 = vadd.f32 %v109, %v190
  %192 = vmatmul.f32.gmra.mxu0 %v57
  %v193 = vpop.f32.mrf.mxu0
  %v194 = vadd.f32 %v109, %v193
  %195 = vdwg.mxu0
  %196 = vmatpush.msra.mxu0 %v105
  %197 = vmatpush.msra.mxu0 %v102
  %198 = vmatpush.msra.mxu0 %v99
  %199 = vmatpush.msra.mxu0 %v96
  %200 = vmatpush.msra.mxu0 %v93
  %201 = vmatpush.msra.mxu0 %v90
  %202 = vmatpush.msra.mxu0 %v87
  %203 = vmatpush.msra.mxu0 %v84
  %204 = vmatpush.msra.mxu0 %v81
  %205 = vmatpush.msra.mxu0 %v78
  %206 = vmatpush.msra.mxu0 %v75
  %207 = vmatpush.msra.mxu0 %v72
  %208 = vmatpush.msra.mxu0 %v69
  %209 = vmatpush.msra.mxu0 %v66
  %210 = vmatpush.msra.mxu0 %v63
  %211 = vmatpush.msra.mxu0 %v60
  %212 = vmatmul.f32.gmra.mxu0 %v50
  %v213 = vpop.f32.mrf.mxu0
  %v214 = vadd.f32 %v110, %v213
  %215 = vmatmul.f32.gmra.mxu0 %v51
  %v216 = vpop.f32.mrf.mxu0
  %v217 = vadd.f32 %v110, %v216
  %218 = vmatmul.f32.gmra.mxu0 %v52
  %v219 = vpop.f32.mrf.mxu0
  %v220 = vadd.f32 %v110, %v219
  %221 = vmatmul.f32.gmra.mxu0 %v53
  %v222 = vpop.f32.mrf.mxu0
  %v223 = vadd.f32 %v110, %v222
  %224 = vmatmul.f32.gmra.mxu0 %v54
  %v225 = vpop.f32.mrf.mxu0
  %v226 = vadd.f32 %v110, %v225
  %227 = vmatmul.f32.gmra.mxu0 %v55
  %v228 = vpop.f32.mrf.mxu0
  %v229 = vadd.f32 %v110, %v228
  %230 = vmatmul.f32.gmra.mxu0 %v56
  %v231 = vpop.f32.mrf.mxu0
  %v232 = vadd.f32 %v110, %v231
  %233 = vmatmul.f32.gmra.mxu0 %v57
  %v234 = vpop.f32.mrf.mxu0
  %v235 = vadd.f32 %v110, %v234
  %236 = vdwg.mxu0
  %v237 = vld [vmem:[%s1] sm:$0xff]
  %v238 = vld [vmem:[%s1 + $0x8] sm:$0xff]
  %v239 = vld [vmem:[%s1 + $0x10] sm:$0xff]
  %v240 = vld [vmem:[%s1 + $0x18] sm:$0xff]
  %v241 = vld [vmem:[%s1 + $0x20] sm:$0xff]
  %v242 = vld [vmem:[%s1 + $0x28] sm:$0xff]
  %v243 = vld [vmem:[%s1 + $0x30] sm:$0xff]
  %v244 = vld [vmem:[%s1 + $0x38] sm:$0xff]
  %v245 = vld [vmem:[%s6] sm:$0xff]
  %v246 = vld [vmem:[%s6 + $0x8] sm:$0xff]
  %v247 = vld [vmem:[%s6 + $0x10] sm:$0xff]
  %v248 = vld [vmem:[%s6 + $0x18] sm:$0xff]
  %v249 = vld [vmem:[%s6 + $0x20] sm:$0xff]
  %v250 = vld [vmem:[%s6 + $0x28] sm:$0xff]
  %v251 = vld [vmem:[%s6 + $0x30] sm:$0xff]
  %v252 = vld [vmem:[%s6 + $0x38] sm:$0xff]
  %v253 = vld [vmem:[%s6 + $0x40] sm:$0xff]
  %v254 = vld [vmem:[%s6 + $0x48] sm:$0xff]
  %v255 = vld [vmem:[%s6 + $0x50] sm:$0xff]
  %v256 = vld [vmem:[%s6 + $0x58] sm:$0xff]
  %v257 = vld [vmem:[%s6 + $0x60] sm:$0xff]
  %v258 = vld [vmem:[%s6 + $0x68] sm:$0xff]
  %v259 = vld [vmem:[%s6 + $0x70] sm:$0xff]
  %v260 = vld [vmem:[%s6 + $0x78] sm:$0xff]
  %v261 = vld [vmem:[%s6 + $0x80] sm:$0xff]
  %v262 = vld [vmem:[%s6 + $0x88] sm:$0xff]
  %v263 = vld [vmem:[%s6 + $0x90] sm:$0xff]
  %v264 = vld [vmem:[%s6 + $0x98] sm:$0xff]
  %v265 = vld [vmem:[%s6 + $0xa0] sm:$0xff]
  %v266 = vld [vmem:[%s6 + $0xa8] sm:$0xff]
  %v267 = vld [vmem:[%s6 + $0xb0] sm:$0xff]
  %v268 = vld [vmem:[%s6 + $0xb8] sm:$0xff]
  %v269 = vld [vmem:[%s6 + $0xc0] sm:$0xff]
  %v270 = vld [vmem:[%s6 + $0xc8] sm:$0xff]
  %v271 = vld [vmem:[%s6 + $0xd0] sm:$0xff]
  %v272 = vld [vmem:[%s6 + $0xd8] sm:$0xff]
  %v273 = vld [vmem:[%s6 + $0xe0] sm:$0xff]
  %v274 = vld [vmem:[%s6 + $0xe8] sm:$0xff]
  %v275 = vld [vmem:[%s6 + $0xf0] sm:$0xff]
  %v276 = vld [vmem:[%s6 + $0xf8] sm:$0xff]
  %v277 = vld [vmem:[%s6 + $0x100] sm:$0xff]
  %v278 = vld [vmem:[%s6 + $0x108] sm:$0xff]
  %v279 = vld [vmem:[%s6 + $0x110] sm:$0xff]
  %v280 = vld [vmem:[%s6 + $0x118] sm:$0xff]
  %v281 = vld [vmem:[%s6 + $0x120] sm:$0xff]
  %v282 = vld [vmem:[%s6 + $0x128] sm:$0xff]
  %v283 = vld [vmem:[%s6 + $0x130] sm:$0xff]
  %v284 = vld [vmem:[%s6 + $0x138] sm:$0xff]
  %v285 = vld [vmem:[%s6 + $0x140] sm:$0xff]
  %v286 = vld [vmem:[%s6 + $0x148] sm:$0xff]
  %v287 = vld [vmem:[%s6 + $0x150] sm:$0xff]
  %v288 = vld [vmem:[%s6 + $0x158] sm:$0xff]
  %v289 = vld [vmem:[%s6 + $0x160] sm:$0xff]
  %v290 = vld [vmem:[%s6 + $0x168] sm:$0xff]
  %v291 = vld [vmem:[%s6 + $0x170] sm:$0xff]
  %v292 = vld [vmem:[%s6 + $0x178] sm:$0xff]
  %v293 = vld [vmem:[%s7] sm:$0x7]
  %v294 = vld [vmem:[%s2] sm:$0xff]
  %v296 = vperm.slane %v293, 0
  %v297 = vperm.slane %v293, 1
  %v298 = vperm.slane %v293, 2
  %302 = vmatpush.msra.mxu0 %v290
  %303 = vmatpush.msra.mxu0 %v287
  %304 = vmatpush.msra.mxu0 %v284
  %305 = vmatpush.msra.mxu0 %v281
  %306 = vmatpush.msra.mxu0 %v278
  %307 = vmatpush.msra.mxu0 %v275
  %308 = vmatpush.msra.mxu0 %v272
  %309 = vmatpush.msra.mxu0 %v269
  %310 = vmatpush.msra.mxu0 %v266
  %311 = vmatpush.msra.mxu0 %v263
  %312 = vmatpush.msra.mxu0 %v260
  %313 = vmatpush.msra.mxu0 %v257
  %314 = vmatpush.msra.mxu0 %v254
  %315 = vmatpush.msra.mxu0 %v251
  %316 = vmatpush.msra.mxu0 %v248
  %317 = vmatpush.msra.mxu0 %v245
  %318 = vmatmul.f32.gmra.mxu0 %v294
  %v319 = vpop.f32.mrf.mxu0
  %v320 = vadd.f32 %v296, %v319
  %321 = vdwg.mxu0
  %322 = vmatpush.msra.mxu0 %v291
  %323 = vmatpush.msra.mxu0 %v288
  %324 = vmatpush.msra.mxu0 %v285
  %325 = vmatpush.msra.mxu0 %v282
  %326 = vmatpush.msra.mxu0 %v279
  %327 = vmatpush.msra.mxu0 %v276
  %328 = vmatpush.msra.mxu0 %v273
  %329 = vmatpush.msra.mxu0 %v270
  %330 = vmatpush.msra.mxu0 %v267
  %331 = vmatpush.msra.mxu0 %v264
  %332 = vmatpush.msra.mxu0 %v261
  %333 = vmatpush.msra.mxu0 %v258
  %334 = vmatpush.msra.mxu0 %v255
  %335 = vmatpush.msra.mxu0 %v252
  %336 = vmatpush.msra.mxu0 %v249
  %337 = vmatpush.msra.mxu0 %v246
  %338 = vmatmul.f32.gmra.mxu0 %v294
  %v339 = vpop.f32.mrf.mxu0
  %v340 = vadd.f32 %v297, %v339
  %341 = vdwg.mxu0
  %342 = vmatpush.msra.mxu0 %v292
  %343 = vmatpush.msra.mxu0 %v289
  %344 = vmatpush.msra.mxu0 %v286
  %345 = vmatpush.msra.mxu0 %v283
  %346 = vmatpush.msra.mxu0 %v280
  %347 = vmatpush.msra.mxu0 %v277
  %348 = vmatpush.msra.mxu0 %v274
  %349 = vmatpush.msra.mxu0 %v271
  %350 = vmatpush.msra.mxu0 %v268
  %351 = vmatpush.msra.mxu0 %v265
  %352 = vmatpush.msra.mxu0 %v262
  %353 = vmatpush.msra.mxu0 %v259
  %354 = vmatpush.msra.mxu0 %v256
  %355 = vmatpush.msra.mxu0 %v253
  %356 = vmatpush.msra.mxu0 %v250
  %357 = vmatpush.msra.mxu0 %v247
  %358 = vmatmul.f32.gmra.mxu0 %v294
  %v359 = vpop.f32.mrf.mxu0
  %v360 = vadd.f32 %v298, %v359
  %361 = vdwg.mxu0
  %v362 = vadd.f32 %v132, %v320
  %v363 = vxor.u32 %v362, 2147483648
  %v364 = vmul.f32 %v363, 1.442695
  %v365 = vpow.pop %v364
  %v366 = vadd.f32 %v365, 1.0
  %v367 = vrcp.pop %v366
  %v368 = vmul.f32 %v366, %v367
  %v369 = vsub.f32 1.0, %v368
  %v370 = vmul.f32 %v367, %v369
  %v371 = vadd.f32 %v367, %v370
  %vm372 = vweird.f32 %v366
  %vm373 = vweird.f32 %v367
  %vm374 = vmor %vm372, %vm373
  %v375 = vsel %vm374, %v367, %v371
  %v376 = vand.u32 2147483647, %v366
  %vm377 = vcmp.eq.f32.partialorder %v376, 8.507059e+37
  %v378 = vand.u32 %v366, 2147483648
  %v379 = vor.u32 1.1754944e-38, %v378
  %v380 = vsel %vm377, %v379, %v375
  %v381 = vmul.f32 1.0, %v380
  %v382 = vadd.f32 %v173, %v340
  %v383 = vxor.u32 %v382, 2147483648
  %v384 = vmul.f32 %v383, 1.442695
  %v385 = vpow.pop %v384
  %v386 = vadd.f32 %v385, 1.0
  %v387 = vrcp.pop %v386
  %v388 = vmul.f32 %v386, %v387
  %v389 = vsub.f32 1.0, %v388
  %v390 = vmul.f32 %v387, %v389
  %v391 = vadd.f32 %v387, %v390
  %vm392 = vweird.f32 %v386
  %vm393 = vweird.f32 %v387
  %vm394 = vmor %vm392, %vm393
  %v395 = vsel %vm394, %v387, %v391
  %v396 = vand.u32 2147483647, %v386
  %vm397 = vcmp.eq.f32.partialorder %v396, 8.507059e+37
  %v398 = vand.u32 %v386, 2147483648
  %v399 = vor.u32 1.1754944e-38, %v398
  %v400 = vsel %vm397, %v399, %v395
  %v401 = vmul.f32 1.0, %v400
  %v402 = vmul.f32 %v381, %v360
  %v403 = vadd.f32 %v214, %v402
  %v404 = vtanh.pop %v403
  %v405 = vsub.f32 1.0, %v401
  %v406 = vmul.f32 %v405, %v404
  %v407 = vmul.f32 %v401, %v294
  %v408 = vadd.f32 %v406, %v407
  %410 = vset.pattern.permute.xlu0 0
  %411 = vperm.xlu0 %410, %v237
  %v412 = vpop.permute.xlu0 %411
  %v414 = vmul.f32 %v412, %v408
  %v415 = vsub.f32 1.0, %v237
  %417 = vset.pattern.permute.xlu0 0
  %418 = vperm.xlu0 %417, %v415
  %v419 = vpop.permute.xlu0 %418
  %v421 = vmul.f32 %v419, %v294
  %v422 = vadd.f32 %v414, %v421
  %423 = vmatpush.msra.mxu0 %v290
  %424 = vmatpush.msra.mxu0 %v287
  %425 = vmatpush.msra.mxu0 %v284
  %426 = vmatpush.msra.mxu0 %v281
  %427 = vmatpush.msra.mxu0 %v278
  %428 = vmatpush.msra.mxu0 %v275
  %429 = vmatpush.msra.mxu0 %v272
  %430 = vmatpush.msra.mxu0 %v269
  %431 = vmatpush.msra.mxu0 %v266
  %432 = vmatpush.msra.mxu0 %v263
  %433 = vmatpush.msra.mxu0 %v260
  %434 = vmatpush.msra.mxu0 %v257
  %435 = vmatpush.msra.mxu0 %v254
  %436 = vmatpush.msra.mxu0 %v251
  %437 = vmatpush.msra.mxu0 %v248
  %438 = vmatpush.msra.mxu0 %v245
  %439 = vmatmul.f32.gmra.mxu0 %v422
  %v440 = vpop.f32.mrf.mxu0
  %v441 = vadd.f32 %v296, %v440
  %442 = vdwg.mxu0
  %443 = vmatpush.msra.mxu0 %v291
  %444 = vmatpush.msra.mxu0 %v288
  %445 = vmatpush.msra.mxu0 %v285
  %446 = vmatpush.msra.mxu0 %v282
  %447 = vmatpush.msra.mxu0 %v279
  %448 = vmatpush.msra.mxu0 %v276
  %449 = vmatpush.msra.mxu0 %v273
  %450 = vmatpush.msra.mxu0 %v270
  %451 = vmatpush.msra.mxu0 %v267
  %452 = vmatpush.msra.mxu0 %v264
  %453 = vmatpush.msra.mxu0 %v261
  %454 = vmatpush.msra.mxu0 %v258
  %455 = vmatpush.msra.mxu0 %v255
  %456 = vmatpush.msra.mxu0 %v252
  %457 = vmatpush.msra.mxu0 %v249
  %458 = vmatpush.msra.mxu0 %v246
  %459 = vmatmul.f32.gmra.mxu0 %v422
  %v460 = vpop.f32.mrf.mxu0
  %v461 = vadd.f32 %v297, %v460
  %462 = vdwg.mxu0
  %463 = vmatpush.msra.mxu0 %v292
  %464 = vmatpush.msra.mxu0 %v289
  %465 = vmatpush.msra.mxu0 %v286
  %466 = vmatpush.msra.mxu0 %v283
  %467 = vmatpush.msra.mxu0 %v280
  %468 = vmatpush.msra.mxu0 %v277
  %469 = vmatpush.msra.mxu0 %v274
  %470 = vmatpush.msra.mxu0 %v271
  %471 = vmatpush.msra.mxu0 %v268
  %472 = vmatpush.msra.mxu0 %v265
  %473 = vmatpush.msra.mxu0 %v262
  %474 = vmatpush.msra.mxu0 %v259
  %475 = vmatpush.msra.mxu0 %v256
  %476 = vmatpush.msra.mxu0 %v253
  %477 = vmatpush.msra.mxu0 %v250
  %478 = vmatpush.msra.mxu0 %v247
  %479 = vmatmul.f32.gmra.mxu0 %v422
  %v480 = vpop.f32.mrf.mxu0
  %v481 = vadd.f32 %v298, %v480
  %482 = vdwg.mxu0
  %v483 = vadd.f32 %v135, %v441
  %v484 = vxor.u32 %v483, 2147483648
  %v485 = vmul.f32 %v484, 1.442695
  %v486 = vpow.pop %v485
  %v487 = vadd.f32 %v486, 1.0
  %v488 = vrcp.pop %v487
  %v489 = vmul.f32 %v487, %v488
  %v490 = vsub.f32 1.0, %v489
  %v491 = vmul.f32 %v488, %v490
  %v492 = vadd.f32 %v488, %v491
  %vm493 = vweird.f32 %v487
  %vm494 = vweird.f32 %v488
  %vm495 = vmor %vm493, %vm494
  %v496 = vsel %vm495, %v488, %v492
  %v497 = vand.u32 2147483647, %v487
  %vm498 = vcmp.eq.f32.partialorder %v497, 8.507059e+37
  %v499 = vand.u32 %v487, 2147483648
  %v500 = vor.u32 1.1754944e-38, %v499
  %v501 = vsel %vm498, %v500, %v496
  %v502 = vmul.f32 1.0, %v501
  %v503 = vadd.f32 %v176, %v461
  %v504 = vxor.u32 %v503, 2147483648
  %v505 = vmul.f32 %v504, 1.442695
  %v506 = vpow.pop %v505
  %v507 = vadd.f32 %v506, 1.0
  %v508 = vrcp.pop %v507
  %v509 = vmul.f32 %v507, %v508
  %v510 = vsub.f32 1.0, %v509
  %v511 = vmul.f32 %v508, %v510
  %v512 = vadd.f32 %v508, %v511
  %vm513 = vweird.f32 %v507
  %vm514 = vweird.f32 %v508
  %vm515 = vmor %vm513, %vm514
  %v516 = vsel %vm515, %v508, %v512
  %v517 = vand.u32 2147483647, %v507
  %vm518 = vcmp.eq.f32.partialorder %v517, 8.507059e+37
  %v519 = vand.u32 %v507, 2147483648
  %v520 = vor.u32 1.1754944e-38, %v519
  %v521 = vsel %vm518, %v520, %v516
  %v522 = vmul.f32 1.0, %v521
  %v523 = vmul.f32 %v502, %v481
  %v524 = vadd.f32 %v217, %v523
  %v525 = vtanh.pop %v524
  %v526 = vsub.f32 1.0, %v522
  %v527 = vmul.f32 %v526, %v525
  %v528 = vmul.f32 %v522, %v422
  %v529 = vadd.f32 %v527, %v528
  %531 = vset.pattern.permute.xlu0 0
  %532 = vperm.xlu0 %531, %v238
  %v533 = vpop.permute.xlu0 %532
  %v535 = vmul.f32 %v533, %v529
  %v536 = vsub.f32 1.0, %v238
  %538 = vset.pattern.permute.xlu0 0
  %539 = vperm.xlu0 %538, %v536
  %v540 = vpop.permute.xlu0 %539
  %v542 = vmul.f32 %v540, %v422
  %v543 = vadd.f32 %v535, %v542
  %544 = vmatpush.msra.mxu0 %v290
  %545 = vmatpush.msra.mxu0 %v287
  %546 = vmatpush.msra.mxu0 %v284
  %547 = vmatpush.msra.mxu0 %v281
  %548 = vmatpush.msra.mxu0 %v278
  %549 = vmatpush.msra.mxu0 %v275
  %550 = vmatpush.msra.mxu0 %v272
  %551 = vmatpush.msra.mxu0 %v269
  %552 = vmatpush.msra.mxu0 %v266
  %553 = vmatpush.msra.mxu0 %v263
  %554 = vmatpush.msra.mxu0 %v260
  %555 = vmatpush.msra.mxu0 %v257
  %556 = vmatpush.msra.mxu0 %v254
  %557 = vmatpush.msra.mxu0 %v251
  %558 = vmatpush.msra.mxu0 %v248
  %559 = vmatpush.msra.mxu0 %v245
  %560 = vmatmul.f32.gmra.mxu0 %v543
  %v561 = vpop.f32.mrf.mxu0
  %v562 = vadd.f32 %v296, %v561
  %563 = vdwg.mxu0
  %564 = vmatpush.msra.mxu0 %v291
  %565 = vmatpush.msra.mxu0 %v288
  %566 = vmatpush.msra.mxu0 %v285
  %567 = vmatpush.msra.mxu0 %v282
  %568 = vmatpush.msra.mxu0 %v279
  %569 = vmatpush.msra.mxu0 %v276
  %570 = vmatpush.msra.mxu0 %v273
  %571 = vmatpush.msra.mxu0 %v270
  %572 = vmatpush.msra.mxu0 %v267
  %573 = vmatpush.msra.mxu0 %v264
  %574 = vmatpush.msra.mxu0 %v261
  %575 = vmatpush.msra.mxu0 %v258
  %576 = vmatpush.msra.mxu0 %v255
  %577 = vmatpush.msra.mxu0 %v252
  %578 = vmatpush.msra.mxu0 %v249
  %579 = vmatpush.msra.mxu0 %v246
  %580 = vmatmul.f32.gmra.mxu0 %v543
  %v581 = vpop.f32.mrf.mxu0
  %v582 = vadd.f32 %v297, %v581
  %583 = vdwg.mxu0
  %584 = vmatpush.msra.mxu0 %v292
  %585 = vmatpush.msra.mxu0 %v289
  %586 = vmatpush.msra.mxu0 %v286
  %587 = vmatpush.msra.mxu0 %v283
  %588 = vmatpush.msra.mxu0 %v280
  %589 = vmatpush.msra.mxu0 %v277
  %590 = vmatpush.msra.mxu0 %v274
  %591 = vmatpush.msra.mxu0 %v271
  %592 = vmatpush.msra.mxu0 %v268
  %593 = vmatpush.msra.mxu0 %v265
  %594 = vmatpush.msra.mxu0 %v262
  %595 = vmatpush.msra.mxu0 %v259
  %596 = vmatpush.msra.mxu0 %v256
  %597 = vmatpush.msra.mxu0 %v253
  %598 = vmatpush.msra.mxu0 %v250
  %599 = vmatpush.msra.mxu0 %v247
  %600 = vmatmul.f32.gmra.mxu0 %v543
  %v601 = vpop.f32.mrf.mxu0
  %v602 = vadd.f32 %v298, %v601
  %603 = vdwg.mxu0
  %v604 = vadd.f32 %v138, %v562
  %v605 = vxor.u32 %v604, 2147483648
  %v606 = vmul.f32 %v605, 1.442695
  %v607 = vpow.pop %v606
  %v608 = vadd.f32 %v607, 1.0
  %v609 = vrcp.pop %v608
  %v610 = vmul.f32 %v608, %v609
  %v611 = vsub.f32 1.0, %v610
  %v612 = vmul.f32 %v609, %v611
  %v613 = vadd.f32 %v609, %v612
  %vm614 = vweird.f32 %v608
  %vm615 = vweird.f32 %v609
  %vm616 = vmor %vm614, %vm615
  %v617 = vsel %vm616, %v609, %v613
  %v618 = vand.u32 2147483647, %v608
  %vm619 = vcmp.eq.f32.partialorder %v618, 8.507059e+37
  %v620 = vand.u32 %v608, 2147483648
  %v621 = vor.u32 1.1754944e-38, %v620
  %v622 = vsel %vm619, %v621, %v617
  %v623 = vmul.f32 1.0, %v622
  %v624 = vadd.f32 %v179, %v582
  %v625 = vxor.u32 %v624, 2147483648
  %v626 = vmul.f32 %v625, 1.442695
  %v627 = vpow.pop %v626
  %v628 = vadd.f32 %v627, 1.0
  %v629 = vrcp.pop %v628
  %v630 = vmul.f32 %v628, %v629
  %v631 = vsub.f32 1.0, %v630
  %v632 = vmul.f32 %v629, %v631
  %v633 = vadd.f32 %v629, %v632
  %vm634 = vweird.f32 %v628
  %vm635 = vweird.f32 %v629
  %vm636 = vmor %vm634, %vm635
  %v637 = vsel %vm636, %v629, %v633
  %v638 = vand.u32 2147483647, %v628
  %vm639 = vcmp.eq.f32.partialorder %v638, 8.507059e+37
  %v640 = vand.u32 %v628, 2147483648
  %v641 = vor.u32 1.1754944e-38, %v640
  %v642 = vsel %vm639, %v641, %v637
  %v643 = vmul.f32 1.0, %v642
  %v644 = vmul.f32 %v623, %v602
  %v645 = vadd.f32 %v220, %v644
  %v646 = vtanh.pop %v645
  %v647 = vsub.f32 1.0, %v643
  %v648 = vmul.f32 %v647, %v646
  %v649 = vmul.f32 %v643, %v543
  %v650 = vadd.f32 %v648, %v649
  %652 = vset.pattern.permute.xlu0 0
  %653 = vperm.xlu0 %652, %v239
  %v654 = vpop.permute.xlu0 %653
  %v656 = vmul.f32 %v654, %v650
  %v657 = vsub.f32 1.0, %v239
  %659 = vset.pattern.permute.xlu0 0
  %660 = vperm.xlu0 %659, %v657
  %v661 = vpop.permute.xlu0 %660
  %v663 = vmul.f32 %v661, %v543
  %v664 = vadd.f32 %v656, %v663
  %665 = vmatpush.msra.mxu0 %v290
  %666 = vmatpush.msra.mxu0 %v287
  %667 = vmatpush.msra.mxu0 %v284
  %668 = vmatpush.msra.mxu0 %v281
  %669 = vmatpush.msra.mxu0 %v278
  %670 = vmatpush.msra.mxu0 %v275
  %671 = vmatpush.msra.mxu0 %v272
  %672 = vmatpush.msra.mxu0 %v269
  %673 = vmatpush.msra.mxu0 %v266
  %674 = vmatpush.msra.mxu0 %v263
  %675 = vmatpush.msra.mxu0 %v260
  %676 = vmatpush.msra.mxu0 %v257
  %677 = vmatpush.msra.mxu0 %v254
  %678 = vmatpush.msra.mxu0 %v251
  %679 = vmatpush.msra.mxu0 %v248
  %680 = vmatpush.msra.mxu0 %v245
  %681 = vmatmul.f32.gmra.mxu0 %v664
  %v682 = vpop.f32.mrf.mxu0
  %v683 = vadd.f32 %v296, %v682
  %684 = vdwg.mxu0
  %685 = vmatpush.msra.mxu0 %v291
  %686 = vmatpush.msra.mxu0 %v288
  %687 = vmatpush.msra.mxu0 %v285
  %688 = vmatpush.msra.mxu0 %v282
  %689 = vmatpush.msra.mxu0 %v279
  %690 = vmatpush.msra.mxu0 %v276
  %691 = vmatpush.msra.mxu0 %v273
  %692 = vmatpush.msra.mxu0 %v270
  %693 = vmatpush.msra.mxu0 %v267
  %694 = vmatpush.msra.mxu0 %v264
  %695 = vmatpush.msra.mxu0 %v261
  %696 = vmatpush.msra.mxu0 %v258
  %697 = vmatpush.msra.mxu0 %v255
  %698 = vmatpush.msra.mxu0 %v252
  %699 = vmatpush.msra.mxu0 %v249
  %700 = vmatpush.msra.mxu0 %v246
  %701 = vmatmul.f32.gmra.mxu0 %v664
  %v702 = vpop.f32.mrf.mxu0
  %v703 = vadd.f32 %v297, %v702
  %704 = vdwg.mxu0
  %705 = vmatpush.msra.mxu0 %v292
  %706 = vmatpush.msra.mxu0 %v289
  %707 = vmatpush.msra.mxu0 %v286
  %708 = vmatpush.msra.mxu0 %v283
  %709 = vmatpush.msra.mxu0 %v280
  %710 = vmatpush.msra.mxu0 %v277
  %711 = vmatpush.msra.mxu0 %v274
  %712 = vmatpush.msra.mxu0 %v271
  %713 = vmatpush.msra.mxu0 %v268
  %714 = vmatpush.msra.mxu0 %v265
  %715 = vmatpush.msra.mxu0 %v262
  %716 = vmatpush.msra.mxu0 %v259
  %717 = vmatpush.msra.mxu0 %v256
  %718 = vmatpush.msra.mxu0 %v253
  %719 = vmatpush.msra.mxu0 %v250
  %720 = vmatpush.msra.mxu0 %v247
  %721 = vmatmul.f32.gmra.mxu0 %v664
  %v722 = vpop.f32.mrf.mxu0
  %v723 = vadd.f32 %v298, %v722
  %724 = vdwg.mxu0
  %v725 = vadd.f32 %v141, %v683
  %v726 = vxor.u32 %v725, 2147483648
  %v727 = vmul.f32 %v726, 1.442695
  %v728 = vpow.pop %v727
  %v729 = vadd.f32 %v728, 1.0
  %v730 = vrcp.pop %v729
  %v731 = vmul.f32 %v729, %v730
  %v732 = vsub.f32 1.0, %v731
  %v733 = vmul.f32 %v730, %v732
  %v734 = vadd.f32 %v730, %v733
  %vm735 = vweird.f32 %v729
  %vm736 = vweird.f32 %v730
  %vm737 = vmor %vm735, %vm736
  %v738 = vsel %vm737, %v730, %v734
  %v739 = vand.u32 2147483647, %v729
  %vm740 = vcmp.eq.f32.partialorder %v739, 8.507059e+37
  %v741 = vand.u32 %v729, 2147483648
  %v742 = vor.u32 1.1754944e-38, %v741
  %v743 = vsel %vm740, %v742, %v738
  %v744 = vmul.f32 1.0, %v743
  %v745 = vadd.f32 %v182, %v703
  %v746 = vxor.u32 %v745, 2147483648
  %v747 = vmul.f32 %v746, 1.442695
  %v748 = vpow.pop %v747
  %v749 = vadd.f32 %v748, 1.0
  %v750 = vrcp.pop %v749
  %v751 = vmul.f32 %v749, %v750
  %v752 = vsub.f32 1.0, %v751
  %v753 = vmul.f32 %v750, %v752
  %v754 = vadd.f32 %v750, %v753
  %vm755 = vweird.f32 %v749
  %vm756 = vweird.f32 %v750
  %vm757 = vmor %vm755, %vm756
  %v758 = vsel %vm757, %v750, %v754
  %v759 = vand.u32 2147483647, %v749
  %vm760 = vcmp.eq.f32.partialorder %v759, 8.507059e+37
  %v761 = vand.u32 %v749, 2147483648
  %v762 = vor.u32 1.1754944e-38, %v761
  %v763 = vsel %vm760, %v762, %v758
  %v764 = vmul.f32 1.0, %v763
  %v765 = vmul.f32 %v744, %v723
  %v766 = vadd.f32 %v223, %v765
  %v767 = vtanh.pop %v766
  %v768 = vsub.f32 1.0, %v764
  %v769 = vmul.f32 %v768, %v767
  %v770 = vmul.f32 %v764, %v664
  %v771 = vadd.f32 %v769, %v770
  %773 = vset.pattern.permute.xlu0 0
  %774 = vperm.xlu0 %773, %v240
  %v775 = vpop.permute.xlu0 %774
  %v777 = vmul.f32 %v775, %v771
  %v778 = vsub.f32 1.0, %v240
  %780 = vset.pattern.permute.xlu0 0
  %781 = vperm.xlu0 %780, %v778
  %v782 = vpop.permute.xlu0 %781
  %v784 = vmul.f32 %v782, %v664
  %v785 = vadd.f32 %v777, %v784
  %786 = vmatpush.msra.mxu0 %v290
  %787 = vmatpush.msra.mxu0 %v287
  %788 = vmatpush.msra.mxu0 %v284
  %789 = vmatpush.msra.mxu0 %v281
  %790 = vmatpush.msra.mxu0 %v278
  %791 = vmatpush.msra.mxu0 %v275
  %792 = vmatpush.msra.mxu0 %v272
  %793 = vmatpush.msra.mxu0 %v269
  %794 = vmatpush.msra.mxu0 %v266
  %795 = vmatpush.msra.mxu0 %v263
  %796 = vmatpush.msra.mxu0 %v260
  %797 = vmatpush.msra.mxu0 %v257
  %798 = vmatpush.msra.mxu0 %v254
  %799 = vmatpush.msra.mxu0 %v251
  %800 = vmatpush.msra.mxu0 %v248
  %801 = vmatpush.msra.mxu0 %v245
  %802 = vmatmul.f32.gmra.mxu0 %v785
  %v803 = vpop.f32.mrf.mxu0
  %v804 = vadd.f32 %v296, %v803
  %805 = vdwg.mxu0
  %806 = vmatpush.msra.mxu0 %v291
  %807 = vmatpush.msra.mxu0 %v288
  %808 = vmatpush.msra.mxu0 %v285
  %809 = vmatpush.msra.mxu0 %v282
  %810 = vmatpush.msra.mxu0 %v279
  %811 = vmatpush.msra.mxu0 %v276
  %812 = vmatpush.msra.mxu0 %v273
  %813 = vmatpush.msra.mxu0 %v270
  %814 = vmatpush.msra.mxu0 %v267
  %815 = vmatpush.msra.mxu0 %v264
  %816 = vmatpush.msra.mxu0 %v261
  %817 = vmatpush.msra.mxu0 %v258
  %818 = vmatpush.msra.mxu0 %v255
  %819 = vmatpush.msra.mxu0 %v252
  %820 = vmatpush.msra.mxu0 %v249
  %821 = vmatpush.msra.mxu0 %v246
  %822 = vmatmul.f32.gmra.mxu0 %v785
  %v823 = vpop.f32.mrf.mxu0
  %v824 = vadd.f32 %v297, %v823
  %825 = vdwg.mxu0
  %826 = vmatpush.msra.mxu0 %v292
  %827 = vmatpush.msra.mxu0 %v289
  %828 = vmatpush.msra.mxu0 %v286
  %829 = vmatpush.msra.mxu0 %v283
  %830 = vmatpush.msra.mxu0 %v280
  %831 = vmatpush.msra.mxu0 %v277
  %832 = vmatpush.msra.mxu0 %v274
  %833 = vmatpush.msra.mxu0 %v271
  %834 = vmatpush.msra.mxu0 %v268
  %835 = vmatpush.msra.mxu0 %v265
  %836 = vmatpush.msra.mxu0 %v262
  %837 = vmatpush.msra.mxu0 %v259
  %838 = vmatpush.msra.mxu0 %v256
  %839 = vmatpush.msra.mxu0 %v253
  %840 = vmatpush.msra.mxu0 %v250
  %841 = vmatpush.msra.mxu0 %v247
  %842 = vmatmul.f32.gmra.mxu0 %v785
  %v843 = vpop.f32.mrf.mxu0
  %v844 = vadd.f32 %v298, %v843
  %845 = vdwg.mxu0
  %v846 = vadd.f32 %v144, %v804
  %v847 = vxor.u32 %v846, 2147483648
  %v848 = vmul.f32 %v847, 1.442695
  %v849 = vpow.pop %v848
  %v850 = vadd.f32 %v849, 1.0
  %v851 = vrcp.pop %v850
  %v852 = vmul.f32 %v850, %v851
  %v853 = vsub.f32 1.0, %v852
  %v854 = vmul.f32 %v851, %v853
  %v855 = vadd.f32 %v851, %v854
  %vm856 = vweird.f32 %v850
  %vm857 = vweird.f32 %v851
  %vm858 = vmor %vm856, %vm857
  %v859 = vsel %vm858, %v851, %v855
  %v860 = vand.u32 2147483647, %v850
  %vm861 = vcmp.eq.f32.partialorder %v860, 8.507059e+37
  %v862 = vand.u32 %v850, 2147483648
  %v863 = vor.u32 1.1754944e-38, %v862
  %v864 = vsel %vm861, %v863, %v859
  %v865 = vmul.f32 1.0, %v864
  %v866 = vadd.f32 %v185, %v824
  %v867 = vxor.u32 %v866, 2147483648
  %v868 = vmul.f32 %v867, 1.442695
  %v869 = vpow.pop %v868
  %v870 = vadd.f32 %v869, 1.0
  %v871 = vrcp.pop %v870
  %v872 = vmul.f32 %v870, %v871
  %v873 = vsub.f32 1.0, %v872
  %v874 = vmul.f32 %v871, %v873
  %v875 = vadd.f32 %v871, %v874
  %vm876 = vweird.f32 %v870
  %vm877 = vweird.f32 %v871
  %vm878 = vmor %vm876, %vm877
  %v879 = vsel %vm878, %v871, %v875
  %v880 = vand.u32 2147483647, %v870
  %vm881 = vcmp.eq.f32.partialorder %v880, 8.507059e+37
  %v882 = vand.u32 %v870, 2147483648
  %v883 = vor.u32 1.1754944e-38, %v882
  %v884 = vsel %vm881, %v883, %v879
  %v885 = vmul.f32 1.0, %v884
  %v886 = vmul.f32 %v865, %v844
  %v887 = vadd.f32 %v226, %v886
  %v888 = vtanh.pop %v887
  %v889 = vsub.f32 1.0, %v885
  %v890 = vmul.f32 %v889, %v888
  %v891 = vmul.f32 %v885, %v785
  %v892 = vadd.f32 %v890, %v891
  %894 = vset.pattern.permute.xlu0 0
  %895 = vperm.xlu0 %894, %v241
  %v896 = vpop.permute.xlu0 %895
  %v898 = vmul.f32 %v896, %v892
  %v899 = vsub.f32 1.0, %v241
  %901 = vset.pattern.permute.xlu0 0
  %902 = vperm.xlu0 %901, %v899
  %v903 = vpop.permute.xlu0 %902
  %v905 = vmul.f32 %v903, %v785
  %v906 = vadd.f32 %v898, %v905
  %907 = vmatpush.msra.mxu0 %v290
  %908 = vmatpush.msra.mxu0 %v287
  %909 = vmatpush.msra.mxu0 %v284
  %910 = vmatpush.msra.mxu0 %v281
  %911 = vmatpush.msra.mxu0 %v278
  %912 = vmatpush.msra.mxu0 %v275
  %913 = vmatpush.msra.mxu0 %v272
  %914 = vmatpush.msra.mxu0 %v269
  %915 = vmatpush.msra.mxu0 %v266
  %916 = vmatpush.msra.mxu0 %v263
  %917 = vmatpush.msra.mxu0 %v260
  %918 = vmatpush.msra.mxu0 %v257
  %919 = vmatpush.msra.mxu0 %v254
  %920 = vmatpush.msra.mxu0 %v251
  %921 = vmatpush.msra.mxu0 %v248
  %922 = vmatpush.msra.mxu0 %v245
  %923 = vmatmul.f32.gmra.mxu0 %v906
  %v924 = vpop.f32.mrf.mxu0
  %v925 = vadd.f32 %v296, %v924
  %926 = vdwg.mxu0
  %927 = vmatpush.msra.mxu0 %v291
  %928 = vmatpush.msra.mxu0 %v288
  %929 = vmatpush.msra.mxu0 %v285
  %930 = vmatpush.msra.mxu0 %v282
  %931 = vmatpush.msra.mxu0 %v279
  %932 = vmatpush.msra.mxu0 %v276
  %933 = vmatpush.msra.mxu0 %v273
  %934 = vmatpush.msra.mxu0 %v270
  %935 = vmatpush.msra.mxu0 %v267
  %936 = vmatpush.msra.mxu0 %v264
  %937 = vmatpush.msra.mxu0 %v261
  %938 = vmatpush.msra.mxu0 %v258
  %939 = vmatpush.msra.mxu0 %v255
  %940 = vmatpush.msra.mxu0 %v252
  %941 = vmatpush.msra.mxu0 %v249
  %942 = vmatpush.msra.mxu0 %v246
  %943 = vmatmul.f32.gmra.mxu0 %v906
  %v944 = vpop.f32.mrf.mxu0
  %v945 = vadd.f32 %v297, %v944
  %946 = vdwg.mxu0
  %947 = vmatpush.msra.mxu0 %v292
  %948 = vmatpush.msra.mxu0 %v289
  %949 = vmatpush.msra.mxu0 %v286
  %950 = vmatpush.msra.mxu0 %v283
  %951 = vmatpush.msra.mxu0 %v280
  %952 = vmatpush.msra.mxu0 %v277
  %953 = vmatpush.msra.mxu0 %v274
  %954 = vmatpush.msra.mxu0 %v271
  %955 = vmatpush.msra.mxu0 %v268
  %956 = vmatpush.msra.mxu0 %v265
  %957 = vmatpush.msra.mxu0 %v262
  %958 = vmatpush.msra.mxu0 %v259
  %959 = vmatpush.msra.mxu0 %v256
  %960 = vmatpush.msra.mxu0 %v253
  %961 = vmatpush.msra.mxu0 %v250
  %962 = vmatpush.msra.mxu0 %v247
  %963 = vmatmul.f32.gmra.mxu0 %v906
  %v964 = vpop.f32.mrf.mxu0
  %v965 = vadd.f32 %v298, %v964
  %966 = vdwg.mxu0
  %v967 = vadd.f32 %v147, %v925
  %v968 = vxor.u32 %v967, 2147483648
  %v969 = vmul.f32 %v968, 1.442695
  %v970 = vpow.pop %v969
  %v971 = vadd.f32 %v970, 1.0
  %v972 = vrcp.pop %v971
  %v973 = vmul.f32 %v971, %v972
  %v974 = vsub.f32 1.0, %v973
  %v975 = vmul.f32 %v972, %v974
  %v976 = vadd.f32 %v972, %v975
  %vm977 = vweird.f32 %v971
  %vm978 = vweird.f32 %v972
  %vm979 = vmor %vm977, %vm978
  %v980 = vsel %vm979, %v972, %v976
  %v981 = vand.u32 2147483647, %v971
  %vm982 = vcmp.eq.f32.partialorder %v981, 8.507059e+37
  %v983 = vand.u32 %v971, 2147483648
  %v984 = vor.u32 1.1754944e-38, %v983
  %v985 = vsel %vm982, %v984, %v980
  %v986 = vmul.f32 1.0, %v985
  %v987 = vadd.f32 %v188, %v945
  %v988 = vxor.u32 %v987, 2147483648
  %v989 = vmul.f32 %v988, 1.442695
  %v990 = vpow.pop %v989
  %v991 = vadd.f32 %v990, 1.0
  %v992 = vrcp.pop %v991
  %v993 = vmul.f32 %v991, %v992
  %v994 = vsub.f32 1.0, %v993
  %v995 = vmul.f32 %v992, %v994
  %v996 = vadd.f32 %v992, %v995
  %vm997 = vweird.f32 %v991
  %vm998 = vweird.f32 %v992
  %vm999 = vmor %vm997, %vm998
  %v1000 = vsel %vm999, %v992, %v996
  %v1001 = vand.u32 2147483647, %v991
  %vm1002 = vcmp.eq.f32.partialorder %v1001, 8.507059e+37
  %v1003 = vand.u32 %v991, 2147483648
  %v1004 = vor.u32 1.1754944e-38, %v1003
  %v1005 = vsel %vm1002, %v1004, %v1000
  %v1006 = vmul.f32 1.0, %v1005
  %v1007 = vmul.f32 %v986, %v965
  %v1008 = vadd.f32 %v229, %v1007
  %v1009 = vtanh.pop %v1008
  %v1010 = vsub.f32 1.0, %v1006
  %v1011 = vmul.f32 %v1010, %v1009
  %v1012 = vmul.f32 %v1006, %v906
  %v1013 = vadd.f32 %v1011, %v1012
  %1015 = vset.pattern.permute.xlu0 0
  %1016 = vperm.xlu0 %1015, %v242
  %v1017 = vpop.permute.xlu0 %1016
  %v1019 = vmul.f32 %v1017, %v1013
  %v1020 = vsub.f32 1.0, %v242
  %1022 = vset.pattern.permute.xlu0 0
  %1023 = vperm.xlu0 %1022, %v1020
  %v1024 = vpop.permute.xlu0 %1023
  %v1026 = vmul.f32 %v1024, %v906
  %v1027 = vadd.f32 %v1019, %v1026
  %1028 = vmatpush.msra.mxu0 %v290
  %1029 = vmatpush.msra.mxu0 %v287
  %1030 = vmatpush.msra.mxu0 %v284
  %1031 = vmatpush.msra.mxu0 %v281
  %1032 = vmatpush.msra.mxu0 %v278
  %1033 = vmatpush.msra.mxu0 %v275
  %1034 = vmatpush.msra.mxu0 %v272
  %1035 = vmatpush.msra.mxu0 %v269
  %1036 = vmatpush.msra.mxu0 %v266
  %1037 = vmatpush.msra.mxu0 %v263
  %1038 = vmatpush.msra.mxu0 %v260
  %1039 = vmatpush.msra.mxu0 %v257
  %1040 = vmatpush.msra.mxu0 %v254
  %1041 = vmatpush.msra.mxu0 %v251
  %1042 = vmatpush.msra.mxu0 %v248
  %1043 = vmatpush.msra.mxu0 %v245
  %1044 = vmatmul.f32.gmra.mxu0 %v1027
  %v1045 = vpop.f32.mrf.mxu0
  %v1046 = vadd.f32 %v296, %v1045
  %1047 = vdwg.mxu0
  %1048 = vmatpush.msra.mxu0 %v291
  %1049 = vmatpush.msra.mxu0 %v288
  %1050 = vmatpush.msra.mxu0 %v285
  %1051 = vmatpush.msra.mxu0 %v282
  %1052 = vmatpush.msra.mxu0 %v279
  %1053 = vmatpush.msra.mxu0 %v276
  %1054 = vmatpush.msra.mxu0 %v273
  %1055 = vmatpush.msra.mxu0 %v270
  %1056 = vmatpush.msra.mxu0 %v267
  %1057 = vmatpush.msra.mxu0 %v264
  %1058 = vmatpush.msra.mxu0 %v261
  %1059 = vmatpush.msra.mxu0 %v258
  %1060 = vmatpush.msra.mxu0 %v255
  %1061 = vmatpush.msra.mxu0 %v252
  %1062 = vmatpush.msra.mxu0 %v249
  %1063 = vmatpush.msra.mxu0 %v246
  %1064 = vmatmul.f32.gmra.mxu0 %v1027
  %v1065 = vpop.f32.mrf.mxu0
  %v1066 = vadd.f32 %v297, %v1065
  %1067 = vdwg.mxu0
  %1068 = vmatpush.msra.mxu0 %v292
  %1069 = vmatpush.msra.mxu0 %v289
  %1070 = vmatpush.msra.mxu0 %v286
  %1071 = vmatpush.msra.mxu0 %v283
  %1072 = vmatpush.msra.mxu0 %v280
  %1073 = vmatpush.msra.mxu0 %v277
  %1074 = vmatpush.msra.mxu0 %v274
  %1075 = vmatpush.msra.mxu0 %v271
  %1076 = vmatpush.msra.mxu0 %v268
  %1077 = vmatpush.msra.mxu0 %v265
  %1078 = vmatpush.msra.mxu0 %v262
  %1079 = vmatpush.msra.mxu0 %v259
  %1080 = vmatpush.msra.mxu0 %v256
  %1081 = vmatpush.msra.mxu0 %v253
  %1082 = vmatpush.msra.mxu0 %v250
  %1083 = vmatpush.msra.mxu0 %v247
  %1084 = vmatmul.f32.gmra.mxu0 %v1027
  %v1085 = vpop.f32.mrf.mxu0
  %v1086 = vadd.f32 %v298, %v1085
  %1087 = vdwg.mxu0
  %v1088 = vadd.f32 %v150, %v1046
  %v1089 = vxor.u32 %v1088, 2147483648
  %v1090 = vmul.f32 %v1089, 1.442695
  %v1091 = vpow.pop %v1090
  %v1092 = vadd.f32 %v1091, 1.0
  %v1093 = vrcp.pop %v1092
  %v1094 = vmul.f32 %v1092, %v1093
  %v1095 = vsub.f32 1.0, %v1094
  %v1096 = vmul.f32 %v1093, %v1095
  %v1097 = vadd.f32 %v1093, %v1096
  %vm1098 = vweird.f32 %v1092
  %vm1099 = vweird.f32 %v1093
  %vm1100 = vmor %vm1098, %vm1099
  %v1101 = vsel %vm1100, %v1093, %v1097
  %v1102 = vand.u32 2147483647, %v1092
  %vm1103 = vcmp.eq.f32.partialorder %v1102, 8.507059e+37
  %v1104 = vand.u32 %v1092, 2147483648
  %v1105 = vor.u32 1.1754944e-38, %v1104
  %v1106 = vsel %vm1103, %v1105, %v1101
  %v1107 = vmul.f32 1.0, %v1106
  %v1108 = vadd.f32 %v191, %v1066
  %v1109 = vxor.u32 %v1108, 2147483648
  %v1110 = vmul.f32 %v1109, 1.442695
  %v1111 = vpow.pop %v1110
  %v1112 = vadd.f32 %v1111, 1.0
  %v1113 = vrcp.pop %v1112
  %v1114 = vmul.f32 %v1112, %v1113
  %v1115 = vsub.f32 1.0, %v1114
  %v1116 = vmul.f32 %v1113, %v1115
  %v1117 = vadd.f32 %v1113, %v1116
  %vm1118 = vweird.f32 %v1112
  %vm1119 = vweird.f32 %v1113
  %vm1120 = vmor %vm1118, %vm1119
  %v1121 = vsel %vm1120, %v1113, %v1117
  %v1122 = vand.u32 2147483647, %v1112
  %vm1123 = vcmp.eq.f32.partialorder %v1122, 8.507059e+37
  %v1124 = vand.u32 %v1112, 2147483648
  %v1125 = vor.u32 1.1754944e-38, %v1124
  %v1126 = vsel %vm1123, %v1125, %v1121
  %v1127 = vmul.f32 1.0, %v1126
  %v1128 = vmul.f32 %v1107, %v1086
  %v1129 = vadd.f32 %v232, %v1128
  %v1130 = vtanh.pop %v1129
  %v1131 = vsub.f32 1.0, %v1127
  %v1132 = vmul.f32 %v1131, %v1130
  %v1133 = vmul.f32 %v1127, %v1027
  %v1134 = vadd.f32 %v1132, %v1133
  %1136 = vset.pattern.permute.xlu0 0
  %1137 = vperm.xlu0 %1136, %v243
  %v1138 = vpop.permute.xlu0 %1137
  %v1140 = vmul.f32 %v1138, %v1134
  %v1141 = vsub.f32 1.0, %v243
  %1143 = vset.pattern.permute.xlu0 0
  %1144 = vperm.xlu0 %1143, %v1141
  %v1145 = vpop.permute.xlu0 %1144
  %v1147 = vmul.f32 %v1145, %v1027
  %v1148 = vadd.f32 %v1140, %v1147
  %1149 = vmatpush.msra.mxu0 %v290
  %1150 = vmatpush.msra.mxu0 %v287
  %1151 = vmatpush.msra.mxu0 %v284
  %1152 = vmatpush.msra.mxu0 %v281
  %1153 = vmatpush.msra.mxu0 %v278
  %1154 = vmatpush.msra.mxu0 %v275
  %1155 = vmatpush.msra.mxu0 %v272
  %1156 = vmatpush.msra.mxu0 %v269
  %1157 = vmatpush.msra.mxu0 %v266
  %1158 = vmatpush.msra.mxu0 %v263
  %1159 = vmatpush.msra.mxu0 %v260
  %1160 = vmatpush.msra.mxu0 %v257
  %1161 = vmatpush.msra.mxu0 %v254
  %1162 = vmatpush.msra.mxu0 %v251
  %1163 = vmatpush.msra.mxu0 %v248
  %1164 = vmatpush.msra.mxu0 %v245
  %1165 = vmatmul.f32.gmra.mxu0 %v1148
  %v1166 = vpop.f32.mrf.mxu0
  %v1167 = vadd.f32 %v296, %v1166
  %1168 = vdwg.mxu0
  %1169 = vmatpush.msra.mxu0 %v291
  %1170 = vmatpush.msra.mxu0 %v288
  %1171 = vmatpush.msra.mxu0 %v285
  %1172 = vmatpush.msra.mxu0 %v282
  %1173 = vmatpush.msra.mxu0 %v279
  %1174 = vmatpush.msra.mxu0 %v276
  %1175 = vmatpush.msra.mxu0 %v273
  %1176 = vmatpush.msra.mxu0 %v270
  %1177 = vmatpush.msra.mxu0 %v267
  %1178 = vmatpush.msra.mxu0 %v264
  %1179 = vmatpush.msra.mxu0 %v261
  %1180 = vmatpush.msra.mxu0 %v258
  %1181 = vmatpush.msra.mxu0 %v255
  %1182 = vmatpush.msra.mxu0 %v252
  %1183 = vmatpush.msra.mxu0 %v249
  %1184 = vmatpush.msra.mxu0 %v246
  %1185 = vmatmul.f32.gmra.mxu0 %v1148
  %v1186 = vpop.f32.mrf.mxu0
  %v1187 = vadd.f32 %v297, %v1186
  %1188 = vdwg.mxu0
  %1189 = vmatpush.msra.mxu0 %v292
  %1190 = vmatpush.msra.mxu0 %v289
  %1191 = vmatpush.msra.mxu0 %v286
  %1192 = vmatpush.msra.mxu0 %v283
  %1193 = vmatpush.msra.mxu0 %v280
  %1194 = vmatpush.msra.mxu0 %v277
  %1195 = vmatpush.msra.mxu0 %v274
  %1196 = vmatpush.msra.mxu0 %v271
  %1197 = vmatpush.msra.mxu0 %v268
  %1198 = vmatpush.msra.mxu0 %v265
  %1199 = vmatpush.msra.mxu0 %v262
  %1200 = vmatpush.msra.mxu0 %v259
  %1201 = vmatpush.msra.mxu0 %v256
  %1202 = vmatpush.msra.mxu0 %v253
  %1203 = vmatpush.msra.mxu0 %v250
  %1204 = vmatpush.msra.mxu0 %v247
  %1205 = vmatmul.f32.gmra.mxu0 %v1148
  %v1206 = vpop.f32.mrf.mxu0
  %v1207 = vadd.f32 %v298, %v1206
  %1208 = vdwg.mxu0
  %v1209 = vadd.f32 %v153, %v1167
  %v1210 = vxor.u32 %v1209, 2147483648
  %v1211 = vmul.f32 %v1210, 1.442695
  %v1212 = vpow.pop %v1211
  %v1213 = vadd.f32 %v1212, 1.0
  %v1214 = vrcp.pop %v1213
  %v1215 = vmul.f32 %v1213, %v1214
  %v1216 = vsub.f32 1.0, %v1215
  %v1217 = vmul.f32 %v1214, %v1216
  %v1218 = vadd.f32 %v1214, %v1217
  %vm1219 = vweird.f32 %v1213
  %vm1220 = vweird.f32 %v1214
  %vm1221 = vmor %vm1219, %vm1220
  %v1222 = vsel %vm1221, %v1214, %v1218
  %v1223 = vand.u32 2147483647, %v1213
  %vm1224 = vcmp.eq.f32.partialorder %v1223, 8.507059e+37
  %v1225 = vand.u32 %v1213, 2147483648
  %v1226 = vor.u32 1.1754944e-38, %v1225
  %v1227 = vsel %vm1224, %v1226, %v1222
  %v1228 = vmul.f32 1.0, %v1227
  %v1229 = vadd.f32 %v194, %v1187
  %v1230 = vxor.u32 %v1229, 2147483648
  %v1231 = vmul.f32 %v1230, 1.442695
  %v1232 = vpow.pop %v1231
  %v1233 = vadd.f32 %v1232, 1.0
  %v1234 = vrcp.pop %v1233
  %v1235 = vmul.f32 %v1233, %v1234
  %v1236 = vsub.f32 1.0, %v1235
  %v1237 = vmul.f32 %v1234, %v1236
  %v1238 = vadd.f32 %v1234, %v1237
  %vm1239 = vweird.f32 %v1233
  %vm1240 = vweird.f32 %v1234
  %vm1241 = vmor %vm1239, %vm1240
  %v1242 = vsel %vm1241, %v1234, %v1238
  %v1243 = vand.u32 2147483647, %v1233
  %vm1244 = vcmp.eq.f32.partialorder %v1243, 8.507059e+37
  %v1245 = vand.u32 %v1233, 2147483648
  %v1246 = vor.u32 1.1754944e-38, %v1245
  %v1247 = vsel %vm1244, %v1246, %v1242
  %v1248 = vmul.f32 1.0, %v1247
  %v1249 = vmul.f32 %v1228, %v1207
  %v1250 = vadd.f32 %v235, %v1249
  %v1251 = vtanh.pop %v1250
  %v1252 = vsub.f32 1.0, %v1248
  %v1253 = vmul.f32 %v1252, %v1251
  %v1254 = vmul.f32 %v1248, %v1148
  %v1255 = vadd.f32 %v1253, %v1254
  %1257 = vset.pattern.permute.xlu0 0
  %1258 = vperm.xlu0 %1257, %v244
  %v1259 = vpop.permute.xlu0 %1258
  %v1261 = vmul.f32 %v1259, %v1255
  %v1262 = vsub.f32 1.0, %v244
  %1264 = vset.pattern.permute.xlu0 0
  %1265 = vperm.xlu0 %1264, %v1262
  %v1266 = vpop.permute.xlu0 %1265
  %v1268 = vmul.f32 %v1266, %v1148
  %v1269 = vadd.f32 %v1261, %v1268
  %1270 = vst [vmem:[%s15] sm:$0xff] %v1269
  %v1271 = vrot.slane %v656, 4
  %vm1272 = vcmask 1047556
  %v1273 = vsel %vm1272, %v1271, %v414
  %v1274 = vrot.slane %v414, 4
  %v1275 = vsel %vm1272, %v656, %v1274
  %v1277 = vunpack.c.l.s4 1983009808
  %v1278 = vunpack.c.0.s8 %v1277
  %v1279 = vperm.slane %v1273, %v1278
  %v1281 = vunpack.c.l.s4 1983009808
  %v1282 = vunpack.c.0.s8 %v1281
  %v1283 = vperm.slane %v1275, %v1282
  %v1284 = vrot.slane %v777, 4
  %v1285 = vsel %vm1272, %v1284, %v535
  %v1286 = vrot.slane %v535, 4
  %v1287 = vsel %vm1272, %v777, %v1286
  %v1289 = vunpack.c.l.s4 1983009808
  %v1290 = vunpack.c.0.s8 %v1289
  %v1291 = vperm.slane %v1285, %v1290
  %v1293 = vunpack.c.l.s4 1983009808
  %v1294 = vunpack.c.0.s8 %v1293
  %v1295 = vperm.slane %v1287, %v1294
  %v1296 = vrot.slane %v1140, 4
  %v1297 = vsel %vm1272, %v1296, %v898
  %v1298 = vrot.slane %v898, 4
  %v1299 = vsel %vm1272, %v1140, %v1298
  %v1301 = vunpack.c.l.s4 1983009808
  %v1302 = vunpack.c.0.s8 %v1301
  %v1303 = vperm.slane %v1297, %v1302
  %v1305 = vunpack.c.l.s4 1983009808
  %v1306 = vunpack.c.0.s8 %v1305
  %v1307 = vperm.slane %v1299, %v1306
  %v1308 = vrot.slane %v1261, 4
  %v1309 = vsel %vm1272, %v1308, %v1019
  %v1310 = vrot.slane %v1019, 4
  %v1311 = vsel %vm1272, %v1261, %v1310
  %v1313 = vunpack.c.l.s4 1983009808
  %v1314 = vunpack.c.0.s8 %v1313
  %v1315 = vperm.slane %v1309, %v1314
  %v1317 = vunpack.c.l.s4 1983009808
  %v1318 = vunpack.c.0.s8 %v1317
  %v1319 = vperm.slane %v1311, %v1318
  %v1320 = vrot.slane %v1291, 4
  %v1321 = vsel %vm1272, %v1320, %v1279
  %v1322 = vrot.slane %v1279, 4
  %v1323 = vsel %vm1272, %v1291, %v1322
  %v1325 = vunpack.c.l.s4 1934713408
  %v1326 = vunpack.c.0.s8 %v1325
  %v1327 = vperm.slane %v1321, %v1326
  %v1329 = vunpack.c.l.s4 1934713408
  %v1330 = vunpack.c.0.s8 %v1329
  %v1331 = vperm.slane %v1323, %v1330
  %v1332 = vrot.slane %v1295, 4
  %v1333 = vsel %vm1272, %v1332, %v1283
  %v1334 = vrot.slane %v1283, 4
  %v1335 = vsel %vm1272, %v1295, %v1334
  %v1337 = vunpack.c.l.s4 1934713408
  %v1338 = vunpack.c.0.s8 %v1337
  %v1339 = vperm.slane %v1333, %v1338
  %v1341 = vunpack.c.l.s4 1934713408
  %v1342 = vunpack.c.0.s8 %v1341
  %v1343 = vperm.slane %v1335, %v1342
  %v1344 = vrot.slane %v1315, 4
  %v1345 = vsel %vm1272, %v1344, %v1303
  %v1346 = vrot.slane %v1303, 4
  %v1347 = vsel %vm1272, %v1315, %v1346
  %v1349 = vunpack.c.l.s4 1934713408
  %v1350 = vunpack.c.0.s8 %v1349
  %v1351 = vperm.slane %v1345, %v1350
  %v1353 = vunpack.c.l.s4 1934713408
  %v1354 = vunpack.c.0.s8 %v1353
  %v1355 = vperm.slane %v1347, %v1354
  %v1356 = vrot.slane %v1319, 4
  %v1357 = vsel %vm1272, %v1356, %v1307
  %v1358 = vrot.slane %v1307, 4
  %v1359 = vsel %vm1272, %v1319, %v1358
  %v1361 = vunpack.c.l.s4 1934713408
  %v1362 = vunpack.c.0.s8 %v1361
  %v1363 = vperm.slane %v1357, %v1362
  %v1365 = vunpack.c.l.s4 1934713408
  %v1366 = vunpack.c.0.s8 %v1365
  %v1367 = vperm.slane %v1359, %v1366
  %v1368 = vrot.slane %v1351, 4
  %v1369 = vsel %vm1272, %v1368, %v1327
  %v1370 = vrot.slane %v1327, 4
  %v1371 = vsel %vm1272, %v1351, %v1370
  %v1372 = vrot.slane %v1355, 4
  %v1373 = vsel %vm1272, %v1372, %v1331
  %v1374 = vrot.slane %v1331, 4
  %v1375 = vsel %vm1272, %v1355, %v1374
  %v1376 = vrot.slane %v1363, 4
  %v1377 = vsel %vm1272, %v1376, %v1339
  %v1378 = vrot.slane %v1339, 4
  %v1379 = vsel %vm1272, %v1363, %v1378
  %v1380 = vrot.slane %v1367, 4
  %v1381 = vsel %vm1272, %v1380, %v1343
  %v1382 = vrot.slane %v1343, 4
  %v1383 = vsel %vm1272, %v1367, %v1382
  %v1384 = vld [vmem:[%s3] sm:$0xff]
  %v1385 = vld [vmem:[%s3 + $0x8] sm:$0xff]
  %v1386 = vld [vmem:[%s3 + $0x10] sm:$0xff]
  %v1387 = vld [vmem:[%s3 + $0x18] sm:$0xff]
  %v1388 = vld [vmem:[%s3 + $0x20] sm:$0xff]
  %v1389 = vld [vmem:[%s3 + $0x28] sm:$0xff]
  %v1390 = vld [vmem:[%s3 + $0x30] sm:$0xff]
  %v1391 = vld [vmem:[%s3 + $0x38] sm:$0xff]
  %v1392 = vld [vmem:[%s3 + $0x40] sm:$0xff]
  %v1393 = vld [vmem:[%s3 + $0x48] sm:$0xff]
  %v1394 = vld [vmem:[%s3 + $0x50] sm:$0xff]
  %v1395 = vld [vmem:[%s3 + $0x58] sm:$0xff]
  %v1396 = vld [vmem:[%s3 + $0x60] sm:$0xff]
  %v1397 = vld [vmem:[%s3 + $0x68] sm:$0xff]
  %v1398 = vld [vmem:[%s3 + $0x70] sm:$0xff]
  %v1399 = vld [vmem:[%s3 + $0x78] sm:$0xff]
  %v1400 = vld [vmem:[%s3 + $0x80] sm:$0xff]
  %v1401 = vld [vmem:[%s3 + $0x88] sm:$0xff]
  %v1402 = vld [vmem:[%s3 + $0x90] sm:$0xff]
  %v1403 = vld [vmem:[%s3 + $0x98] sm:$0xff]
  %v1404 = vld [vmem:[%s3 + $0xa0] sm:$0xff]
  %v1405 = vld [vmem:[%s3 + $0xa8] sm:$0xff]
  %v1406 = vld [vmem:[%s3 + $0xb0] sm:$0xff]
  %v1407 = vld [vmem:[%s3 + $0xb8] sm:$0xff]
  %v1408 = vld [vmem:[%s3 + $0xc0] sm:$0xff]
  %v1409 = vld [vmem:[%s3 + $0xc8] sm:$0xff]
  %v1410 = vld [vmem:[%s3 + $0xd0] sm:$0xff]
  %v1411 = vld [vmem:[%s3 + $0xd8] sm:$0xff]
  %v1412 = vld [vmem:[%s3 + $0xe0] sm:$0xff]
  %v1413 = vld [vmem:[%s3 + $0xe8] sm:$0xff]
  %v1414 = vld [vmem:[%s3 + $0xf0] sm:$0xff]
  %v1415 = vld [vmem:[%s3 + $0xf8] sm:$0xff]
  %v1416 = vld [vmem:[%s3 + $0x100] sm:$0xff]
  %v1417 = vld [vmem:[%s3 + $0x108] sm:$0xff]
  %v1418 = vld [vmem:[%s3 + $0x110] sm:$0xff]
  %v1419 = vld [vmem:[%s3 + $0x118] sm:$0xff]
  %v1420 = vld [vmem:[%s3 + $0x120] sm:$0xff]
  %v1421 = vld [vmem:[%s3 + $0x128] sm:$0xff]
  %v1422 = vld [vmem:[%s3 + $0x130] sm:$0xff]
  %v1423 = vld [vmem:[%s3 + $0x138] sm:$0xff]
  %v1424 = vld [vmem:[%s3 + $0x140] sm:$0xff]
  %v1425 = vld [vmem:[%s3 + $0x148] sm:$0xff]
  %v1426 = vld [vmem:[%s3 + $0x150] sm:$0xff]
  %v1427 = vld [vmem:[%s3 + $0x158] sm:$0xff]
  %v1428 = vld [vmem:[%s3 + $0x160] sm:$0xff]
  %v1429 = vld [vmem:[%s3 + $0x168] sm:$0xff]
  %v1430 = vld [vmem:[%s3 + $0x170] sm:$0xff]
  %v1431 = vld [vmem:[%s3 + $0x178] sm:$0xff]
  %v1432 = vld [vmem:[%s3 + $0x180] sm:$0xff]
  %v1433 = vld [vmem:[%s3 + $0x188] sm:$0xff]
  %v1434 = vld [vmem:[%s3 + $0x190] sm:$0xff]
  %v1435 = vld [vmem:[%s3 + $0x198] sm:$0xff]
  %v1436 = vld [vmem:[%s3 + $0x1a0] sm:$0xff]
  %v1437 = vld [vmem:[%s3 + $0x1a8] sm:$0xff]
  %v1438 = vld [vmem:[%s3 + $0x1b0] sm:$0xff]
  %v1439 = vld [vmem:[%s3 + $0x1b8] sm:$0xff]
  %v1440 = vld [vmem:[%s3 + $0x1c0] sm:$0xff]
  %v1441 = vld [vmem:[%s3 + $0x1c8] sm:$0xff]
  %v1442 = vld [vmem:[%s3 + $0x1d0] sm:$0xff]
  %v1443 = vld [vmem:[%s3 + $0x1d8] sm:$0xff]
  %v1444 = vld [vmem:[%s3 + $0x1e0] sm:$0xff]
  %v1445 = vld [vmem:[%s3 + $0x1e8] sm:$0xff]
  %v1446 = vld [vmem:[%s3 + $0x1f0] sm:$0xff]
  %v1447 = vld [vmem:[%s3 + $0x1f8] sm:$0xff]
  %v1448 = vld [vmem:[%s3 + $0x200] sm:$0xff]
  %v1449 = vld [vmem:[%s3 + $0x208] sm:$0xff]
  %v1450 = vld [vmem:[%s3 + $0x210] sm:$0xff]
  %v1451 = vld [vmem:[%s3 + $0x218] sm:$0xff]
  %v1452 = vld [vmem:[%s3 + $0x220] sm:$0xff]
  %v1453 = vld [vmem:[%s3 + $0x228] sm:$0xff]
  %v1454 = vld [vmem:[%s3 + $0x230] sm:$0xff]
  %v1455 = vld [vmem:[%s3 + $0x238] sm:$0xff]
  %v1456 = vld [vmem:[%s3 + $0x240] sm:$0xff]
  %v1457 = vld [vmem:[%s3 + $0x248] sm:$0xff]
  %v1458 = vld [vmem:[%s3 + $0x250] sm:$0xff]
  %v1459 = vld [vmem:[%s3 + $0x258] sm:$0xff]
  %v1460 = vld [vmem:[%s3 + $0x260] sm:$0xff]
  %v1461 = vld [vmem:[%s3 + $0x268] sm:$0xff]
  %v1462 = vld [vmem:[%s3 + $0x270] sm:$0xff]
  %v1463 = vld [vmem:[%s3 + $0x278] sm:$0xff]
  %v1464 = vld [vmem:[%s3 + $0x280] sm:$0xff]
  %v1465 = vld [vmem:[%s3 + $0x288] sm:$0xff]
  %v1466 = vld [vmem:[%s3 + $0x290] sm:$0xff]
  %v1467 = vld [vmem:[%s3 + $0x298] sm:$0xff]
  %v1468 = vld [vmem:[%s3 + $0x2a0] sm:$0xff]
  %v1469 = vld [vmem:[%s3 + $0x2a8] sm:$0xff]
  %v1470 = vld [vmem:[%s3 + $0x2b0] sm:$0xff]
  %v1471 = vld [vmem:[%s3 + $0x2b8] sm:$0xff]
  %v1472 = vld [vmem:[%s3 + $0x2c0] sm:$0xff]
  %v1473 = vld [vmem:[%s3 + $0x2c8] sm:$0xff]
  %v1474 = vld [vmem:[%s3 + $0x2d0] sm:$0xff]
  %v1475 = vld [vmem:[%s3 + $0x2d8] sm:$0xff]
  %v1476 = vld [vmem:[%s3 + $0x2e0] sm:$0xff]
  %v1477 = vld [vmem:[%s3 + $0x2e8] sm:$0xff]
  %v1478 = vld [vmem:[%s3 + $0x2f0] sm:$0xff]
  %v1479 = vld [vmem:[%s3 + $0x2f8] sm:$0xff]
  %v1480 = vld [vmem:[%s3 + $0x300] sm:$0xff]
  %v1481 = vld [vmem:[%s3 + $0x308] sm:$0xff]
  %v1482 = vld [vmem:[%s3 + $0x310] sm:$0xff]
  %v1483 = vld [vmem:[%s3 + $0x318] sm:$0xff]
  %v1484 = vld [vmem:[%s3 + $0x320] sm:$0xff]
  %v1485 = vld [vmem:[%s3 + $0x328] sm:$0xff]
  %v1486 = vld [vmem:[%s3 + $0x330] sm:$0xff]
  %v1487 = vld [vmem:[%s3 + $0x338] sm:$0xff]
  %v1488 = vld [vmem:[%s3 + $0x340] sm:$0xff]
  %v1489 = vld [vmem:[%s3 + $0x348] sm:$0xff]
  %v1490 = vld [vmem:[%s3 + $0x350] sm:$0xff]
  %v1491 = vld [vmem:[%s3 + $0x358] sm:$0xff]
  %v1492 = vld [vmem:[%s3 + $0x360] sm:$0xff]
  %v1493 = vld [vmem:[%s3 + $0x368] sm:$0xff]
  %v1494 = vld [vmem:[%s3 + $0x370] sm:$0xff]
  %v1495 = vld [vmem:[%s3 + $0x378] sm:$0xff]
  %v1496 = vld [vmem:[%s3 + $0x380] sm:$0xff]
  %v1497 = vld [vmem:[%s3 + $0x388] sm:$0xff]
  %v1498 = vld [vmem:[%s3 + $0x390] sm:$0xff]
  %v1499 = vld [vmem:[%s3 + $0x398] sm:$0xff]
  %v1500 = vld [vmem:[%s3 + $0x3a0] sm:$0xff]
  %v1501 = vld [vmem:[%s3 + $0x3a8] sm:$0xff]
  %v1502 = vld [vmem:[%s3 + $0x3b0] sm:$0xff]
  %v1503 = vld [vmem:[%s3 + $0x3b8] sm:$0xff]
  %v1504 = vld [vmem:[%s3 + $0x3c0] sm:$0xff]
  %v1505 = vld [vmem:[%s3 + $0x3c8] sm:$0xff]
  %v1506 = vld [vmem:[%s3 + $0x3d0] sm:$0xff]
  %v1507 = vld [vmem:[%s3 + $0x3d8] sm:$0xff]
  %v1508 = vld [vmem:[%s3 + $0x3e0] sm:$0xff]
  %v1509 = vld [vmem:[%s3 + $0x3e8] sm:$0xff]
  %v1510 = vld [vmem:[%s3 + $0x3f0] sm:$0xff]
  %v1511 = vld [vmem:[%s3 + $0x3f8] sm:$0xff]
  %v1512 = vld [vmem:[%s8] sm:$0xff]
  %v1513 = vld [vmem:[%s8 + $0x8] sm:$0xff]
  %v1514 = vld [vmem:[%s8 + $0x10] sm:$0xff]
  %v1515 = vld [vmem:[%s8 + $0x18] sm:$0xff]
  %v1516 = vld [vmem:[%s8 + $0x20] sm:$0xff]
  %v1517 = vld [vmem:[%s8 + $0x28] sm:$0xff]
  %v1518 = vld [vmem:[%s8 + $0x30] sm:$0xff]
  %v1519 = vld [vmem:[%s8 + $0x38] sm:$0xff]
  %v1520 = vld [vmem:[%s8 + $0x40] sm:$0xff]
  %v1521 = vld [vmem:[%s8 + $0x48] sm:$0xff]
  %v1522 = vld [vmem:[%s8 + $0x50] sm:$0xff]
  %v1523 = vld [vmem:[%s8 + $0x58] sm:$0xff]
  %v1524 = vld [vmem:[%s8 + $0x60] sm:$0xff]
  %v1525 = vld [vmem:[%s8 + $0x68] sm:$0xff]
  %v1526 = vld [vmem:[%s8 + $0x70] sm:$0xff]
  %v1527 = vld [vmem:[%s8 + $0x78] sm:$0xff]
  %1528 = vmatpush.msra.mxu0 %v1527
  %1529 = vmatpush.msra.mxu0 %v1526
  %1530 = vmatpush.msra.mxu0 %v1525
  %1531 = vmatpush.msra.mxu0 %v1524
  %1532 = vmatpush.msra.mxu0 %v1523
  %1533 = vmatpush.msra.mxu0 %v1522
  %1534 = vmatpush.msra.mxu0 %v1521
  %1535 = vmatpush.msra.mxu0 %v1520
  %1536 = vmatpush.msra.mxu0 %v1519
  %1537 = vmatpush.msra.mxu0 %v1518
  %1538 = vmatpush.msra.mxu0 %v1517
  %1539 = vmatpush.msra.mxu0 %v1516
  %1540 = vmatpush.msra.mxu0 %v1515
  %1541 = vmatpush.msra.mxu0 %v1514
  %1542 = vmatpush.msra.mxu0 %v1513
  %1543 = vmatpush.msra.mxu0 %v1512
  %1544 = vmatmul.f32.gmra.mxu0 %v1384
  %v1545 = vpop.f32.mrf.mxu0
  %v1546 = vadd.f32 0.0, %v1545
  %1547 = vmatmul.f32.gmra.mxu0 %v1385
  %v1548 = vpop.f32.mrf.mxu0
  %v1549 = vadd.f32 0.0, %v1548
  %1550 = vmatmul.f32.gmra.mxu0 %v1386
  %v1551 = vpop.f32.mrf.mxu0
  %v1552 = vadd.f32 0.0, %v1551
  %1553 = vmatmul.f32.gmra.mxu0 %v1387
  %v1554 = vpop.f32.mrf.mxu0
  %v1555 = vadd.f32 0.0, %v1554
  %1556 = vmatmul.f32.gmra.mxu0 %v1388
  %v1557 = vpop.f32.mrf.mxu0
  %v1558 = vadd.f32 0.0, %v1557
  %1559 = vmatmul.f32.gmra.mxu0 %v1389
  %v1560 = vpop.f32.mrf.mxu0
  %v1561 = vadd.f32 0.0, %v1560
  %1562 = vmatmul.f32.gmra.mxu0 %v1390
  %v1563 = vpop.f32.mrf.mxu0
  %v1564 = vadd.f32 0.0, %v1563
  %1565 = vmatmul.f32.gmra.mxu0 %v1391
  %v1566 = vpop.f32.mrf.mxu0
  %v1567 = vadd.f32 0.0, %v1566
  %1568 = vmatmul.f32.gmra.mxu0 %v1392
  %v1569 = vpop.f32.mrf.mxu0
  %v1570 = vadd.f32 0.0, %v1569
  %1571 = vmatmul.f32.gmra.mxu0 %v1393
  %v1572 = vpop.f32.mrf.mxu0
  %v1573 = vadd.f32 0.0, %v1572
  %1574 = vmatmul.f32.gmra.mxu0 %v1394
  %v1575 = vpop.f32.mrf.mxu0
  %v1576 = vadd.f32 0.0, %v1575
  %1577 = vmatmul.f32.gmra.mxu0 %v1395
  %v1578 = vpop.f32.mrf.mxu0
  %v1579 = vadd.f32 0.0, %v1578
  %1580 = vmatmul.f32.gmra.mxu0 %v1396
  %v1581 = vpop.f32.mrf.mxu0
  %v1582 = vadd.f32 0.0, %v1581
  %1583 = vmatmul.f32.gmra.mxu0 %v1397
  %v1584 = vpop.f32.mrf.mxu0
  %v1585 = vadd.f32 0.0, %v1584
  %1586 = vmatmul.f32.gmra.mxu0 %v1398
  %v1587 = vpop.f32.mrf.mxu0
  %v1588 = vadd.f32 0.0, %v1587
  %1589 = vmatmul.f32.gmra.mxu0 %v1399
  %v1590 = vpop.f32.mrf.mxu0
  %v1591 = vadd.f32 0.0, %v1590
  %1592 = vmatmul.f32.gmra.mxu0 %v1400
  %v1593 = vpop.f32.mrf.mxu0
  %v1594 = vadd.f32 0.0, %v1593
  %1595 = vmatmul.f32.gmra.mxu0 %v1401
  %v1596 = vpop.f32.mrf.mxu0
  %v1597 = vadd.f32 0.0, %v1596
  %1598 = vmatmul.f32.gmra.mxu0 %v1402
  %v1599 = vpop.f32.mrf.mxu0
  %v1600 = vadd.f32 0.0, %v1599
  %1601 = vmatmul.f32.gmra.mxu0 %v1403
  %v1602 = vpop.f32.mrf.mxu0
  %v1603 = vadd.f32 0.0, %v1602
  %1604 = vmatmul.f32.gmra.mxu0 %v1404
  %v1605 = vpop.f32.mrf.mxu0
  %v1606 = vadd.f32 0.0, %v1605
  %1607 = vmatmul.f32.gmra.mxu0 %v1405
  %v1608 = vpop.f32.mrf.mxu0
  %v1609 = vadd.f32 0.0, %v1608
  %1610 = vmatmul.f32.gmra.mxu0 %v1406
  %v1611 = vpop.f32.mrf.mxu0
  %v1612 = vadd.f32 0.0, %v1611
  %1613 = vmatmul.f32.gmra.mxu0 %v1407
  %v1614 = vpop.f32.mrf.mxu0
  %v1615 = vadd.f32 0.0, %v1614
  %1616 = vmatmul.f32.gmra.mxu0 %v1408
  %v1617 = vpop.f32.mrf.mxu0
  %v1618 = vadd.f32 0.0, %v1617
  %1619 = vmatmul.f32.gmra.mxu0 %v1409
  %v1620 = vpop.f32.mrf.mxu0
  %v1621 = vadd.f32 0.0, %v1620
  %1622 = vmatmul.f32.gmra.mxu0 %v1410
  %v1623 = vpop.f32.mrf.mxu0
  %v1624 = vadd.f32 0.0, %v1623
  %1625 = vmatmul.f32.gmra.mxu0 %v1411
  %v1626 = vpop.f32.mrf.mxu0
  %v1627 = vadd.f32 0.0, %v1626
  %1628 = vmatmul.f32.gmra.mxu0 %v1412
  %v1629 = vpop.f32.mrf.mxu0
  %v1630 = vadd.f32 0.0, %v1629
  %1631 = vmatmul.f32.gmra.mxu0 %v1413
  %v1632 = vpop.f32.mrf.mxu0
  %v1633 = vadd.f32 0.0, %v1632
  %1634 = vmatmul.f32.gmra.mxu0 %v1414
  %v1635 = vpop.f32.mrf.mxu0
  %v1636 = vadd.f32 0.0, %v1635
  %1637 = vmatmul.f32.gmra.mxu0 %v1415
  %v1638 = vpop.f32.mrf.mxu0
  %v1639 = vadd.f32 0.0, %v1638
  %1640 = vmatmul.f32.gmra.mxu0 %v1416
  %v1641 = vpop.f32.mrf.mxu0
  %v1642 = vadd.f32 0.0, %v1641
  %1643 = vmatmul.f32.gmra.mxu0 %v1417
  %v1644 = vpop.f32.mrf.mxu0
  %v1645 = vadd.f32 0.0, %v1644
  %1646 = vmatmul.f32.gmra.mxu0 %v1418
  %v1647 = vpop.f32.mrf.mxu0
  %v1648 = vadd.f32 0.0, %v1647
  %1649 = vmatmul.f32.gmra.mxu0 %v1419
  %v1650 = vpop.f32.mrf.mxu0
  %v1651 = vadd.f32 0.0, %v1650
  %1652 = vmatmul.f32.gmra.mxu0 %v1420
  %v1653 = vpop.f32.mrf.mxu0
  %v1654 = vadd.f32 0.0, %v1653
  %1655 = vmatmul.f32.gmra.mxu0 %v1421
  %v1656 = vpop.f32.mrf.mxu0
  %v1657 = vadd.f32 0.0, %v1656
  %1658 = vmatmul.f32.gmra.mxu0 %v1422
  %v1659 = vpop.f32.mrf.mxu0
  %v1660 = vadd.f32 0.0, %v1659
  %1661 = vmatmul.f32.gmra.mxu0 %v1423
  %v1662 = vpop.f32.mrf.mxu0
  %v1663 = vadd.f32 0.0, %v1662
  %1664 = vmatmul.f32.gmra.mxu0 %v1424
  %v1665 = vpop.f32.mrf.mxu0
  %v1666 = vadd.f32 0.0, %v1665
  %1667 = vmatmul.f32.gmra.mxu0 %v1425
  %v1668 = vpop.f32.mrf.mxu0
  %v1669 = vadd.f32 0.0, %v1668
  %1670 = vmatmul.f32.gmra.mxu0 %v1426
  %v1671 = vpop.f32.mrf.mxu0
  %v1672 = vadd.f32 0.0, %v1671
  %1673 = vmatmul.f32.gmra.mxu0 %v1427
  %v1674 = vpop.f32.mrf.mxu0
  %v1675 = vadd.f32 0.0, %v1674
  %1676 = vmatmul.f32.gmra.mxu0 %v1428
  %v1677 = vpop.f32.mrf.mxu0
  %v1678 = vadd.f32 0.0, %v1677
  %1679 = vmatmul.f32.gmra.mxu0 %v1429
  %v1680 = vpop.f32.mrf.mxu0
  %v1681 = vadd.f32 0.0, %v1680
  %1682 = vmatmul.f32.gmra.mxu0 %v1430
  %v1683 = vpop.f32.mrf.mxu0
  %v1684 = vadd.f32 0.0, %v1683
  %1685 = vmatmul.f32.gmra.mxu0 %v1431
  %v1686 = vpop.f32.mrf.mxu0
  %v1687 = vadd.f32 0.0, %v1686
  %1688 = vmatmul.f32.gmra.mxu0 %v1432
  %v1689 = vpop.f32.mrf.mxu0
  %v1690 = vadd.f32 0.0, %v1689
  %1691 = vmatmul.f32.gmra.mxu0 %v1433
  %v1692 = vpop.f32.mrf.mxu0
  %v1693 = vadd.f32 0.0, %v1692
  %1694 = vmatmul.f32.gmra.mxu0 %v1434
  %v1695 = vpop.f32.mrf.mxu0
  %v1696 = vadd.f32 0.0, %v1695
  %1697 = vmatmul.f32.gmra.mxu0 %v1435
  %v1698 = vpop.f32.mrf.mxu0
  %v1699 = vadd.f32 0.0, %v1698
  %1700 = vmatmul.f32.gmra.mxu0 %v1436
  %v1701 = vpop.f32.mrf.mxu0
  %v1702 = vadd.f32 0.0, %v1701
  %1703 = vmatmul.f32.gmra.mxu0 %v1437
  %v1704 = vpop.f32.mrf.mxu0
  %v1705 = vadd.f32 0.0, %v1704
  %1706 = vmatmul.f32.gmra.mxu0 %v1438
  %v1707 = vpop.f32.mrf.mxu0
  %v1708 = vadd.f32 0.0, %v1707
  %1709 = vmatmul.f32.gmra.mxu0 %v1439
  %v1710 = vpop.f32.mrf.mxu0
  %v1711 = vadd.f32 0.0, %v1710
  %1712 = vmatmul.f32.gmra.mxu0 %v1440
  %v1713 = vpop.f32.mrf.mxu0
  %v1714 = vadd.f32 0.0, %v1713
  %1715 = vmatmul.f32.gmra.mxu0 %v1441
  %v1716 = vpop.f32.mrf.mxu0
  %v1717 = vadd.f32 0.0, %v1716
  %1718 = vmatmul.f32.gmra.mxu0 %v1442
  %v1719 = vpop.f32.mrf.mxu0
  %v1720 = vadd.f32 0.0, %v1719
  %1721 = vmatmul.f32.gmra.mxu0 %v1443
  %v1722 = vpop.f32.mrf.mxu0
  %v1723 = vadd.f32 0.0, %v1722
  %1724 = vmatmul.f32.gmra.mxu0 %v1444
  %v1725 = vpop.f32.mrf.mxu0
  %v1726 = vadd.f32 0.0, %v1725
  %1727 = vmatmul.f32.gmra.mxu0 %v1445
  %v1728 = vpop.f32.mrf.mxu0
  %v1729 = vadd.f32 0.0, %v1728
  %1730 = vmatmul.f32.gmra.mxu0 %v1446
  %v1731 = vpop.f32.mrf.mxu0
  %v1732 = vadd.f32 0.0, %v1731
  %1733 = vmatmul.f32.gmra.mxu0 %v1447
  %v1734 = vpop.f32.mrf.mxu0
  %v1735 = vadd.f32 0.0, %v1734
  %1736 = vmatmul.f32.gmra.mxu0 %v1448
  %v1737 = vpop.f32.mrf.mxu0
  %v1738 = vadd.f32 0.0, %v1737
  %1739 = vmatmul.f32.gmra.mxu0 %v1449
  %v1740 = vpop.f32.mrf.mxu0
  %v1741 = vadd.f32 0.0, %v1740
  %1742 = vmatmul.f32.gmra.mxu0 %v1450
  %v1743 = vpop.f32.mrf.mxu0
  %v1744 = vadd.f32 0.0, %v1743
  %1745 = vmatmul.f32.gmra.mxu0 %v1451
  %v1746 = vpop.f32.mrf.mxu0
  %v1747 = vadd.f32 0.0, %v1746
  %1748 = vmatmul.f32.gmra.mxu0 %v1452
  %v1749 = vpop.f32.mrf.mxu0
  %v1750 = vadd.f32 0.0, %v1749
  %1751 = vmatmul.f32.gmra.mxu0 %v1453
  %v1752 = vpop.f32.mrf.mxu0
  %v1753 = vadd.f32 0.0, %v1752
  %1754 = vmatmul.f32.gmra.mxu0 %v1454
  %v1755 = vpop.f32.mrf.mxu0
  %v1756 = vadd.f32 0.0, %v1755
  %1757 = vmatmul.f32.gmra.mxu0 %v1455
  %v1758 = vpop.f32.mrf.mxu0
  %v1759 = vadd.f32 0.0, %v1758
  %1760 = vmatmul.f32.gmra.mxu0 %v1456
  %v1761 = vpop.f32.mrf.mxu0
  %v1762 = vadd.f32 0.0, %v1761
  %1763 = vmatmul.f32.gmra.mxu0 %v1457
  %v1764 = vpop.f32.mrf.mxu0
  %v1765 = vadd.f32 0.0, %v1764
  %1766 = vmatmul.f32.gmra.mxu0 %v1458
  %v1767 = vpop.f32.mrf.mxu0
  %v1768 = vadd.f32 0.0, %v1767
  %1769 = vmatmul.f32.gmra.mxu0 %v1459
  %v1770 = vpop.f32.mrf.mxu0
  %v1771 = vadd.f32 0.0, %v1770
  %1772 = vmatmul.f32.gmra.mxu0 %v1460
  %v1773 = vpop.f32.mrf.mxu0
  %v1774 = vadd.f32 0.0, %v1773
  %1775 = vmatmul.f32.gmra.mxu0 %v1461
  %v1776 = vpop.f32.mrf.mxu0
  %v1777 = vadd.f32 0.0, %v1776
  %1778 = vmatmul.f32.gmra.mxu0 %v1462
  %v1779 = vpop.f32.mrf.mxu0
  %v1780 = vadd.f32 0.0, %v1779
  %1781 = vmatmul.f32.gmra.mxu0 %v1463
  %v1782 = vpop.f32.mrf.mxu0
  %v1783 = vadd.f32 0.0, %v1782
  %1784 = vmatmul.f32.gmra.mxu0 %v1464
  %v1785 = vpop.f32.mrf.mxu0
  %v1786 = vadd.f32 0.0, %v1785
  %1787 = vmatmul.f32.gmra.mxu0 %v1465
  %v1788 = vpop.f32.mrf.mxu0
  %v1789 = vadd.f32 0.0, %v1788
  %1790 = vmatmul.f32.gmra.mxu0 %v1466
  %v1791 = vpop.f32.mrf.mxu0
  %v1792 = vadd.f32 0.0, %v1791
  %1793 = vmatmul.f32.gmra.mxu0 %v1467
  %v1794 = vpop.f32.mrf.mxu0
  %v1795 = vadd.f32 0.0, %v1794
  %1796 = vmatmul.f32.gmra.mxu0 %v1468
  %v1797 = vpop.f32.mrf.mxu0
  %v1798 = vadd.f32 0.0, %v1797
  %1799 = vmatmul.f32.gmra.mxu0 %v1469
  %v1800 = vpop.f32.mrf.mxu0
  %v1801 = vadd.f32 0.0, %v1800
  %1802 = vmatmul.f32.gmra.mxu0 %v1470
  %v1803 = vpop.f32.mrf.mxu0
  %v1804 = vadd.f32 0.0, %v1803
  %1805 = vmatmul.f32.gmra.mxu0 %v1471
  %v1806 = vpop.f32.mrf.mxu0
  %v1807 = vadd.f32 0.0, %v1806
  %1808 = vmatmul.f32.gmra.mxu0 %v1472
  %v1809 = vpop.f32.mrf.mxu0
  %v1810 = vadd.f32 0.0, %v1809
  %1811 = vmatmul.f32.gmra.mxu0 %v1473
  %v1812 = vpop.f32.mrf.mxu0
  %v1813 = vadd.f32 0.0, %v1812
  %1814 = vmatmul.f32.gmra.mxu0 %v1474
  %v1815 = vpop.f32.mrf.mxu0
  %v1816 = vadd.f32 0.0, %v1815
  %1817 = vmatmul.f32.gmra.mxu0 %v1475
  %v1818 = vpop.f32.mrf.mxu0
  %v1819 = vadd.f32 0.0, %v1818
  %1820 = vmatmul.f32.gmra.mxu0 %v1476
  %v1821 = vpop.f32.mrf.mxu0
  %v1822 = vadd.f32 0.0, %v1821
  %1823 = vmatmul.f32.gmra.mxu0 %v1477
  %v1824 = vpop.f32.mrf.mxu0
  %v1825 = vadd.f32 0.0, %v1824
  %1826 = vmatmul.f32.gmra.mxu0 %v1478
  %v1827 = vpop.f32.mrf.mxu0
  %v1828 = vadd.f32 0.0, %v1827
  %1829 = vmatmul.f32.gmra.mxu0 %v1479
  %v1830 = vpop.f32.mrf.mxu0
  %v1831 = vadd.f32 0.0, %v1830
  %1832 = vmatmul.f32.gmra.mxu0 %v1480
  %v1833 = vpop.f32.mrf.mxu0
  %v1834 = vadd.f32 0.0, %v1833
  %1835 = vmatmul.f32.gmra.mxu0 %v1481
  %v1836 = vpop.f32.mrf.mxu0
  %v1837 = vadd.f32 0.0, %v1836
  %1838 = vmatmul.f32.gmra.mxu0 %v1482
  %v1839 = vpop.f32.mrf.mxu0
  %v1840 = vadd.f32 0.0, %v1839
  %1841 = vmatmul.f32.gmra.mxu0 %v1483
  %v1842 = vpop.f32.mrf.mxu0
  %v1843 = vadd.f32 0.0, %v1842
  %1844 = vmatmul.f32.gmra.mxu0 %v1484
  %v1845 = vpop.f32.mrf.mxu0
  %v1846 = vadd.f32 0.0, %v1845
  %1847 = vmatmul.f32.gmra.mxu0 %v1485
  %v1848 = vpop.f32.mrf.mxu0
  %v1849 = vadd.f32 0.0, %v1848
  %1850 = vmatmul.f32.gmra.mxu0 %v1486
  %v1851 = vpop.f32.mrf.mxu0
  %v1852 = vadd.f32 0.0, %v1851
  %1853 = vmatmul.f32.gmra.mxu0 %v1487
  %v1854 = vpop.f32.mrf.mxu0
  %v1855 = vadd.f32 0.0, %v1854
  %1856 = vmatmul.f32.gmra.mxu0 %v1488
  %v1857 = vpop.f32.mrf.mxu0
  %v1858 = vadd.f32 0.0, %v1857
  %1859 = vmatmul.f32.gmra.mxu0 %v1489
  %v1860 = vpop.f32.mrf.mxu0
  %v1861 = vadd.f32 0.0, %v1860
  %1862 = vmatmul.f32.gmra.mxu0 %v1490
  %v1863 = vpop.f32.mrf.mxu0
  %v1864 = vadd.f32 0.0, %v1863
  %1865 = vmatmul.f32.gmra.mxu0 %v1491
  %v1866 = vpop.f32.mrf.mxu0
  %v1867 = vadd.f32 0.0, %v1866
  %1868 = vmatmul.f32.gmra.mxu0 %v1492
  %v1869 = vpop.f32.mrf.mxu0
  %v1870 = vadd.f32 0.0, %v1869
  %1871 = vmatmul.f32.gmra.mxu0 %v1493
  %v1872 = vpop.f32.mrf.mxu0
  %v1873 = vadd.f32 0.0, %v1872
  %1874 = vmatmul.f32.gmra.mxu0 %v1494
  %v1875 = vpop.f32.mrf.mxu0
  %v1876 = vadd.f32 0.0, %v1875
  %1877 = vmatmul.f32.gmra.mxu0 %v1495
  %v1878 = vpop.f32.mrf.mxu0
  %v1879 = vadd.f32 0.0, %v1878
  %1880 = vmatmul.f32.gmra.mxu0 %v1496
  %v1881 = vpop.f32.mrf.mxu0
  %v1882 = vadd.f32 0.0, %v1881
  %1883 = vmatmul.f32.gmra.mxu0 %v1497
  %v1884 = vpop.f32.mrf.mxu0
  %v1885 = vadd.f32 0.0, %v1884
  %1886 = vmatmul.f32.gmra.mxu0 %v1498
  %v1887 = vpop.f32.mrf.mxu0
  %v1888 = vadd.f32 0.0, %v1887
  %1889 = vmatmul.f32.gmra.mxu0 %v1499
  %v1890 = vpop.f32.mrf.mxu0
  %v1891 = vadd.f32 0.0, %v1890
  %1892 = vmatmul.f32.gmra.mxu0 %v1500
  %v1893 = vpop.f32.mrf.mxu0
  %v1894 = vadd.f32 0.0, %v1893
  %1895 = vmatmul.f32.gmra.mxu0 %v1501
  %v1896 = vpop.f32.mrf.mxu0
  %v1897 = vadd.f32 0.0, %v1896
  %1898 = vmatmul.f32.gmra.mxu0 %v1502
  %v1899 = vpop.f32.mrf.mxu0
  %v1900 = vadd.f32 0.0, %v1899
  %1901 = vmatmul.f32.gmra.mxu0 %v1503
  %v1902 = vpop.f32.mrf.mxu0
  %v1903 = vadd.f32 0.0, %v1902
  %1904 = vmatmul.f32.gmra.mxu0 %v1504
  %v1905 = vpop.f32.mrf.mxu0
  %v1906 = vadd.f32 0.0, %v1905
  %1907 = vmatmul.f32.gmra.mxu0 %v1505
  %v1908 = vpop.f32.mrf.mxu0
  %v1909 = vadd.f32 0.0, %v1908
  %1910 = vmatmul.f32.gmra.mxu0 %v1506
  %v1911 = vpop.f32.mrf.mxu0
  %v1912 = vadd.f32 0.0, %v1911
  %1913 = vmatmul.f32.gmra.mxu0 %v1507
  %v1914 = vpop.f32.mrf.mxu0
  %v1915 = vadd.f32 0.0, %v1914
  %1916 = vmatmul.f32.gmra.mxu0 %v1508
  %v1917 = vpop.f32.mrf.mxu0
  %v1918 = vadd.f32 0.0, %v1917
  %1919 = vmatmul.f32.gmra.mxu0 %v1509
  %v1920 = vpop.f32.mrf.mxu0
  %v1921 = vadd.f32 0.0, %v1920
  %1922 = vmatmul.f32.gmra.mxu0 %v1510
  %v1923 = vpop.f32.mrf.mxu0
  %v1924 = vadd.f32 0.0, %v1923
  %1925 = vmatmul.f32.gmra.mxu0 %v1511
  %v1926 = vpop.f32.mrf.mxu0
  %v1927 = vadd.f32 0.0, %v1926
  %1928 = vdwg.mxu0
  %1929 = vmatpush.xpose.msra.mxu0 %v1591
  %1930 = vmatpush.xpose.msra.mxu0 %v1588
  %1931 = vmatpush.xpose.msra.mxu0 %v1585
  %1932 = vmatpush.xpose.msra.mxu0 %v1582
  %1933 = vmatpush.xpose.msra.mxu0 %v1579
  %1934 = vmatpush.xpose.msra.mxu0 %v1576
  %1935 = vmatpush.xpose.msra.mxu0 %v1573
  %1936 = vmatpush.xpose.msra.mxu0 %v1570
  %1937 = vmatpush.xpose.msra.mxu0 %v1567
  %1938 = vmatpush.xpose.msra.mxu0 %v1564
  %1939 = vmatpush.xpose.msra.mxu0 %v1561
  %1940 = vmatpush.xpose.msra.mxu0 %v1558
  %1941 = vmatpush.xpose.msra.mxu0 %v1555
  %1942 = vmatpush.xpose.msra.mxu0 %v1552
  %1943 = vmatpush.xpose.msra.mxu0 %v1549
  %1944 = vmatpush.xpose.msra.mxu0 %v1546
  %1945 = vmatmul.f32.gmra.mxu0 %v1369
  %v1946 = vpop.f32.mrf.mxu0
  %v1947 = vadd.f32 0.0, %v1946
  %1948 = vdwg.mxu0
  %1949 = vmatpush.xpose.msra.mxu0 %v1639
  %1950 = vmatpush.xpose.msra.mxu0 %v1636
  %1951 = vmatpush.xpose.msra.mxu0 %v1633
  %1952 = vmatpush.xpose.msra.mxu0 %v1630
  %1953 = vmatpush.xpose.msra.mxu0 %v1627
  %1954 = vmatpush.xpose.msra.mxu0 %v1624
  %1955 = vmatpush.xpose.msra.mxu0 %v1621
  %1956 = vmatpush.xpose.msra.mxu0 %v1618
  %1957 = vmatpush.xpose.msra.mxu0 %v1615
  %1958 = vmatpush.xpose.msra.mxu0 %v1612
  %1959 = vmatpush.xpose.msra.mxu0 %v1609
  %1960 = vmatpush.xpose.msra.mxu0 %v1606
  %1961 = vmatpush.xpose.msra.mxu0 %v1603
  %1962 = vmatpush.xpose.msra.mxu0 %v1600
  %1963 = vmatpush.xpose.msra.mxu0 %v1597
  %1964 = vmatpush.xpose.msra.mxu0 %v1594
  %1965 = vmatmul.f32.gmra.mxu0 %v1371
  %v1966 = vpop.f32.mrf.mxu0
  %v1967 = vadd.f32 0.0, %v1966
  %1968 = vdwg.mxu0
  %1969 = vmatpush.xpose.msra.mxu0 %v1687
  %1970 = vmatpush.xpose.msra.mxu0 %v1684
  %1971 = vmatpush.xpose.msra.mxu0 %v1681
  %1972 = vmatpush.xpose.msra.mxu0 %v1678
  %1973 = vmatpush.xpose.msra.mxu0 %v1675
  %1974 = vmatpush.xpose.msra.mxu0 %v1672
  %1975 = vmatpush.xpose.msra.mxu0 %v1669
  %1976 = vmatpush.xpose.msra.mxu0 %v1666
  %1977 = vmatpush.xpose.msra.mxu0 %v1663
  %1978 = vmatpush.xpose.msra.mxu0 %v1660
  %1979 = vmatpush.xpose.msra.mxu0 %v1657
  %1980 = vmatpush.xpose.msra.mxu0 %v1654
  %1981 = vmatpush.xpose.msra.mxu0 %v1651
  %1982 = vmatpush.xpose.msra.mxu0 %v1648
  %1983 = vmatpush.xpose.msra.mxu0 %v1645
  %1984 = vmatpush.xpose.msra.mxu0 %v1642
  %1985 = vmatmul.f32.gmra.mxu0 %v1373
  %v1986 = vpop.f32.mrf.mxu0
  %v1987 = vadd.f32 0.0, %v1986
  %1988 = vdwg.mxu0
  %1989 = vmatpush.xpose.msra.mxu0 %v1735
  %1990 = vmatpush.xpose.msra.mxu0 %v1732
  %1991 = vmatpush.xpose.msra.mxu0 %v1729
  %1992 = vmatpush.xpose.msra.mxu0 %v1726
  %1993 = vmatpush.xpose.msra.mxu0 %v1723
  %1994 = vmatpush.xpose.msra.mxu0 %v1720
  %1995 = vmatpush.xpose.msra.mxu0 %v1717
  %1996 = vmatpush.xpose.msra.mxu0 %v1714
  %1997 = vmatpush.xpose.msra.mxu0 %v1711
  %1998 = vmatpush.xpose.msra.mxu0 %v1708
  %1999 = vmatpush.xpose.msra.mxu0 %v1705
  %2000 = vmatpush.xpose.msra.mxu0 %v1702
  %2001 = vmatpush.xpose.msra.mxu0 %v1699
  %2002 = vmatpush.xpose.msra.mxu0 %v1696
  %2003 = vmatpush.xpose.msra.mxu0 %v1693
  %2004 = vmatpush.xpose.msra.mxu0 %v1690
  %2005 = vmatmul.f32.gmra.mxu0 %v1375
  %v2006 = vpop.f32.mrf.mxu0
  %v2007 = vadd.f32 0.0, %v2006
  %2008 = vdwg.mxu0
  %2009 = vmatpush.xpose.msra.mxu0 %v1783
  %2010 = vmatpush.xpose.msra.mxu0 %v1780
  %2011 = vmatpush.xpose.msra.mxu0 %v1777
  %2012 = vmatpush.xpose.msra.mxu0 %v1774
  %2013 = vmatpush.xpose.msra.mxu0 %v1771
  %2014 = vmatpush.xpose.msra.mxu0 %v1768
  %2015 = vmatpush.xpose.msra.mxu0 %v1765
  %2016 = vmatpush.xpose.msra.mxu0 %v1762
  %2017 = vmatpush.xpose.msra.mxu0 %v1759
  %2018 = vmatpush.xpose.msra.mxu0 %v1756
  %2019 = vmatpush.xpose.msra.mxu0 %v1753
  %2020 = vmatpush.xpose.msra.mxu0 %v1750
  %2021 = vmatpush.xpose.msra.mxu0 %v1747
  %2022 = vmatpush.xpose.msra.mxu0 %v1744
  %2023 = vmatpush.xpose.msra.mxu0 %v1741
  %2024 = vmatpush.xpose.msra.mxu0 %v1738
  %2025 = vmatmul.f32.gmra.mxu0 %v1377
  %v2026 = vpop.f32.mrf.mxu0
  %v2027 = vadd.f32 0.0, %v2026
  %2028 = vdwg.mxu0
  %2029 = vmatpush.xpose.msra.mxu0 %v1831
  %2030 = vmatpush.xpose.msra.mxu0 %v1828
  %2031 = vmatpush.xpose.msra.mxu0 %v1825
  %2032 = vmatpush.xpose.msra.mxu0 %v1822
  %2033 = vmatpush.xpose.msra.mxu0 %v1819
  %2034 = vmatpush.xpose.msra.mxu0 %v1816
  %2035 = vmatpush.xpose.msra.mxu0 %v1813
  %2036 = vmatpush.xpose.msra.mxu0 %v1810
  %2037 = vmatpush.xpose.msra.mxu0 %v1807
  %2038 = vmatpush.xpose.msra.mxu0 %v1804
  %2039 = vmatpush.xpose.msra.mxu0 %v1801
  %2040 = vmatpush.xpose.msra.mxu0 %v1798
  %2041 = vmatpush.xpose.msra.mxu0 %v1795
  %2042 = vmatpush.xpose.msra.mxu0 %v1792
  %2043 = vmatpush.xpose.msra.mxu0 %v1789
  %2044 = vmatpush.xpose.msra.mxu0 %v1786
  %2045 = vmatmul.f32.gmra.mxu0 %v1379
  %v2046 = vpop.f32.mrf.mxu0
  %v2047 = vadd.f32 0.0, %v2046
  %2048 = vdwg.mxu0
  %2049 = vmatpush.xpose.msra.mxu0 %v1879
  %2050 = vmatpush.xpose.msra.mxu0 %v1876
  %2051 = vmatpush.xpose.msra.mxu0 %v1873
  %2052 = vmatpush.xpose.msra.mxu0 %v1870
  %2053 = vmatpush.xpose.msra.mxu0 %v1867
  %2054 = vmatpush.xpose.msra.mxu0 %v1864
  %2055 = vmatpush.xpose.msra.mxu0 %v1861
  %2056 = vmatpush.xpose.msra.mxu0 %v1858
  %2057 = vmatpush.xpose.msra.mxu0 %v1855
  %2058 = vmatpush.xpose.msra.mxu0 %v1852
  %2059 = vmatpush.xpose.msra.mxu0 %v1849
  %2060 = vmatpush.xpose.msra.mxu0 %v1846
  %2061 = vmatpush.xpose.msra.mxu0 %v1843
  %2062 = vmatpush.xpose.msra.mxu0 %v1840
  %2063 = vmatpush.xpose.msra.mxu0 %v1837
  %2064 = vmatpush.xpose.msra.mxu0 %v1834
  %2065 = vmatmul.f32.gmra.mxu0 %v1381
  %v2066 = vpop.f32.mrf.mxu0
  %v2067 = vadd.f32 0.0, %v2066
  %2068 = vdwg.mxu0
  %2069 = vmatpush.xpose.msra.mxu0 %v1927
  %2070 = vmatpush.xpose.msra.mxu0 %v1924
  %2071 = vmatpush.xpose.msra.mxu0 %v1921
  %2072 = vmatpush.xpose.msra.mxu0 %v1918
  %2073 = vmatpush.xpose.msra.mxu0 %v1915
  %2074 = vmatpush.xpose.msra.mxu0 %v1912
  %2075 = vmatpush.xpose.msra.mxu0 %v1909
  %2076 = vmatpush.xpose.msra.mxu0 %v1906
  %2077 = vmatpush.xpose.msra.mxu0 %v1903
  %2078 = vmatpush.xpose.msra.mxu0 %v1900
  %2079 = vmatpush.xpose.msra.mxu0 %v1897
  %2080 = vmatpush.xpose.msra.mxu0 %v1894
  %2081 = vmatpush.xpose.msra.mxu0 %v1891
  %2082 = vmatpush.xpose.msra.mxu0 %v1888
  %2083 = vmatpush.xpose.msra.mxu0 %v1885
  %2084 = vmatpush.xpose.msra.mxu0 %v1882
  %2085 = vmatmul.f32.gmra.mxu0 %v1383
  %v2086 = vpop.f32.mrf.mxu0
  %v2087 = vadd.f32 0.0, %v2086
  %2088 = vdwg.mxu0
  %v2089 = vlaneseq
  %v2090 = vand.u32 %v2089, 127
  %vm2091 = vcmp.lt.s32.totalorder %v2090, 12
  %v2092 = vsel %vm2091, 1, 0
  %vm2093 = vcmp.eq.s32.totalorder %v2092, 1
  %v2094 = vsel %vm2093, %v1947, -1e+30
  %v2095 = vsel %vm2093, %v1967, -1e+30
  %v2096 = vsel %vm2093, %v1987, -1e+30
  %v2097 = vsel %vm2093, %v2007, -1e+30
  %v2098 = vsel %vm2093, %v2027, -1e+30
  %v2099 = vsel %vm2093, %v2047, -1e+30
  %v2100 = vsel %vm2093, %v2067, -1e+30
  %v2101 = vsel %vm2093, %v2087, -1e+30
  %2102 = vmax.xlane.f32.xlu0 %v2094
  %v2103 = vpop.xlane.xlu0 %2102
  %2104 = vmax.xlane.f32.xlu0 %v2095
  %v2105 = vpop.xlane.xlu0 %2104
  %2106 = vmax.xlane.f32.xlu0 %v2096
  %v2107 = vpop.xlane.xlu0 %2106
  %2108 = vmax.xlane.f32.xlu0 %v2097
  %v2109 = vpop.xlane.xlu0 %2108
  %2110 = vmax.xlane.f32.xlu0 %v2098
  %v2111 = vpop.xlane.xlu0 %2110
  %2112 = vmax.xlane.f32.xlu0 %v2099
  %v2113 = vpop.xlane.xlu0 %2112
  %2114 = vmax.xlane.f32.xlu0 %v2100
  %v2115 = vpop.xlane.xlu0 %2114
  %2116 = vmax.xlane.f32.xlu0 %v2101
  %v2117 = vpop.xlane.xlu0 %2116
  %v2118 = vsub.f32 %v2094, %v2103
  %v2119 = vsub.f32 %v2095, %v2105
  %v2120 = vsub.f32 %v2096, %v2107
  %v2121 = vsub.f32 %v2097, %v2109
  %v2122 = vsub.f32 %v2098, %v2111
  %v2123 = vsub.f32 %v2099, %v2113
  %v2124 = vsub.f32 %v2100, %v2115
  %v2125 = vsub.f32 %v2101, %v2117
  %v2126 = vmul.f32 %v2118, 1.442695
  %v2127 = vpow.pop %v2126
  %v2128 = vmul.f32 %v2119, 1.442695
  %v2129 = vpow.pop %v2128
  %v2130 = vmul.f32 %v2120, 1.442695
  %v2131 = vpow.pop %v2130
  %v2132 = vmul.f32 %v2121, 1.442695
  %v2133 = vpow.pop %v2132
  %v2134 = vmul.f32 %v2122, 1.442695
  %v2135 = vpow.pop %v2134
  %v2136 = vmul.f32 %v2123, 1.442695
  %v2137 = vpow.pop %v2136
  %v2138 = vmul.f32 %v2124, 1.442695
  %v2139 = vpow.pop %v2138
  %v2140 = vmul.f32 %v2125, 1.442695
  %v2141 = vpow.pop %v2140
  %2142 = vadd.xlane.f32.xlu0 %v2127
  %v2143 = vpop.xlane.xlu0 %2142
  %2144 = vadd.xlane.f32.xlu0 %v2129
  %v2145 = vpop.xlane.xlu0 %2144
  %2146 = vadd.xlane.f32.xlu0 %v2131
  %v2147 = vpop.xlane.xlu0 %2146
  %2148 = vadd.xlane.f32.xlu0 %v2133
  %v2149 = vpop.xlane.xlu0 %2148
  %2150 = vadd.xlane.f32.xlu0 %v2135
  %v2151 = vpop.xlane.xlu0 %2150
  %2152 = vadd.xlane.f32.xlu0 %v2137
  %v2153 = vpop.xlane.xlu0 %2152
  %2154 = vadd.xlane.f32.xlu0 %v2139
  %v2155 = vpop.xlane.xlu0 %2154
  %2156 = vadd.xlane.f32.xlu0 %v2141
  %v2157 = vpop.xlane.xlu0 %2156
  %v2158 = vrcp.pop %v2143
  %v2159 = vmul.f32 %v2143, %v2158
  %v2160 = vsub.f32 1.0, %v2159
  %v2161 = vmul.f32 %v2158, %v2160
  %v2162 = vadd.f32 %v2158, %v2161
  %vm2163 = vweird.f32 %v2143
  %vm2164 = vweird.f32 %v2158
  %vm2165 = vmor %vm2163, %vm2164
  %v2166 = vsel %vm2165, %v2158, %v2162
  %v2167 = vand.u32 2147483647, %v2143
  %vm2168 = vcmp.eq.f32.partialorder %v2167, 8.507059e+37
  %v2169 = vand.u32 %v2143, 2147483648
  %v2170 = vor.u32 1.1754944e-38, %v2169
  %v2171 = vsel %vm2168, %v2170, %v2166
  %v2172 = vmul.f32 %v2127, %v2171
  %v2173 = vrcp.pop %v2145
  %v2174 = vmul.f32 %v2145, %v2173
  %v2175 = vsub.f32 1.0, %v2174
  %v2176 = vmul.f32 %v2173, %v2175
  %v2177 = vadd.f32 %v2173, %v2176
  %vm2178 = vweird.f32 %v2145
  %vm2179 = vweird.f32 %v2173
  %vm2180 = vmor %vm2178, %vm2179
  %v2181 = vsel %vm2180, %v2173, %v2177
  %v2182 = vand.u32 2147483647, %v2145
  %vm2183 = vcmp.eq.f32.partialorder %v2182, 8.507059e+37
  %v2184 = vand.u32 %v2145, 2147483648
  %v2185 = vor.u32 1.1754944e-38, %v2184
  %v2186 = vsel %vm2183, %v2185, %v2181
  %v2187 = vmul.f32 %v2129, %v2186
  %v2188 = vrcp.pop %v2147
  %v2189 = vmul.f32 %v2147, %v2188
  %v2190 = vsub.f32 1.0, %v2189
  %v2191 = vmul.f32 %v2188, %v2190
  %v2192 = vadd.f32 %v2188, %v2191
  %vm2193 = vweird.f32 %v2147
  %vm2194 = vweird.f32 %v2188
  %vm2195 = vmor %vm2193, %vm2194
  %v2196 = vsel %vm2195, %v2188, %v2192
  %v2197 = vand.u32 2147483647, %v2147
  %vm2198 = vcmp.eq.f32.partialorder %v2197, 8.507059e+37
  %v2199 = vand.u32 %v2147, 2147483648
  %v2200 = vor.u32 1.1754944e-38, %v2199
  %v2201 = vsel %vm2198, %v2200, %v2196
  %v2202 = vmul.f32 %v2131, %v2201
  %v2203 = vrcp.pop %v2149
  %v2204 = vmul.f32 %v2149, %v2203
  %v2205 = vsub.f32 1.0, %v2204
  %v2206 = vmul.f32 %v2203, %v2205
  %v2207 = vadd.f32 %v2203, %v2206
  %vm2208 = vweird.f32 %v2149
  %vm2209 = vweird.f32 %v2203
  %vm2210 = vmor %vm2208, %vm2209
  %v2211 = vsel %vm2210, %v2203, %v2207
  %v2212 = vand.u32 2147483647, %v2149
  %vm2213 = vcmp.eq.f32.partialorder %v2212, 8.507059e+37
  %v2214 = vand.u32 %v2149, 2147483648
  %v2215 = vor.u32 1.1754944e-38, %v2214
  %v2216 = vsel %vm2213, %v2215, %v2211
  %v2217 = vmul.f32 %v2133, %v2216
  %v2218 = vrcp.pop %v2151
  %v2219 = vmul.f32 %v2151, %v2218
  %v2220 = vsub.f32 1.0, %v2219
  %v2221 = vmul.f32 %v2218, %v2220
  %v2222 = vadd.f32 %v2218, %v2221
  %vm2223 = vweird.f32 %v2151
  %vm2224 = vweird.f32 %v2218
  %vm2225 = vmor %vm2223, %vm2224
  %v2226 = vsel %vm2225, %v2218, %v2222
  %v2227 = vand.u32 2147483647, %v2151
  %vm2228 = vcmp.eq.f32.partialorder %v2227, 8.507059e+37
  %v2229 = vand.u32 %v2151, 2147483648
  %v2230 = vor.u32 1.1754944e-38, %v2229
  %v2231 = vsel %vm2228, %v2230, %v2226
  %v2232 = vmul.f32 %v2135, %v2231
  %v2233 = vrcp.pop %v2153
  %v2234 = vmul.f32 %v2153, %v2233
  %v2235 = vsub.f32 1.0, %v2234
  %v2236 = vmul.f32 %v2233, %v2235
  %v2237 = vadd.f32 %v2233, %v2236
  %vm2238 = vweird.f32 %v2153
  %vm2239 = vweird.f32 %v2233
  %vm2240 = vmor %vm2238, %vm2239
  %v2241 = vsel %vm2240, %v2233, %v2237
  %v2242 = vand.u32 2147483647, %v2153
  %vm2243 = vcmp.eq.f32.partialorder %v2242, 8.507059e+37
  %v2244 = vand.u32 %v2153, 2147483648
  %v2245 = vor.u32 1.1754944e-38, %v2244
  %v2246 = vsel %vm2243, %v2245, %v2241
  %v2247 = vmul.f32 %v2137, %v2246
  %v2248 = vrcp.pop %v2155
  %v2249 = vmul.f32 %v2155, %v2248
  %v2250 = vsub.f32 1.0, %v2249
  %v2251 = vmul.f32 %v2248, %v2250
  %v2252 = vadd.f32 %v2248, %v2251
  %vm2253 = vweird.f32 %v2155
  %vm2254 = vweird.f32 %v2248
  %vm2255 = vmor %vm2253, %vm2254
  %v2256 = vsel %vm2255, %v2248, %v2252
  %v2257 = vand.u32 2147483647, %v2155
  %vm2258 = vcmp.eq.f32.partialorder %v2257, 8.507059e+37
  %v2259 = vand.u32 %v2155, 2147483648
  %v2260 = vor.u32 1.1754944e-38, %v2259
  %v2261 = vsel %vm2258, %v2260, %v2256
  %v2262 = vmul.f32 %v2139, %v2261
  %v2263 = vrcp.pop %v2157
  %v2264 = vmul.f32 %v2157, %v2263
  %v2265 = vsub.f32 1.0, %v2264
  %v2266 = vmul.f32 %v2263, %v2265
  %v2267 = vadd.f32 %v2263, %v2266
  %vm2268 = vweird.f32 %v2157
  %vm2269 = vweird.f32 %v2263
  %vm2270 = vmor %vm2268, %vm2269
  %v2271 = vsel %vm2270, %v2263, %v2267
  %v2272 = vand.u32 2147483647, %v2157
  %vm2273 = vcmp.eq.f32.partialorder %v2272, 8.507059e+37
  %v2274 = vand.u32 %v2157, 2147483648
  %v2275 = vor.u32 1.1754944e-38, %v2274
  %v2276 = vsel %vm2273, %v2275, %v2271
  %v2277 = vmul.f32 %v2141, %v2276
  %2278 = vst [vmem:[%s16] sm:$0xff] %v2172
  %2279 = vst [vmem:[%s16 + $0x8] sm:$0xff] %v2187
  %2280 = vst [vmem:[%s16 + $0x10] sm:$0xff] %v2202
  %2281 = vst [vmem:[%s16 + $0x18] sm:$0xff] %v2217
  %2282 = vst [vmem:[%s16 + $0x20] sm:$0xff] %v2232
  %2283 = vst [vmem:[%s16 + $0x28] sm:$0xff] %v2247
  %2284 = vst [vmem:[%s16 + $0x30] sm:$0xff] %v2262
  %2285 = vst [vmem:[%s16 + $0x38] sm:$0xff] %v2277
  %2286 = vmatpush.msra.mxu0 %v1399
  %2287 = vmatpush.msra.mxu0 %v1398
  %2288 = vmatpush.msra.mxu0 %v1397
  %2289 = vmatpush.msra.mxu0 %v1396
  %2290 = vmatpush.msra.mxu0 %v1395
  %2291 = vmatpush.msra.mxu0 %v1394
  %2292 = vmatpush.msra.mxu0 %v1393
  %2293 = vmatpush.msra.mxu0 %v1392
  %2294 = vmatpush.msra.mxu0 %v1391
  %2295 = vmatpush.msra.mxu0 %v1390
  %2296 = vmatpush.msra.mxu0 %v1389
  %2297 = vmatpush.msra.mxu0 %v1388
  %2298 = vmatpush.msra.mxu0 %v1387
  %2299 = vmatpush.msra.mxu0 %v1386
  %2300 = vmatpush.msra.mxu0 %v1385
  %2301 = vmatpush.msra.mxu0 %v1384
  %2302 = vmatmul.f32.gmra.mxu0 %v2172
  %v2303 = vpop.f32.mrf.mxu0
  %v2304 = vadd.f32 0.0, %v2303
  %2305 = vdwg.mxu0
  %2306 = vmatpush.msra.mxu0 %v1415
  %2307 = vmatpush.msra.mxu0 %v1414
  %2308 = vmatpush.msra.mxu0 %v1413
  %2309 = vmatpush.msra.mxu0 %v1412
  %2310 = vmatpush.msra.mxu0 %v1411
  %2311 = vmatpush.msra.mxu0 %v1410
  %2312 = vmatpush.msra.mxu0 %v1409
  %2313 = vmatpush.msra.mxu0 %v1408
  %2314 = vmatpush.msra.mxu0 %v1407
  %2315 = vmatpush.msra.mxu0 %v1406
  %2316 = vmatpush.msra.mxu0 %v1405
  %2317 = vmatpush.msra.mxu0 %v1404
  %2318 = vmatpush.msra.mxu0 %v1403
  %2319 = vmatpush.msra.mxu0 %v1402
  %2320 = vmatpush.msra.mxu0 %v1401
  %2321 = vmatpush.msra.mxu0 %v1400
  %2322 = vmatmul.f32.gmra.mxu0 %v2187
  %v2323 = vpop.f32.mrf.mxu0
  %v2324 = vadd.f32 0.0, %v2323
  %2325 = vdwg.mxu0
  %2326 = vmatpush.msra.mxu0 %v1431
  %2327 = vmatpush.msra.mxu0 %v1430
  %2328 = vmatpush.msra.mxu0 %v1429
  %2329 = vmatpush.msra.mxu0 %v1428
  %2330 = vmatpush.msra.mxu0 %v1427
  %2331 = vmatpush.msra.mxu0 %v1426
  %2332 = vmatpush.msra.mxu0 %v1425
  %2333 = vmatpush.msra.mxu0 %v1424
  %2334 = vmatpush.msra.mxu0 %v1423
  %2335 = vmatpush.msra.mxu0 %v1422
  %2336 = vmatpush.msra.mxu0 %v1421
  %2337 = vmatpush.msra.mxu0 %v1420
  %2338 = vmatpush.msra.mxu0 %v1419
  %2339 = vmatpush.msra.mxu0 %v1418
  %2340 = vmatpush.msra.mxu0 %v1417
  %2341 = vmatpush.msra.mxu0 %v1416
  %2342 = vmatmul.f32.gmra.mxu0 %v2202
  %v2343 = vpop.f32.mrf.mxu0
  %v2344 = vadd.f32 0.0, %v2343
  %2345 = vdwg.mxu0
  %2346 = vmatpush.msra.mxu0 %v1447
  %2347 = vmatpush.msra.mxu0 %v1446
  %2348 = vmatpush.msra.mxu0 %v1445
  %2349 = vmatpush.msra.mxu0 %v1444
  %2350 = vmatpush.msra.mxu0 %v1443
  %2351 = vmatpush.msra.mxu0 %v1442
  %2352 = vmatpush.msra.mxu0 %v1441
  %2353 = vmatpush.msra.mxu0 %v1440
  %2354 = vmatpush.msra.mxu0 %v1439
  %2355 = vmatpush.msra.mxu0 %v1438
  %2356 = vmatpush.msra.mxu0 %v1437
  %2357 = vmatpush.msra.mxu0 %v1436
  %2358 = vmatpush.msra.mxu0 %v1435
  %2359 = vmatpush.msra.mxu0 %v1434
  %2360 = vmatpush.msra.mxu0 %v1433
  %2361 = vmatpush.msra.mxu0 %v1432
  %2362 = vmatmul.f32.gmra.mxu0 %v2217
  %v2363 = vpop.f32.mrf.mxu0
  %v2364 = vadd.f32 0.0, %v2363
  %2365 = vdwg.mxu0
  %2366 = vmatpush.msra.mxu0 %v1463
  %2367 = vmatpush.msra.mxu0 %v1462
  %2368 = vmatpush.msra.mxu0 %v1461
  %2369 = vmatpush.msra.mxu0 %v1460
  %2370 = vmatpush.msra.mxu0 %v1459
  %2371 = vmatpush.msra.mxu0 %v1458
  %2372 = vmatpush.msra.mxu0 %v1457
  %2373 = vmatpush.msra.mxu0 %v1456
  %2374 = vmatpush.msra.mxu0 %v1455
  %2375 = vmatpush.msra.mxu0 %v1454
  %2376 = vmatpush.msra.mxu0 %v1453
  %2377 = vmatpush.msra.mxu0 %v1452
  %2378 = vmatpush.msra.mxu0 %v1451
  %2379 = vmatpush.msra.mxu0 %v1450
  %2380 = vmatpush.msra.mxu0 %v1449
  %2381 = vmatpush.msra.mxu0 %v1448
  %2382 = vmatmul.f32.gmra.mxu0 %v2232
  %v2383 = vpop.f32.mrf.mxu0
  %v2384 = vadd.f32 0.0, %v2383
  %2385 = vdwg.mxu0
  %2386 = vmatpush.msra.mxu0 %v1479
  %2387 = vmatpush.msra.mxu0 %v1478
  %2388 = vmatpush.msra.mxu0 %v1477
  %2389 = vmatpush.msra.mxu0 %v1476
  %2390 = vmatpush.msra.mxu0 %v1475
  %2391 = vmatpush.msra.mxu0 %v1474
  %2392 = vmatpush.msra.mxu0 %v1473
  %2393 = vmatpush.msra.mxu0 %v1472
  %2394 = vmatpush.msra.mxu0 %v1471
  %2395 = vmatpush.msra.mxu0 %v1470
  %2396 = vmatpush.msra.mxu0 %v1469
  %2397 = vmatpush.msra.mxu0 %v1468
  %2398 = vmatpush.msra.mxu0 %v1467
  %2399 = vmatpush.msra.mxu0 %v1466
  %2400 = vmatpush.msra.mxu0 %v1465
  %2401 = vmatpush.msra.mxu0 %v1464
  %2402 = vmatmul.f32.gmra.mxu0 %v2247
  %v2403 = vpop.f32.mrf.mxu0
  %v2404 = vadd.f32 0.0, %v2403
  %2405 = vdwg.mxu0
  %2406 = vmatpush.msra.mxu0 %v1495
  %2407 = vmatpush.msra.mxu0 %v1494
  %2408 = vmatpush.msra.mxu0 %v1493
  %2409 = vmatpush.msra.mxu0 %v1492
  %2410 = vmatpush.msra.mxu0 %v1491
  %2411 = vmatpush.msra.mxu0 %v1490
  %2412 = vmatpush.msra.mxu0 %v1489
  %2413 = vmatpush.msra.mxu0 %v1488
  %2414 = vmatpush.msra.mxu0 %v1487
  %2415 = vmatpush.msra.mxu0 %v1486
  %2416 = vmatpush.msra.mxu0 %v1485
  %2417 = vmatpush.msra.mxu0 %v1484
  %2418 = vmatpush.msra.mxu0 %v1483
  %2419 = vmatpush.msra.mxu0 %v1482
  %2420 = vmatpush.msra.mxu0 %v1481
  %2421 = vmatpush.msra.mxu0 %v1480
  %2422 = vmatmul.f32.gmra.mxu0 %v2262
  %v2423 = vpop.f32.mrf.mxu0
  %v2424 = vadd.f32 0.0, %v2423
  %2425 = vdwg.mxu0
  %2426 = vmatpush.msra.mxu0 %v1511
  %2427 = vmatpush.msra.mxu0 %v1510
  %2428 = vmatpush.msra.mxu0 %v1509
  %2429 = vmatpush.msra.mxu0 %v1508
  %2430 = vmatpush.msra.mxu0 %v1507
  %2431 = vmatpush.msra.mxu0 %v1506
  %2432 = vmatpush.msra.mxu0 %v1505
  %2433 = vmatpush.msra.mxu0 %v1504
  %2434 = vmatpush.msra.mxu0 %v1503
  %2435 = vmatpush.msra.mxu0 %v1502
  %2436 = vmatpush.msra.mxu0 %v1501
  %2437 = vmatpush.msra.mxu0 %v1500
  %2438 = vmatpush.msra.mxu0 %v1499
  %2439 = vmatpush.msra.mxu0 %v1498
  %2440 = vmatpush.msra.mxu0 %v1497
  %2441 = vmatpush.msra.mxu0 %v1496
  %2442 = vmatmul.f32.gmra.mxu0 %v2277
  %v2443 = vpop.f32.mrf.mxu0
  %v2444 = vadd.f32 0.0, %v2443
  %2445 = vdwg.mxu0
  %v2446 = vld [vmem:[%s9] sm:$0xff]
  %v2447 = vld [vmem:[%s9 + $0x8] sm:$0xff]
  %v2448 = vld [vmem:[%s9 + $0x10] sm:$0xff]
  %v2449 = vld [vmem:[%s9 + $0x18] sm:$0xff]
  %v2450 = vld [vmem:[%s9 + $0x20] sm:$0xff]
  %v2451 = vld [vmem:[%s9 + $0x28] sm:$0xff]
  %v2452 = vld [vmem:[%s9 + $0x30] sm:$0xff]
  %v2453 = vld [vmem:[%s9 + $0x38] sm:$0xff]
  %v2454 = vld [vmem:[%s9 + $0x40] sm:$0xff]
  %v2455 = vld [vmem:[%s9 + $0x48] sm:$0xff]
  %v2456 = vld [vmem:[%s9 + $0x50] sm:$0xff]
  %v2457 = vld [vmem:[%s9 + $0x58] sm:$0xff]
  %v2458 = vld [vmem:[%s9 + $0x60] sm:$0xff]
  %v2459 = vld [vmem:[%s9 + $0x68] sm:$0xff]
  %v2460 = vld [vmem:[%s9 + $0x70] sm:$0xff]
  %v2461 = vld [vmem:[%s9 + $0x78] sm:$0xff]
  %v2462 = vld [vmem:[%s10] sm:$0xff]
  %v2463 = vld [vmem:[%s10 + $0x8] sm:$0xff]
  %v2464 = vld [vmem:[%s10 + $0x10] sm:$0xff]
  %v2465 = vld [vmem:[%s10 + $0x18] sm:$0xff]
  %v2466 = vld [vmem:[%s10 + $0x20] sm:$0xff]
  %v2467 = vld [vmem:[%s10 + $0x28] sm:$0xff]
  %v2468 = vld [vmem:[%s10 + $0x30] sm:$0xff]
  %v2469 = vld [vmem:[%s10 + $0x38] sm:$0xff]
  %v2470 = vld [vmem:[%s10 + $0x40] sm:$0xff]
  %v2471 = vld [vmem:[%s10 + $0x48] sm:$0xff]
  %v2472 = vld [vmem:[%s10 + $0x50] sm:$0xff]
  %v2473 = vld [vmem:[%s10 + $0x58] sm:$0xff]
  %v2474 = vld [vmem:[%s10 + $0x60] sm:$0xff]
  %v2475 = vld [vmem:[%s10 + $0x68] sm:$0xff]
  %v2476 = vld [vmem:[%s10 + $0x70] sm:$0xff]
  %v2477 = vld [vmem:[%s10 + $0x78] sm:$0xff]
  %2478 = vmatpush.msra.mxu0 %v2477
  %2479 = vmatpush.msra.mxu0 %v2476
  %2480 = vmatpush.msra.mxu0 %v2475
  %2481 = vmatpush.msra.mxu0 %v2474
  %2482 = vmatpush.msra.mxu0 %v2473
  %2483 = vmatpush.msra.mxu0 %v2472
  %2484 = vmatpush.msra.mxu0 %v2471
  %2485 = vmatpush.msra.mxu0 %v2470
  %2486 = vmatpush.msra.mxu0 %v2469
  %2487 = vmatpush.msra.mxu0 %v2468
  %2488 = vmatpush.msra.mxu0 %v2467
  %2489 = vmatpush.msra.mxu0 %v2466
  %2490 = vmatpush.msra.mxu0 %v2465
  %2491 = vmatpush.msra.mxu0 %v2464
  %2492 = vmatpush.msra.mxu0 %v2463
  %2493 = vmatpush.msra.mxu0 %v2462
  %2494 = vmatmul.f32.gmra.mxu0 %v1369
  %v2495 = vpop.f32.mrf.mxu0
  %v2496 = vadd.f32 0.0, %v2495
  %2497 = vmatmul.f32.gmra.mxu0 %v1371
  %v2498 = vpop.f32.mrf.mxu0
  %v2499 = vadd.f32 0.0, %v2498
  %2500 = vmatmul.f32.gmra.mxu0 %v1373
  %v2501 = vpop.f32.mrf.mxu0
  %v2502 = vadd.f32 0.0, %v2501
  %2503 = vmatmul.f32.gmra.mxu0 %v1375
  %v2504 = vpop.f32.mrf.mxu0
  %v2505 = vadd.f32 0.0, %v2504
  %2506 = vmatmul.f32.gmra.mxu0 %v1377
  %v2507 = vpop.f32.mrf.mxu0
  %v2508 = vadd.f32 0.0, %v2507
  %2509 = vmatmul.f32.gmra.mxu0 %v1379
  %v2510 = vpop.f32.mrf.mxu0
  %v2511 = vadd.f32 0.0, %v2510
  %2512 = vmatmul.f32.gmra.mxu0 %v1381
  %v2513 = vpop.f32.mrf.mxu0
  %v2514 = vadd.f32 0.0, %v2513
  %2515 = vmatmul.f32.gmra.mxu0 %v1383
  %v2516 = vpop.f32.mrf.mxu0
  %v2517 = vadd.f32 0.0, %v2516
  %2518 = vdwg.mxu0
  %2519 = vmatpush.msra.mxu0 %v2461
  %2520 = vmatpush.msra.mxu0 %v2460
  %2521 = vmatpush.msra.mxu0 %v2459
  %2522 = vmatpush.msra.mxu0 %v2458
  %2523 = vmatpush.msra.mxu0 %v2457
  %2524 = vmatpush.msra.mxu0 %v2456
  %2525 = vmatpush.msra.mxu0 %v2455
  %2526 = vmatpush.msra.mxu0 %v2454
  %2527 = vmatpush.msra.mxu0 %v2453
  %2528 = vmatpush.msra.mxu0 %v2452
  %2529 = vmatpush.msra.mxu0 %v2451
  %2530 = vmatpush.msra.mxu0 %v2450
  %2531 = vmatpush.msra.mxu0 %v2449
  %2532 = vmatpush.msra.mxu0 %v2448
  %2533 = vmatpush.msra.mxu0 %v2447
  %2534 = vmatpush.msra.mxu0 %v2446
  %2535 = vmatmul.f32.gmra.mxu0 %v2304
  %v2536 = vpop.f32.mrf.mxu0
  %v2537 = vadd.f32 %v2496, %v2536
  %2538 = vmatmul.f32.gmra.mxu0 %v2324
  %v2539 = vpop.f32.mrf.mxu0
  %v2540 = vadd.f32 %v2499, %v2539
  %2541 = vmatmul.f32.gmra.mxu0 %v2344
  %v2542 = vpop.f32.mrf.mxu0
  %v2543 = vadd.f32 %v2502, %v2542
  %2544 = vmatmul.f32.gmra.mxu0 %v2364
  %v2545 = vpop.f32.mrf.mxu0
  %v2546 = vadd.f32 %v2505, %v2545
  %2547 = vmatmul.f32.gmra.mxu0 %v2384
  %v2548 = vpop.f32.mrf.mxu0
  %v2549 = vadd.f32 %v2508, %v2548
  %2550 = vmatmul.f32.gmra.mxu0 %v2404
  %v2551 = vpop.f32.mrf.mxu0
  %v2552 = vadd.f32 %v2511, %v2551
  %2553 = vmatmul.f32.gmra.mxu0 %v2424
  %v2554 = vpop.f32.mrf.mxu0
  %v2555 = vadd.f32 %v2514, %v2554
  %2556 = vmatmul.f32.gmra.mxu0 %v2444
  %v2557 = vpop.f32.mrf.mxu0
  %v2558 = vadd.f32 %v2517, %v2557
  %2559 = vdwg.mxu0
  %v2560 = vld [vmem:[%s11] sm:$0x1]
  %v2562 = vperm.slane %v2560, 0
  %v2564 = vadd.f32 %v2537, %v2562
  %v2565 = vadd.f32 %v2540, %v2562
  %v2566 = vadd.f32 %v2543, %v2562
  %v2567 = vadd.f32 %v2546, %v2562
  %v2568 = vadd.f32 %v2549, %v2562
  %v2569 = vadd.f32 %v2552, %v2562
  %v2570 = vadd.f32 %v2555, %v2562
  %v2571 = vadd.f32 %v2558, %v2562
  %v2572 = vtanh.pop %v2564
  %v2573 = vtanh.pop %v2565
  %v2574 = vtanh.pop %v2566
  %v2575 = vtanh.pop %v2567
  %v2576 = vtanh.pop %v2568
  %v2577 = vtanh.pop %v2569
  %v2578 = vtanh.pop %v2570
  %v2579 = vtanh.pop %v2571
  %v2580 = vld [vmem:[%s12] sm:$0xff]
  %v2581 = vld [vmem:[%s12 + $0x8] sm:$0xff]
  %v2582 = vld [vmem:[%s12 + $0x10] sm:$0xff]
  %v2583 = vld [vmem:[%s12 + $0x18] sm:$0xff]
  %v2584 = vld [vmem:[%s12 + $0x20] sm:$0xff]
  %v2585 = vld [vmem:[%s12 + $0x28] sm:$0xff]
  %v2586 = vld [vmem:[%s12 + $0x30] sm:$0xff]
  %v2587 = vld [vmem:[%s12 + $0x38] sm:$0xff]
  %v2588 = vld [vmem:[%s12 + $0x40] sm:$0xff]
  %v2589 = vld [vmem:[%s12 + $0x48] sm:$0xff]
  %v2590 = vld [vmem:[%s12 + $0x50] sm:$0xff]
  %v2591 = vld [vmem:[%s12 + $0x58] sm:$0xff]
  %v2592 = vld [vmem:[%s12 + $0x60] sm:$0xff]
  %v2593 = vld [vmem:[%s12 + $0x68] sm:$0xff]
  %v2594 = vld [vmem:[%s12 + $0x70] sm:$0xff]
  %v2595 = vld [vmem:[%s12 + $0x78] sm:$0xff]
  %v2596 = vld [vmem:[%s13] sm:$0x1]
  %v2598 = vperm.slane %v2596, 0
  %2600 = vmatpush.msra.mxu0 %v2595
  %2601 = vmatpush.msra.mxu0 %v2594
  %2602 = vmatpush.msra.mxu0 %v2593
  %2603 = vmatpush.msra.mxu0 %v2592
  %2604 = vmatpush.msra.mxu0 %v2591
  %2605 = vmatpush.msra.mxu0 %v2590
  %2606 = vmatpush.msra.mxu0 %v2589
  %2607 = vmatpush.msra.mxu0 %v2588
  %2608 = vmatpush.msra.mxu0 %v2587
  %2609 = vmatpush.msra.mxu0 %v2586
  %2610 = vmatpush.msra.mxu0 %v2585
  %2611 = vmatpush.msra.mxu0 %v2584
  %2612 = vmatpush.msra.mxu0 %v2583
  %2613 = vmatpush.msra.mxu0 %v2582
  %2614 = vmatpush.msra.mxu0 %v2581
  %2615 = vmatpush.msra.mxu0 %v2580
  %2616 = vmatmul.f32.gmra.mxu0 %v2572
  %v2617 = vpop.f32.mrf.mxu0
  %v2618 = vadd.f32 %v2598, %v2617
  %2619 = vmatmul.f32.gmra.mxu0 %v2573
  %v2620 = vpop.f32.mrf.mxu0
  %v2621 = vadd.f32 %v2598, %v2620
  %2622 = vmatmul.f32.gmra.mxu0 %v2574
  %v2623 = vpop.f32.mrf.mxu0
  %v2624 = vadd.f32 %v2598, %v2623
  %2625 = vmatmul.f32.gmra.mxu0 %v2575
  %v2626 = vpop.f32.mrf.mxu0
  %v2627 = vadd.f32 %v2598, %v2626
  %2628 = vmatmul.f32.gmra.mxu0 %v2576
  %v2629 = vpop.f32.mrf.mxu0
  %v2630 = vadd.f32 %v2598, %v2629
  %2631 = vmatmul.f32.gmra.mxu0 %v2577
  %v2632 = vpop.f32.mrf.mxu0
  %v2633 = vadd.f32 %v2598, %v2632
  %2634 = vmatmul.f32.gmra.mxu0 %v2578
  %v2635 = vpop.f32.mrf.mxu0
  %v2636 = vadd.f32 %v2598, %v2635
  %2637 = vmatmul.f32.gmra.mxu0 %v2579
  %v2638 = vpop.f32.mrf.mxu0
  %v2639 = vadd.f32 %v2598, %v2638
  %2640 = vdwg.mxu0
  %2641 = vmax.xlane.f32.xlu0 %v2618
  %v2642 = vpop.xlane.xlu0 %2641
  %2643 = vmax.xlane.f32.xlu0 %v2621
  %v2644 = vpop.xlane.xlu0 %2643
  %2645 = vmax.xlane.f32.xlu0 %v2624
  %v2646 = vpop.xlane.xlu0 %2645
  %2647 = vmax.xlane.f32.xlu0 %v2627
  %v2648 = vpop.xlane.xlu0 %2647
  %2649 = vmax.xlane.f32.xlu0 %v2630
  %v2650 = vpop.xlane.xlu0 %2649
  %2651 = vmax.xlane.f32.xlu0 %v2633
  %v2652 = vpop.xlane.xlu0 %2651
  %2653 = vmax.xlane.f32.xlu0 %v2636
  %v2654 = vpop.xlane.xlu0 %2653
  %2655 = vmax.xlane.f32.xlu0 %v2639
  %v2656 = vpop.xlane.xlu0 %2655
  %v2657 = vsub.f32 %v2618, %v2642
  %v2658 = vsub.f32 %v2621, %v2644
  %v2659 = vsub.f32 %v2624, %v2646
  %v2660 = vsub.f32 %v2627, %v2648
  %v2661 = vsub.f32 %v2630, %v2650
  %v2662 = vsub.f32 %v2633, %v2652
  %v2663 = vsub.f32 %v2636, %v2654
  %v2664 = vsub.f32 %v2639, %v2656
  %v2665 = vmul.f32 %v2657, 1.442695
  %v2666 = vpow.pop %v2665
  %v2667 = vmul.f32 %v2658, 1.442695
  %v2668 = vpow.pop %v2667
  %v2669 = vmul.f32 %v2659, 1.442695
  %v2670 = vpow.pop %v2669
  %v2671 = vmul.f32 %v2660, 1.442695
  %v2672 = vpow.pop %v2671
  %v2673 = vmul.f32 %v2661, 1.442695
  %v2674 = vpow.pop %v2673
  %v2675 = vmul.f32 %v2662, 1.442695
  %v2676 = vpow.pop %v2675
  %v2677 = vmul.f32 %v2663, 1.442695
  %v2678 = vpow.pop %v2677
  %v2679 = vmul.f32 %v2664, 1.442695
  %v2680 = vpow.pop %v2679
  %2681 = vadd.xlane.f32.xlu0 %v2666
  %v2682 = vpop.xlane.xlu0 %2681
  %2683 = vadd.xlane.f32.xlu0 %v2668
  %v2684 = vpop.xlane.xlu0 %2683
  %2685 = vadd.xlane.f32.xlu0 %v2670
  %v2686 = vpop.xlane.xlu0 %2685
  %2687 = vadd.xlane.f32.xlu0 %v2672
  %v2688 = vpop.xlane.xlu0 %2687
  %2689 = vadd.xlane.f32.xlu0 %v2674
  %v2690 = vpop.xlane.xlu0 %2689
  %2691 = vadd.xlane.f32.xlu0 %v2676
  %v2692 = vpop.xlane.xlu0 %2691
  %2693 = vadd.xlane.f32.xlu0 %v2678
  %v2694 = vpop.xlane.xlu0 %2693
  %2695 = vadd.xlane.f32.xlu0 %v2680
  %v2696 = vpop.xlane.xlu0 %2695
  %v2697 = vlog2.pop %v2682
  %v2698 = vmul.f32 %v2697, 0.6931472
  %v2699 = vlog2.pop %v2684
  %v2700 = vmul.f32 %v2699, 0.6931472
  %v2701 = vlog2.pop %v2686
  %v2702 = vmul.f32 %v2701, 0.6931472
  %v2703 = vlog2.pop %v2688
  %v2704 = vmul.f32 %v2703, 0.6931472
  %v2705 = vlog2.pop %v2690
  %v2706 = vmul.f32 %v2705, 0.6931472
  %v2707 = vlog2.pop %v2692
  %v2708 = vmul.f32 %v2707, 0.6931472
  %v2709 = vlog2.pop %v2694
  %v2710 = vmul.f32 %v2709, 0.6931472
  %v2711 = vlog2.pop %v2696
  %v2712 = vmul.f32 %v2711, 0.6931472
  %v2713 = vsub.f32 %v2657, %v2698
  %v2714 = vsub.f32 %v2658, %v2700
  %v2715 = vsub.f32 %v2659, %v2702
  %v2716 = vsub.f32 %v2660, %v2704
  %v2717 = vsub.f32 %v2661, %v2706
  %v2718 = vsub.f32 %v2662, %v2708
  %v2719 = vsub.f32 %v2663, %v2710
  %v2720 = vsub.f32 %v2664, %v2712
  %2721 = vst [vmem:[%s14] sm:$0xff] %v2713
  %2722 = vst [vmem:[%s14 + $0x8] sm:$0xff] %v2714
  %2723 = vst [vmem:[%s14 + $0x10] sm:$0xff] %v2715
  %2724 = vst [vmem:[%s14 + $0x18] sm:$0xff] %v2716
  %2725 = vst [vmem:[%s14 + $0x20] sm:$0xff] %v2717
  %2726 = vst [vmem:[%s14 + $0x28] sm:$0xff] %v2718
  %2727 = vst [vmem:[%s14 + $0x30] sm:$0xff] %v2719
  %2728 = vst [vmem:[%s14 + $0x38] sm:$0xff] %v2720
  // Predicated region
  $region58: #{decoder_forward.1} parent=0 // pred_check
    _
  $region59: #{decoder_forward.1} parent=0 // pred_check_branch
    %2730 = sbr.rel (0) target = $region61
  $region60: #{decoder_forward.1} parent=0 // pred_region
    _
  $region61: #{decoder_forward.1} parent=0 // pred_fallthru
    _
  // Predicated region
  $region62: #{decoder_forward.1} parent=0 // pred_check
    _
  $region63: #{decoder_forward.1} parent=0 // pred_check_branch
    %2732 = sbr.rel (0) target = $region65
  $region64: #{decoder_forward.1} parent=0 // pred_region
    _
  $region65: #{decoder_forward.1} parent=0 // pred_fallthru
    _
  // Predicated region
  $region66: #{decoder_forward.1} parent=0 // pred_check
    _
  $region67: #{decoder_forward.1} parent=0 // pred_check_branch
    %2734 = sbr.rel (0) target = $region69
  $region68: #{decoder_forward.1} parent=0 // pred_region
    _
  $region69: #{decoder_forward.1} parent=0 // pred_fallthru
    _
  // Predicated region
  $region70: #{decoder_forward.1} parent=0 // pred_check
    _
  $region71: #{decoder_forward.1} parent=0 // pred_check_branch
    %2736 = sbr.rel (0) target = $region73
  $region72: #{decoder_forward.1} parent=0 // pred_region
    _
  $region73: #{decoder_forward.1} parent=0 // pred_fallthru
    _
  // Predicated region
  $region74: #{decoder_forward.1} parent=0 // pred_check
    _
  $region75: #{decoder_forward.1} parent=0 // pred_check_branch
    %2738 = sbr.rel (0) target = $region77
  $region76: #{decoder_forward.1} parent=0 // pred_region
    _
  $region77: #{decoder_forward.1} parent=0 // pred_fallthru
    _
  // Predicated region
  $region78: #{decoder_forward.1} parent=0 // pred_check
    _
  $region79: #{decoder_forward.1} parent=0 // pred_check_branch
    %2740 = sbr.rel (0) target = $region81
  $region80: #{decoder_forward.1} parent=0 // pred_region
    _
  $region81: #{decoder_forward.1} parent=0 // pred_fallthru
    _

</llo_original>
